<compile_context>
chip_gen: v7x
topology: tpu7x:2x2x1
jax: 0.10.0
libtpu: 0.0.40
codegen_flags: <defaults>
</compile_context>

<pallas_src>
import math
import jax
import jax.numpy as jnp
from jax import lax
from jax.experimental import pallas as pl
from jax.experimental.pallas import tpu as pltpu


def _round_up(x, m):
    return ((x + m - 1) // m) * m


def _divisor_tile(total, unit, request, min_blocks=1):
    """Largest multiple-of-`unit` divisor of `total` that is <= `request` and leaves at
    least `min_blocks` grid blocks (when achievable). Guarantees zero padding waste
    beyond the (8, 128) rounding of `total` itself."""
    assert total > 0 and total % unit == 0
    m = total // unit
    best = unit
    for d in range(1, m + 1):
        if m % d == 0:
            cand = unit * d
            if cand <= request and (total // cand) >= min_blocks:
                best = max(best, cand)
    return best


def _smaller_divisor_tile(total, unit, current):
    """Next smaller multiple-of-`unit` divisor of `total` strictly below `current`."""
    m = total // unit
    best = unit
    for d in range(1, m + 1):
        if m % d == 0:
            cand = unit * d
            if cand < current:
                best = max(best, cand)
    return best


def _vmem_bytes(N, C, B, block_h, block_l):
    """Rough double-buffered VMEM working-set estimate (f32)."""
    f = 4
    exptab = N * block_h * block_l * f                    # scratch (single buffer)
    outs = 2 * (C + B) * block_h * block_l * f            # double-buffered outputs
    weights = 2 * N * (1 + C + B) * block_h * 128 * f     # trailing-1 lane inflation
    return exptab + outs + weights


def _ssm_kernel_pallas(dtA_nh1, cb_cnh1, state_bnh1, L_pad, block_h, block_l,
                       out_dtype=jnp.float32):
    """Returns (K (C,H_pad,L_pad), K_state (B,H_pad,L_pad) or None)."""
    N, H_pad, _ = dtA_nh1.shape
    C = cb_cnh1.shape[0]
    has_state = state_bnh1 is not None
    B = state_bnh1.shape[0] if has_state else 0
    assert H_pad % block_h == 0 and L_pad % block_l == 0
    n_strips = block_l // 128
    grid = (H_pad // block_h, L_pad // block_l)
    # NOTE: the exp-table scratch caching requires the L axis to be the innermost,
    # sequentially iterated ("arbitrary") grid axis. Do not reorder the grid or mark
    # the L axis "parallel".

    def body(*refs):
        if has_state:
            dtA_ref, cb_ref, state_ref, k_ref, ks_ref, exptab_ref = refs
        else:
            dtA_ref, cb_ref, k_ref, exptab_ref = refs
            state_ref = ks_ref = None

        lt = pl.program_id(1)

        # ---- Build exp(dtA[n,h] * l_local) once per H block (hybrid EUP/VPU). ----
        # Only the first 128-lane strip goes through the EUP; strips k >= 1 are
        # strip_{k-1} * exp(dtA*128) (a (block_h,1) factor), i.e. cheap VPU multiplies.
        @pl.when(lt == 0)
        def _():
            l128 = lax.broadcasted_iota(
                jnp.int32, (block_h, 128), 1).astype(jnp.float32)
            for n in range(N):
                dt_n = dtA_ref[n]                        # (block_h, 1), <= 0 by init
                strip = jnp.exp(dt_n * l128)             # (block_h, 128)   EUP
                exptab_ref[n, :, 0:128] = strip
                if n_strips > 1:
                    step = jnp.exp(dt_n * 128.0)         # (block_h, 1)     EUP (tiny)
                    for k in range(1, n_strips):
                        strip = strip * step             # VPU
                        exptab_ref[n, :, k * 128:(k + 1) * 128] = strip

        # ---- Per-tile global scale exp(dtA * l0), one vectorized EUP push. ----
        # Overflow-safe only because dtA <= 0 (stable negative-diagonal SSM init); a
        # non-negative dtA could overflow here where the unfactored exp would not.
        l0 = (lt * block_l).astype(jnp.float32)
        scales_all = jnp.exp(dtA_ref[...] * l0)          # (N, block_h, 1)
        scales = [scales_all[n] for n in range(N)]

        # ---- Unrolled VPU contraction over the tiny state dim N. ----
        def contract(row_w):
            acc = (row_w[0] * scales[0]) * exptab_ref[0]
            for n in range(1, N):
                acc = acc + (row_w[n] * scales[n]) * exptab_ref[n]
            return acc                                    # (block_h, block_l) f32

        for c in range(C):
            k_ref[c] = contract([cb_ref[c, n] for n in range(N)]).astype(k_ref.dtype)
        if has_state:
            for b in range(B):
                ks_ref[b] = contract(
                    [state_ref[b, n] for n in range(N)]).astype(ks_ref.dtype)

    in_specs = [
        pl.BlockSpec((N, block_h, 1), lambda h, l: (0, h, 0)),
        pl.BlockSpec((C, N, block_h, 1), lambda h, l: (0, 0, h, 0)),
    ]
    inputs = [dtA_nh1, cb_cnh1]
    if has_state:
        in_specs.append(pl.BlockSpec((B, N, block_h, 1), lambda h, l: (0, 0, h, 0)))
        inputs.append(state_bnh1)
        out_shape = (jax.ShapeDtypeStruct((C, H_pad, L_pad), out_dtype),
                     jax.ShapeDtypeStruct((B, H_pad, L_pad), out_dtype))
        out_specs = [pl.BlockSpec((C, block_h, block_l), lambda h, l: (0, h, l)),
                     pl.BlockSpec((B, block_h, block_l), lambda h, l: (0, h, l))]
    else:
        out_shape = jax.ShapeDtypeStruct((C, H_pad, L_pad), out_dtype)
        out_specs = pl.BlockSpec((C, block_h, block_l), lambda h, l: (0, h, l))

    n_l_tiles = L_pad // block_l
    elems_out = (C + B) * H_pad * L_pad
    out_bytes = jnp.dtype(out_dtype).itemsize
    cost = pl.CostEstimate(
        flops=int(2 * N * elems_out),
        transcendentals=int(N * H_pad * (129 + n_l_tiles)),
        bytes_accessed=int(out_bytes * elems_out
                           + 4 * N * (1 + C + B) * H_pad * n_l_tiles),
    )

    result = pl.pallas_call(
        body,
        out_shape=out_shape,
        grid_spec=pltpu.PrefetchScalarGridSpec(
            num_scalar_prefetch=0,
            grid=grid,
            in_specs=in_specs,
            out_specs=out_specs,
            scratch_shapes=[pltpu.VMEM((N, block_h, block_l), jnp.float32)],
        ),
        compiler_params=pltpu.CompilerParams(
            dimension_semantics=("parallel", "arbitrary")),
        cost_estimate=cost,
    )(*inputs)

    if has_state:
        return result[0], result[1]
    return result, None


class KernelPallas:
    """JAX/Pallas counterpart of the PyTorch `Kernel` interface (diagonal-SSM instantiation)."""

    def __init__(self, d_model: int, channels: int = 1, l_max: int = None,
                 d_state: int = 8, lr=None, wd=0.0, *, key):
        assert d_model > 0
        self.H = self.d_model = d_model
        self.L = self.l_max = l_max
        self.channels = channels
        self.N = d_state
        self.lr, self.wd = lr, wd  # interface parity only (optimizer hints)

        k_dt, k_C, k_B = jax.random.split(key, 3)
        # S4-style init: log-uniform dt, stable (negative) diagonal A.
        log_dt = (jax.random.uniform(k_dt, (self.H,), jnp.float32)
                  * (math.log(0.1) - math.log(0.001)) + math.log(0.001))
        self.dt = jnp.exp(log_dt)                                           # (H,)
        self.A = -(jnp.arange(self.N, dtype=jnp.float32) + 1.0)             # (N,)
        self.A = jnp.broadcast_to(self.A, (self.H, self.N))                 # (H, N)
        self.B = jax.random.normal(k_B, (self.H, self.N), jnp.float32)      # (H, N)
        self.C = (jax.random.normal(k_C, (self.channels, self.H, self.N),
                                    jnp.float32) / math.sqrt(self.N))       # (C, H, N)

    def forward(self, state=None, rate=1.0, L=None, block_h=64, block_l=1024,
                out_dtype=jnp.float32):
        """Returns (C, H, L) kernel and (B, H, L) state contribution (or None)."""
        if L is None:
            L = self.L
        H, C_, N = self.H, self.channels, self.N
        L = int(L)
        B = 0 if state is None else int(state.shape[0])

        # Zero-waste tiling: pad H/L only to the mandatory (8, 128) rounding, and pick
        # block sizes that divide the padded extents exactly (no oversized padded writes,
        # no extra full-tensor wrapper-slice HBM pass).
        H_pad = _round_up(H, 8)
        L_pad = _round_up(max(L, 1), 128)
        # v7x megacore: keep >= 2 blocks on the "parallel" H axis whenever possible so
        # both TensorCores get work. Harmless on single-TC v5e / v6e.
        min_h_blocks = 2 if H_pad >= 16 else 1
        block_h = _divisor_tile(H_pad, 8, max(8, int(block_h)), min_blocks=min_h_blocks)
        block_l = _divisor_tile(L_pad, 128, max(128, int(block_l)))

        # VMEM sanity: shrink tiles (L first, then H) until the double-buffered working
        # set fits comfortably under the 32 MiB default scoped VMEM on all generations
        # (v7x has only 64 MiB physical per core).
        budget = 24 * (1 << 20)
        while _vmem_bytes(N, C_, B, block_h, block_l) > budget and block_l > 128:
            block_l = _smaller_divisor_tile(L_pad, 128, block_l)
        while _vmem_bytes(N, C_, B, block_h, block_l) > budget and block_h > 8:
            block_h = _smaller_divisor_tile(H_pad, 8, block_h)

        # Tiny parameter glue (H*N sized): fold rate into dt, pre-multiply C*B, and lay
        # out operands so every per-n weight is a (block_h, 1) sublane slab in-kernel.
        dtA = (rate * self.dt)[:, None] * self.A                       # (H, N)
        dtA_nh1 = jnp.transpose(dtA)[:, :, None].astype(jnp.float32)   # (N, H, 1)
        cb = self.C * self.B[None, :, :]                               # (C, H, N)
        cb_cnh1 = jnp.transpose(cb, (0, 2, 1))[..., None].astype(jnp.float32)  # (C, N, H, 1)

        pad_h = H_pad - H
        if pad_h:
            dtA_nh1 = jnp.pad(dtA_nh1, ((0, 0), (0, pad_h), (0, 0)))
            cb_cnh1 = jnp.pad(cb_cnh1, ((0, 0), (0, 0), (0, pad_h), (0, 0)))

        state_bnh1 = None
        if state is not None:
            state_bnh1 = jnp.transpose(state.astype(jnp.float32),
                                       (0, 2, 1))[..., None]           # (B, N, H, 1)
            if pad_h:
                state_bnh1 = jnp.pad(state_bnh1, ((0, 0), (0, 0), (0, pad_h), (0, 0)))

        k_pad, ks_pad = _ssm_kernel_pallas(dtA_nh1, cb_cnh1, state_bnh1,
                                           L_pad, block_h, block_l, out_dtype)

        # Crop only when the problem shape itself is unaligned (avoids an extra HBM pass
        # in the common aligned case).
        if H_pad == H and L_pad == L:
            k = k_pad
            k_state = ks_pad
        else:
            k = k_pad[:, :H, :L]
            k_state = None if ks_pad is None else ks_pad[:, :H, :L]
        return k, k_state


if __name__ == "__main__":
    key = jax.random.PRNGKey(0)
    k_mod, k_state = jax.random.split(key)

    # Small shapes; L is deliberately not a multiple of 128 to exercise padding.
    Hdim, Cdim, Ndim, Ldim, Bdim = 32, 2, 8, 300, 2
    mod = KernelPallas(d_model=Hdim, channels=Cdim, l_max=Ldim, d_state=Ndim, key=k_mod)
    state = jax.random.normal(k_state, (Bdim, Hdim, Ndim), jnp.float32)

    # Default auto-chosen tiles: block_h -> 16 (>= 2 H blocks for megacore),
    # block_l -> 384 (exercises the VPU strip extension of the exp table).
    kern, kern_state = mod.forward(state=state, rate=1.0, L=Ldim)
    kern = jax.block_until_ready(kern)
    kern_state = jax.block_until_ready(kern_state)

    # Small tiles: (4, 3) grid, exercises the cached-table / per-tile-scale path.
    kern2, kern_state2 = mod.forward(state=state, rate=1.0, L=Ldim,
                                     block_h=8, block_l=128)
    kern2 = jax.block_until_ready(kern2)
    kern_state2 = jax.block_until_ready(kern_state2)

    # Kernel-only path (state=None): state contraction / output is compiled out.
    kern_only, none_state = mod.forward(state=None, rate=1.0, L=Ldim)
    kern_only = jax.block_until_ready(kern_only)
    assert none_state is None

    # Pure-JAX reference.
    l_idx = jnp.arange(Ldim, dtype=jnp.float32)
    expmat = jnp.exp((mod.dt[:, None] * mod.A)[:, :, None] * l_idx)          # (H, N, L)
    kern_ref = jnp.einsum("chn,hn,hnl->chl", mod.C, mod.B, expmat)           # (C, H, L)
    kern_state_ref = jnp.einsum("bhn,hnl->bhl", state, expmat)               # (B, H, L)

    assert kern.shape == (Cdim, Hdim, Ldim)
    assert kern_state.shape == (Bdim, Hdim, Ldim)
    assert jnp.allclose(kern, kern_ref, atol=1e-4, rtol=1e-4)
    assert jnp.allclose(kern_state, kern_state_ref, atol=1e-4, rtol=1e-4)
    assert jnp.allclose(kern2, kern_ref, atol=1e-4, rtol=1e-4)
    assert jnp.allclose(kern_state2, kern_state_ref, atol=1e-4, rtol=1e-4)
    assert jnp.allclose(kern_only, kern_ref, atol=1e-4, rtol=1e-4)

    print("KERNEL_OK")
</pallas_src>

<mosaic_0001>
module attributes {stable_mosaic.version = 11 : i64} {
  func.func @body(%arg0: i32, %arg1: i32, %arg2: memref<8x16x1xf32, #tpu.memory_space<vmem>>, %arg3: memref<2x8x16x1xf32, #tpu.memory_space<vmem>>, %arg4: memref<2x8x16x1xf32, #tpu.memory_space<vmem>>, %arg5: memref<2x16x384xf32, #tpu.memory_space<vmem>>, %arg6: memref<2x16x384xf32, #tpu.memory_space<vmem>>, %arg7: memref<8x16x384xf32, #tpu.memory_space<vmem>>) attributes {dimension_semantics = [#tpu.dimension_semantics<parallel>, #tpu.dimension_semantics<arbitrary>], iteration_bounds = array<i64: 2, 1>, scalar_prefetch = 0 : i64, scratch_operands = 1 : i64, tpu.core_type = #tpu.core_type<tc>, window_params = [{transform_indices = @transform_0, window_bounds = array<i64: 8, 16, 1>}, {transform_indices = @transform_1, window_bounds = array<i64: 2, 8, 16, 1>}, {transform_indices = @transform_2, window_bounds = array<i64: 2, 8, 16, 1>}, {transform_indices = @transform_3, window_bounds = array<i64: 2, 16, 384>}, {transform_indices = @transform_4, window_bounds = array<i64: 2, 16, 384>}]} {
    %c0_i32 = arith.constant 0 : i32
    %0 = arith.cmpi eq, %arg1, %c0_i32 : i32
    %1 = arith.extui %0 : i1 to i32
    %c0_i32_0 = arith.constant 0 : i32
    %2 = arith.cmpi ne, %1, %c0_i32_0 : i32
    scf.if %2 {
      %289 = tpu.iota {dimensions = array<i32: 1>} : vector<16x128xi32>
      %290 = arith.sitofp %289 : vector<16x128xi32> to vector<16x128xf32>
      %c0_232 = arith.constant 0 : index
      %c0_233 = arith.constant 0 : index
      %c0_234 = arith.constant 0 : index
      %291 = vector.load %arg2[%c0_232, %c0_233, %c0_234] : memref<8x16x1xf32, #tpu.memory_space<vmem>>, vector<1x16x1xf32>
      %292 = vector.shape_cast %291 : vector<1x16x1xf32> to vector<16x1xf32>
      %293 = vector.broadcast %292 : vector<16x1xf32> to vector<16x128xf32>
      %294 = arith.mulf %293, %290 : vector<16x128xf32>
      %295 = math.exp %294 : vector<16x128xf32>
      %c0_235 = arith.constant 0 : index
      %c0_236 = arith.constant 0 : index
      %c0_237 = arith.constant 0 : index
      %296 = vector.load %arg7[%c0_235, %c0_236, %c0_237] : memref<8x16x384xf32, #tpu.memory_space<vmem>>, vector<1x16x128xf32>
      %297 = vector.shape_cast %296 : vector<1x16x128xf32> to vector<16x128xf32>
      %298 = vector.shape_cast %295 : vector<16x128xf32> to vector<1x16x128xf32>
      tpu.vector_store %arg7[%c0_235, %c0_236, %c0_237], %298 {strides = array<i32>} : memref<8x16x384xf32, #tpu.memory_space<vmem>>, vector<1x16x128xf32>,
      %cst = arith.constant 1.280000e+02 : f32
      %299 = vector.broadcast %cst : f32 to vector<16x1xf32>
      %300 = arith.mulf %292, %299 : vector<16x1xf32>
      %301 = math.exp %300 : vector<16x1xf32>
      %302 = vector.broadcast %301 : vector<16x1xf32> to vector<16x128xf32>
      %303 = arith.mulf %295, %302 : vector<16x128xf32>
      %c0_238 = arith.constant 0 : index
      %c0_239 = arith.constant 0 : index
      %c128 = arith.constant 128 : index
      %304 = vector.load %arg7[%c0_238, %c0_239, %c128] : memref<8x16x384xf32, #tpu.memory_space<vmem>>, vector<1x16x128xf32>
      %305 = vector.shape_cast %304 : vector<1x16x128xf32> to vector<16x128xf32>
      %306 = vector.shape_cast %303 : vector<16x128xf32> to vector<1x16x128xf32>
      tpu.vector_store %arg7[%c0_238, %c0_239, %c128], %306 {strides = array<i32>} : memref<8x16x384xf32, #tpu.memory_space<vmem>>, vector<1x16x128xf32>,
      %307 = vector.broadcast %301 : vector<16x1xf32> to vector<16x128xf32>
      %308 = arith.mulf %303, %307 : vector<16x128xf32>
      %c0_240 = arith.constant 0 : index
      %c0_241 = arith.constant 0 : index
      %c256 = arith.constant 256 : index
      %309 = vector.load %arg7[%c0_240, %c0_241, %c256] : memref<8x16x384xf32, #tpu.memory_space<vmem>>, vector<1x16x128xf32>
      %310 = vector.shape_cast %309 : vector<1x16x128xf32> to vector<16x128xf32>
      %311 = vector.shape_cast %308 : vector<16x128xf32> to vector<1x16x128xf32>
      tpu.vector_store %arg7[%c0_240, %c0_241, %c256], %311 {strides = array<i32>} : memref<8x16x384xf32, #tpu.memory_space<vmem>>, vector<1x16x128xf32>,
      %c1_242 = arith.constant 1 : index
      %c0_243 = arith.constant 0 : index
      %c0_244 = arith.constant 0 : index
      %312 = vector.load %arg2[%c1_242, %c0_243, %c0_244] : memref<8x16x1xf32, #tpu.memory_space<vmem>>, vector<1x16x1xf32>
      %313 = vector.shape_cast %312 : vector<1x16x1xf32> to vector<16x1xf32>
      %314 = vector.broadcast %313 : vector<16x1xf32> to vector<16x128xf32>
      %315 = arith.mulf %314, %290 : vector<16x128xf32>
      %316 = math.exp %315 : vector<16x128xf32>
      %c1_245 = arith.constant 1 : index
      %c0_246 = arith.constant 0 : index
      %c0_247 = arith.constant 0 : index
      %317 = vector.load %arg7[%c1_245, %c0_246, %c0_247] : memref<8x16x384xf32, #tpu.memory_space<vmem>>, vector<1x16x128xf32>
      %318 = vector.shape_cast %317 : vector<1x16x128xf32> to vector<16x128xf32>
      %319 = vector.shape_cast %316 : vector<16x128xf32> to vector<1x16x128xf32>
      tpu.vector_store %arg7[%c1_245, %c0_246, %c0_247], %319 {strides = array<i32>} : memref<8x16x384xf32, #tpu.memory_space<vmem>>, vector<1x16x128xf32>,
      %cst_248 = arith.constant 1.280000e+02 : f32
      %320 = vector.broadcast %cst_248 : f32 to vector<16x1xf32>
      %321 = arith.mulf %313, %320 : vector<16x1xf32>
      %322 = math.exp %321 : vector<16x1xf32>
      %323 = vector.broadcast %322 : vector<16x1xf32> to vector<16x128xf32>
      %324 = arith.mulf %316, %323 : vector<16x128xf32>
      %c1_249 = arith.constant 1 : index
      %c0_250 = arith.constant 0 : index
      %c128_251 = arith.constant 128 : index
      %325 = vector.load %arg7[%c1_249, %c0_250, %c128_251] : memref<8x16x384xf32, #tpu.memory_space<vmem>>, vector<1x16x128xf32>
      %326 = vector.shape_cast %325 : vector<1x16x128xf32> to vector<16x128xf32>
      %327 = vector.shape_cast %324 : vector<16x128xf32> to vector<1x16x128xf32>
      tpu.vector_store %arg7[%c1_249, %c0_250, %c128_251], %327 {strides = array<i32>} : memref<8x16x384xf32, #tpu.memory_space<vmem>>, vector<1x16x128xf32>,
      %328 = vector.broadcast %322 : vector<16x1xf32> to vector<16x128xf32>
      %329 = arith.mulf %324, %328 : vector<16x128xf32>
      %c1_252 = arith.constant 1 : index
      %c0_253 = arith.constant 0 : index
      %c256_254 = arith.constant 256 : index
      %330 = vector.load %arg7[%c1_252, %c0_253, %c256_254] : memref<8x16x384xf32, #tpu.memory_space<vmem>>, vector<1x16x128xf32>
      %331 = vector.shape_cast %330 : vector<1x16x128xf32> to vector<16x128xf32>
      %332 = vector.shape_cast %329 : vector<16x128xf32> to vector<1x16x128xf32>
      tpu.vector_store %arg7[%c1_252, %c0_253, %c256_254], %332 {strides = array<i32>} : memref<8x16x384xf32, #tpu.memory_space<vmem>>, vector<1x16x128xf32>,
      %c2_255 = arith.constant 2 : index
      %c0_256 = arith.constant 0 : index
      %c0_257 = arith.constant 0 : index
      %333 = vector.load %arg2[%c2_255, %c0_256, %c0_257] : memref<8x16x1xf32, #tpu.memory_space<vmem>>, vector<1x16x1xf32>
      %334 = vector.shape_cast %333 : vector<1x16x1xf32> to vector<16x1xf32>
      %335 = vector.broadcast %334 : vector<16x1xf32> to vector<16x128xf32>
      %336 = arith.mulf %335, %290 : vector<16x128xf32>
      %337 = math.exp %336 : vector<16x128xf32>
      %c2_258 = arith.constant 2 : index
      %c0_259 = arith.constant 0 : index
      %c0_260 = arith.constant 0 : index
      %338 = vector.load %arg7[%c2_258, %c0_259, %c0_260] : memref<8x16x384xf32, #tpu.memory_space<vmem>>, vector<1x16x128xf32>
      %339 = vector.shape_cast %338 : vector<1x16x128xf32> to vector<16x128xf32>
      %340 = vector.shape_cast %337 : vector<16x128xf32> to vector<1x16x128xf32>
      tpu.vector_store %arg7[%c2_258, %c0_259, %c0_260], %340 {strides = array<i32>} : memref<8x16x384xf32, #tpu.memory_space<vmem>>, vector<1x16x128xf32>,
      %cst_261 = arith.constant 1.280000e+02 : f32
      %341 = vector.broadcast %cst_261 : f32 to vector<16x1xf32>
      %342 = arith.mulf %334, %341 : vector<16x1xf32>
      %343 = math.exp %342 : vector<16x1xf32>
      %344 = vector.broadcast %343 : vector<16x1xf32> to vector<16x128xf32>
      %345 = arith.mulf %337, %344 : vector<16x128xf32>
      %c2_262 = arith.constant 2 : index
      %c0_263 = arith.constant 0 : index
      %c128_264 = arith.constant 128 : index
      %346 = vector.load %arg7[%c2_262, %c0_263, %c128_264] : memref<8x16x384xf32, #tpu.memory_space<vmem>>, vector<1x16x128xf32>
      %347 = vector.shape_cast %346 : vector<1x16x128xf32> to vector<16x128xf32>
      %348 = vector.shape_cast %345 : vector<16x128xf32> to vector<1x16x128xf32>
      tpu.vector_store %arg7[%c2_262, %c0_263, %c128_264], %348 {strides = array<i32>} : memref<8x16x384xf32, #tpu.memory_space<vmem>>, vector<1x16x128xf32>,
      %349 = vector.broadcast %343 : vector<16x1xf32> to vector<16x128xf32>
      %350 = arith.mulf %345, %349 : vector<16x128xf32>
      %c2_265 = arith.constant 2 : index
      %c0_266 = arith.constant 0 : index
      %c256_267 = arith.constant 256 : index
      %351 = vector.load %arg7[%c2_265, %c0_266, %c256_267] : memref<8x16x384xf32, #tpu.memory_space<vmem>>, vector<1x16x128xf32>
      %352 = vector.shape_cast %351 : vector<1x16x128xf32> to vector<16x128xf32>
      %353 = vector.shape_cast %350 : vector<16x128xf32> to vector<1x16x128xf32>
      tpu.vector_store %arg7[%c2_265, %c0_266, %c256_267], %353 {strides = array<i32>} : memref<8x16x384xf32, #tpu.memory_space<vmem>>, vector<1x16x128xf32>,
      %c3_268 = arith.constant 3 : index
      %c0_269 = arith.constant 0 : index
      %c0_270 = arith.constant 0 : index
      %354 = vector.load %arg2[%c3_268, %c0_269, %c0_270] : memref<8x16x1xf32, #tpu.memory_space<vmem>>, vector<1x16x1xf32>
      %355 = vector.shape_cast %354 : vector<1x16x1xf32> to vector<16x1xf32>
      %356 = vector.broadcast %355 : vector<16x1xf32> to vector<16x128xf32>
      %357 = arith.mulf %356, %290 : vector<16x128xf32>
      %358 = math.exp %357 : vector<16x128xf32>
      %c3_271 = arith.constant 3 : index
      %c0_272 = arith.constant 0 : index
      %c0_273 = arith.constant 0 : index
      %359 = vector.load %arg7[%c3_271, %c0_272, %c0_273] : memref<8x16x384xf32, #tpu.memory_space<vmem>>, vector<1x16x128xf32>
      %360 = vector.shape_cast %359 : vector<1x16x128xf32> to vector<16x128xf32>
      %361 = vector.shape_cast %358 : vector<16x128xf32> to vector<1x16x128xf32>
      tpu.vector_store %arg7[%c3_271, %c0_272, %c0_273], %361 {strides = array<i32>} : memref<8x16x384xf32, #tpu.memory_space<vmem>>, vector<1x16x128xf32>,
      %cst_274 = arith.constant 1.280000e+02 : f32
      %362 = vector.broadcast %cst_274 : f32 to vector<16x1xf32>
      %363 = arith.mulf %355, %362 : vector<16x1xf32>
      %364 = math.exp %363 : vector<16x1xf32>
      %365 = vector.broadcast %364 : vector<16x1xf32> to vector<16x128xf32>
      %366 = arith.mulf %358, %365 : vector<16x128xf32>
      %c3_275 = arith.constant 3 : index
      %c0_276 = arith.constant 0 : index
      %c128_277 = arith.constant 128 : index
      %367 = vector.load %arg7[%c3_275, %c0_276, %c128_277] : memref<8x16x384xf32, #tpu.memory_space<vmem>>, vector<1x16x128xf32>
      %368 = vector.shape_cast %367 : vector<1x16x128xf32> to vector<16x128xf32>
      %369 = vector.shape_cast %366 : vector<16x128xf32> to vector<1x16x128xf32>
      tpu.vector_store %arg7[%c3_275, %c0_276, %c128_277], %369 {strides = array<i32>} : memref<8x16x384xf32, #tpu.memory_space<vmem>>, vector<1x16x128xf32>,
      %370 = vector.broadcast %364 : vector<16x1xf32> to vector<16x128xf32>
      %371 = arith.mulf %366, %370 : vector<16x128xf32>
      %c3_278 = arith.constant 3 : index
      %c0_279 = arith.constant 0 : index
      %c256_280 = arith.constant 256 : index
      %372 = vector.load %arg7[%c3_278, %c0_279, %c256_280] : memref<8x16x384xf32, #tpu.memory_space<vmem>>, vector<1x16x128xf32>
      %373 = vector.shape_cast %372 : vector<1x16x128xf32> to vector<16x128xf32>
      %374 = vector.shape_cast %371 : vector<16x128xf32> to vector<1x16x128xf32>
      tpu.vector_store %arg7[%c3_278, %c0_279, %c256_280], %374 {strides = array<i32>} : memref<8x16x384xf32, #tpu.memory_space<vmem>>, vector<1x16x128xf32>,
      %c4_281 = arith.constant 4 : index
      %c0_282 = arith.constant 0 : index
      %c0_283 = arith.constant 0 : index
      %375 = vector.load %arg2[%c4_281, %c0_282, %c0_283] : memref<8x16x1xf32, #tpu.memory_space<vmem>>, vector<1x16x1xf32>
      %376 = vector.shape_cast %375 : vector<1x16x1xf32> to vector<16x1xf32>
      %377 = vector.broadcast %376 : vector<16x1xf32> to vector<16x128xf32>
      %378 = arith.mulf %377, %290 : vector<16x128xf32>
      %379 = math.exp %378 : vector<16x128xf32>
      %c4_284 = arith.constant 4 : index
      %c0_285 = arith.constant 0 : index
      %c0_286 = arith.constant 0 : index
      %380 = vector.load %arg7[%c4_284, %c0_285, %c0_286] : memref<8x16x384xf32, #tpu.memory_space<vmem>>, vector<1x16x128xf32>
      %381 = vector.shape_cast %380 : vector<1x16x128xf32> to vector<16x128xf32>
      %382 = vector.shape_cast %379 : vector<16x128xf32> to vector<1x16x128xf32>
      tpu.vector_store %arg7[%c4_284, %c0_285, %c0_286], %382 {strides = array<i32>} : memref<8x16x384xf32, #tpu.memory_space<vmem>>, vector<1x16x128xf32>,
      %cst_287 = arith.constant 1.280000e+02 : f32
      %383 = vector.broadcast %cst_287 : f32 to vector<16x1xf32>
      %384 = arith.mulf %376, %383 : vector<16x1xf32>
      %385 = math.exp %384 : vector<16x1xf32>
      %386 = vector.broadcast %385 : vector<16x1xf32> to vector<16x128xf32>
      %387 = arith.mulf %379, %386 : vector<16x128xf32>
      %c4_288 = arith.constant 4 : index
      %c0_289 = arith.constant 0 : index
      %c128_290 = arith.constant 128 : index
      %388 = vector.load %arg7[%c4_288, %c0_289, %c128_290] : memref<8x16x384xf32, #tpu.memory_space<vmem>>, vector<1x16x128xf32>
      %389 = vector.shape_cast %388 : vector<1x16x128xf32> to vector<16x128xf32>
      %390 = vector.shape_cast %387 : vector<16x128xf32> to vector<1x16x128xf32>
      tpu.vector_store %arg7[%c4_288, %c0_289, %c128_290], %390 {strides = array<i32>} : memref<8x16x384xf32, #tpu.memory_space<vmem>>, vector<1x16x128xf32>,
      %391 = vector.broadcast %385 : vector<16x1xf32> to vector<16x128xf32>
      %392 = arith.mulf %387, %391 : vector<16x128xf32>
      %c4_291 = arith.constant 4 : index
      %c0_292 = arith.constant 0 : index
      %c256_293 = arith.constant 256 : index
      %393 = vector.load %arg7[%c4_291, %c0_292, %c256_293] : memref<8x16x384xf32, #tpu.memory_space<vmem>>, vector<1x16x128xf32>
      %394 = vector.shape_cast %393 : vector<1x16x128xf32> to vector<16x128xf32>
      %395 = vector.shape_cast %392 : vector<16x128xf32> to vector<1x16x128xf32>
      tpu.vector_store %arg7[%c4_291, %c0_292, %c256_293], %395 {strides = array<i32>} : memref<8x16x384xf32, #tpu.memory_space<vmem>>, vector<1x16x128xf32>,
      %c5_294 = arith.constant 5 : index
      %c0_295 = arith.constant 0 : index
      %c0_296 = arith.constant 0 : index
      %396 = vector.load %arg2[%c5_294, %c0_295, %c0_296] : memref<8x16x1xf32, #tpu.memory_space<vmem>>, vector<1x16x1xf32>
      %397 = vector.shape_cast %396 : vector<1x16x1xf32> to vector<16x1xf32>
      %398 = vector.broadcast %397 : vector<16x1xf32> to vector<16x128xf32>
      %399 = arith.mulf %398, %290 : vector<16x128xf32>
      %400 = math.exp %399 : vector<16x128xf32>
      %c5_297 = arith.constant 5 : index
      %c0_298 = arith.constant 0 : index
      %c0_299 = arith.constant 0 : index
      %401 = vector.load %arg7[%c5_297, %c0_298, %c0_299] : memref<8x16x384xf32, #tpu.memory_space<vmem>>, vector<1x16x128xf32>
      %402 = vector.shape_cast %401 : vector<1x16x128xf32> to vector<16x128xf32>
      %403 = vector.shape_cast %400 : vector<16x128xf32> to vector<1x16x128xf32>
      tpu.vector_store %arg7[%c5_297, %c0_298, %c0_299], %403 {strides = array<i32>} : memref<8x16x384xf32, #tpu.memory_space<vmem>>, vector<1x16x128xf32>,
      %cst_300 = arith.constant 1.280000e+02 : f32
      %404 = vector.broadcast %cst_300 : f32 to vector<16x1xf32>
      %405 = arith.mulf %397, %404 : vector<16x1xf32>
      %406 = math.exp %405 : vector<16x1xf32>
      %407 = vector.broadcast %406 : vector<16x1xf32> to vector<16x128xf32>
      %408 = arith.mulf %400, %407 : vector<16x128xf32>
      %c5_301 = arith.constant 5 : index
      %c0_302 = arith.constant 0 : index
      %c128_303 = arith.constant 128 : index
      %409 = vector.load %arg7[%c5_301, %c0_302, %c128_303] : memref<8x16x384xf32, #tpu.memory_space<vmem>>, vector<1x16x128xf32>
      %410 = vector.shape_cast %409 : vector<1x16x128xf32> to vector<16x128xf32>
      %411 = vector.shape_cast %408 : vector<16x128xf32> to vector<1x16x128xf32>
      tpu.vector_store %arg7[%c5_301, %c0_302, %c128_303], %411 {strides = array<i32>} : memref<8x16x384xf32, #tpu.memory_space<vmem>>, vector<1x16x128xf32>,
      %412 = vector.broadcast %406 : vector<16x1xf32> to vector<16x128xf32>
      %413 = arith.mulf %408, %412 : vector<16x128xf32>
      %c5_304 = arith.constant 5 : index
      %c0_305 = arith.constant 0 : index
      %c256_306 = arith.constant 256 : index
      %414 = vector.load %arg7[%c5_304, %c0_305, %c256_306] : memref<8x16x384xf32, #tpu.memory_space<vmem>>, vector<1x16x128xf32>
      %415 = vector.shape_cast %414 : vector<1x16x128xf32> to vector<16x128xf32>
      %416 = vector.shape_cast %413 : vector<16x128xf32> to vector<1x16x128xf32>
      tpu.vector_store %arg7[%c5_304, %c0_305, %c256_306], %416 {strides = array<i32>} : memref<8x16x384xf32, #tpu.memory_space<vmem>>, vector<1x16x128xf32>,
      %c6_307 = arith.constant 6 : index
      %c0_308 = arith.constant 0 : index
      %c0_309 = arith.constant 0 : index
      %417 = vector.load %arg2[%c6_307, %c0_308, %c0_309] : memref<8x16x1xf32, #tpu.memory_space<vmem>>, vector<1x16x1xf32>
      %418 = vector.shape_cast %417 : vector<1x16x1xf32> to vector<16x1xf32>
      %419 = vector.broadcast %418 : vector<16x1xf32> to vector<16x128xf32>
      %420 = arith.mulf %419, %290 : vector<16x128xf32>
      %421 = math.exp %420 : vector<16x128xf32>
      %c6_310 = arith.constant 6 : index
      %c0_311 = arith.constant 0 : index
      %c0_312 = arith.constant 0 : index
      %422 = vector.load %arg7[%c6_310, %c0_311, %c0_312] : memref<8x16x384xf32, #tpu.memory_space<vmem>>, vector<1x16x128xf32>
      %423 = vector.shape_cast %422 : vector<1x16x128xf32> to vector<16x128xf32>
      %424 = vector.shape_cast %421 : vector<16x128xf32> to vector<1x16x128xf32>
      tpu.vector_store %arg7[%c6_310, %c0_311, %c0_312], %424 {strides = array<i32>} : memref<8x16x384xf32, #tpu.memory_space<vmem>>, vector<1x16x128xf32>,
      %cst_313 = arith.constant 1.280000e+02 : f32
      %425 = vector.broadcast %cst_313 : f32 to vector<16x1xf32>
      %426 = arith.mulf %418, %425 : vector<16x1xf32>
      %427 = math.exp %426 : vector<16x1xf32>
      %428 = vector.broadcast %427 : vector<16x1xf32> to vector<16x128xf32>
      %429 = arith.mulf %421, %428 : vector<16x128xf32>
      %c6_314 = arith.constant 6 : index
      %c0_315 = arith.constant 0 : index
      %c128_316 = arith.constant 128 : index
      %430 = vector.load %arg7[%c6_314, %c0_315, %c128_316] : memref<8x16x384xf32, #tpu.memory_space<vmem>>, vector<1x16x128xf32>
      %431 = vector.shape_cast %430 : vector<1x16x128xf32> to vector<16x128xf32>
      %432 = vector.shape_cast %429 : vector<16x128xf32> to vector<1x16x128xf32>
      tpu.vector_store %arg7[%c6_314, %c0_315, %c128_316], %432 {strides = array<i32>} : memref<8x16x384xf32, #tpu.memory_space<vmem>>, vector<1x16x128xf32>,
      %433 = vector.broadcast %427 : vector<16x1xf32> to vector<16x128xf32>
      %434 = arith.mulf %429, %433 : vector<16x128xf32>
      %c6_317 = arith.constant 6 : index
      %c0_318 = arith.constant 0 : index
      %c256_319 = arith.constant 256 : index
      %435 = vector.load %arg7[%c6_317, %c0_318, %c256_319] : memref<8x16x384xf32, #tpu.memory_space<vmem>>, vector<1x16x128xf32>
      %436 = vector.shape_cast %435 : vector<1x16x128xf32> to vector<16x128xf32>
      %437 = vector.shape_cast %434 : vector<16x128xf32> to vector<1x16x128xf32>
      tpu.vector_store %arg7[%c6_317, %c0_318, %c256_319], %437 {strides = array<i32>} : memref<8x16x384xf32, #tpu.memory_space<vmem>>, vector<1x16x128xf32>,
      %c7_320 = arith.constant 7 : index
      %c0_321 = arith.constant 0 : index
      %c0_322 = arith.constant 0 : index
      %438 = vector.load %arg2[%c7_320, %c0_321, %c0_322] : memref<8x16x1xf32, #tpu.memory_space<vmem>>, vector<1x16x1xf32>
      %439 = vector.shape_cast %438 : vector<1x16x1xf32> to vector<16x1xf32>
      %440 = vector.broadcast %439 : vector<16x1xf32> to vector<16x128xf32>
      %441 = arith.mulf %440, %290 : vector<16x128xf32>
      %442 = math.exp %441 : vector<16x128xf32>
      %c7_323 = arith.constant 7 : index
      %c0_324 = arith.constant 0 : index
      %c0_325 = arith.constant 0 : index
      %443 = vector.load %arg7[%c7_323, %c0_324, %c0_325] : memref<8x16x384xf32, #tpu.memory_space<vmem>>, vector<1x16x128xf32>
      %444 = vector.shape_cast %443 : vector<1x16x128xf32> to vector<16x128xf32>
      %445 = vector.shape_cast %442 : vector<16x128xf32> to vector<1x16x128xf32>
      tpu.vector_store %arg7[%c7_323, %c0_324, %c0_325], %445 {strides = array<i32>} : memref<8x16x384xf32, #tpu.memory_space<vmem>>, vector<1x16x128xf32>,
      %cst_326 = arith.constant 1.280000e+02 : f32
      %446 = vector.broadcast %cst_326 : f32 to vector<16x1xf32>
      %447 = arith.mulf %439, %446 : vector<16x1xf32>
      %448 = math.exp %447 : vector<16x1xf32>
      %449 = vector.broadcast %448 : vector<16x1xf32> to vector<16x128xf32>
      %450 = arith.mulf %442, %449 : vector<16x128xf32>
      %c7_327 = arith.constant 7 : index
      %c0_328 = arith.constant 0 : index
      %c128_329 = arith.constant 128 : index
      %451 = vector.load %arg7[%c7_327, %c0_328, %c128_329] : memref<8x16x384xf32, #tpu.memory_space<vmem>>, vector<1x16x128xf32>
      %452 = vector.shape_cast %451 : vector<1x16x128xf32> to vector<16x128xf32>
      %453 = vector.shape_cast %450 : vector<16x128xf32> to vector<1x16x128xf32>
      tpu.vector_store %arg7[%c7_327, %c0_328, %c128_329], %453 {strides = array<i32>} : memref<8x16x384xf32, #tpu.memory_space<vmem>>, vector<1x16x128xf32>,
      %454 = vector.broadcast %448 : vector<16x1xf32> to vector<16x128xf32>
      %455 = arith.mulf %450, %454 : vector<16x128xf32>
      %c7_330 = arith.constant 7 : index
      %c0_331 = arith.constant 0 : index
      %c256_332 = arith.constant 256 : index
      %456 = vector.load %arg7[%c7_330, %c0_331, %c256_332] : memref<8x16x384xf32, #tpu.memory_space<vmem>>, vector<1x16x128xf32>
      %457 = vector.shape_cast %456 : vector<1x16x128xf32> to vector<16x128xf32>
      %458 = vector.shape_cast %455 : vector<16x128xf32> to vector<1x16x128xf32>
      tpu.vector_store %arg7[%c7_330, %c0_331, %c256_332], %458 {strides = array<i32>} : memref<8x16x384xf32, #tpu.memory_space<vmem>>, vector<1x16x128xf32>,
    } else {
    }
    %c384_i32 = arith.constant 384 : i32
    %3 = arith.muli %arg1, %c384_i32 : i32
    %4 = arith.sitofp %3 : i32 to f32
    %c0 = arith.constant 0 : index
    %c0_1 = arith.constant 0 : index
    %c0_2 = arith.constant 0 : index
    %5 = vector.load %arg2[%c0, %c0_1, %c0_2] : memref<8x16x1xf32, #tpu.memory_space<vmem>>, vector<8x16x1xf32>
    %6 = vector.broadcast %4 : f32 to vector<8x16x1xf32>
    %7 = arith.mulf %5, %6 : vector<8x16x1xf32>
    %8 = math.exp %7 : vector<8x16x1xf32>
    %9 = vector.extract_strided_slice %8 {offsets = [0, 0, 0], sizes = [1, 16, 1], strides = [1, 1, 1]} : vector<8x16x1xf32> to vector<1x16x1xf32>
    %10 = vector.shape_cast %9 : vector<1x16x1xf32> to vector<16x1xf32>
    %11 = vector.extract_strided_slice %8 {offsets = [1, 0, 0], sizes = [1, 16, 1], strides = [1, 1, 1]} : vector<8x16x1xf32> to vector<1x16x1xf32>
    %12 = vector.shape_cast %11 : vector<1x16x1xf32> to vector<16x1xf32>
    %13 = vector.extract_strided_slice %8 {offsets = [2, 0, 0], sizes = [1, 16, 1], strides = [1, 1, 1]} : vector<8x16x1xf32> to vector<1x16x1xf32>
    %14 = vector.shape_cast %13 : vector<1x16x1xf32> to vector<16x1xf32>
    %15 = vector.extract_strided_slice %8 {offsets = [3, 0, 0], sizes = [1, 16, 1], strides = [1, 1, 1]} : vector<8x16x1xf32> to vector<1x16x1xf32>
    %16 = vector.shape_cast %15 : vector<1x16x1xf32> to vector<16x1xf32>
    %17 = vector.extract_strided_slice %8 {offsets = [4, 0, 0], sizes = [1, 16, 1], strides = [1, 1, 1]} : vector<8x16x1xf32> to vector<1x16x1xf32>
    %18 = vector.shape_cast %17 : vector<1x16x1xf32> to vector<16x1xf32>
    %19 = vector.extract_strided_slice %8 {offsets = [5, 0, 0], sizes = [1, 16, 1], strides = [1, 1, 1]} : vector<8x16x1xf32> to vector<1x16x1xf32>
    %20 = vector.shape_cast %19 : vector<1x16x1xf32> to vector<16x1xf32>
    %21 = vector.extract_strided_slice %8 {offsets = [6, 0, 0], sizes = [1, 16, 1], strides = [1, 1, 1]} : vector<8x16x1xf32> to vector<1x16x1xf32>
    %22 = vector.shape_cast %21 : vector<1x16x1xf32> to vector<16x1xf32>
    %23 = vector.extract_strided_slice %8 {offsets = [7, 0, 0], sizes = [1, 16, 1], strides = [1, 1, 1]} : vector<8x16x1xf32> to vector<1x16x1xf32>
    %24 = vector.shape_cast %23 : vector<1x16x1xf32> to vector<16x1xf32>
    %c0_3 = arith.constant 0 : index
    %c0_4 = arith.constant 0 : index
    %c0_5 = arith.constant 0 : index
    %c0_6 = arith.constant 0 : index
    %25 = vector.load %arg3[%c0_3, %c0_4, %c0_5, %c0_6] : memref<2x8x16x1xf32, #tpu.memory_space<vmem>>, vector<1x1x16x1xf32>
    %26 = vector.shape_cast %25 : vector<1x1x16x1xf32> to vector<16x1xf32>
    %c0_7 = arith.constant 0 : index
    %c1 = arith.constant 1 : index
    %c0_8 = arith.constant 0 : index
    %c0_9 = arith.constant 0 : index
    %27 = vector.load %arg3[%c0_7, %c1, %c0_8, %c0_9] : memref<2x8x16x1xf32, #tpu.memory_space<vmem>>, vector<1x1x16x1xf32>
    %28 = vector.shape_cast %27 : vector<1x1x16x1xf32> to vector<16x1xf32>
    %c0_10 = arith.constant 0 : index
    %c2 = arith.constant 2 : index
    %c0_11 = arith.constant 0 : index
    %c0_12 = arith.constant 0 : index
    %29 = vector.load %arg3[%c0_10, %c2, %c0_11, %c0_12] : memref<2x8x16x1xf32, #tpu.memory_space<vmem>>, vector<1x1x16x1xf32>
    %30 = vector.shape_cast %29 : vector<1x1x16x1xf32> to vector<16x1xf32>
    %c0_13 = arith.constant 0 : index
    %c3 = arith.constant 3 : index
    %c0_14 = arith.constant 0 : index
    %c0_15 = arith.constant 0 : index
    %31 = vector.load %arg3[%c0_13, %c3, %c0_14, %c0_15] : memref<2x8x16x1xf32, #tpu.memory_space<vmem>>, vector<1x1x16x1xf32>
    %32 = vector.shape_cast %31 : vector<1x1x16x1xf32> to vector<16x1xf32>
    %c0_16 = arith.constant 0 : index
    %c4 = arith.constant 4 : index
    %c0_17 = arith.constant 0 : index
    %c0_18 = arith.constant 0 : index
    %33 = vector.load %arg3[%c0_16, %c4, %c0_17, %c0_18] : memref<2x8x16x1xf32, #tpu.memory_space<vmem>>, vector<1x1x16x1xf32>
    %34 = vector.shape_cast %33 : vector<1x1x16x1xf32> to vector<16x1xf32>
    %c0_19 = arith.constant 0 : index
    %c5 = arith.constant 5 : index
    %c0_20 = arith.constant 0 : index
    %c0_21 = arith.constant 0 : index
    %35 = vector.load %arg3[%c0_19, %c5, %c0_20, %c0_21] : memref<2x8x16x1xf32, #tpu.memory_space<vmem>>, vector<1x1x16x1xf32>
    %36 = vector.shape_cast %35 : vector<1x1x16x1xf32> to vector<16x1xf32>
    %c0_22 = arith.constant 0 : index
    %c6 = arith.constant 6 : index
    %c0_23 = arith.constant 0 : index
    %c0_24 = arith.constant 0 : index
    %37 = vector.load %arg3[%c0_22, %c6, %c0_23, %c0_24] : memref<2x8x16x1xf32, #tpu.memory_space<vmem>>, vector<1x1x16x1xf32>
    %38 = vector.shape_cast %37 : vector<1x1x16x1xf32> to vector<16x1xf32>
    %c0_25 = arith.constant 0 : index
    %c7 = arith.constant 7 : index
    %c0_26 = arith.constant 0 : index
    %c0_27 = arith.constant 0 : index
    %39 = vector.load %arg3[%c0_25, %c7, %c0_26, %c0_27] : memref<2x8x16x1xf32, #tpu.memory_space<vmem>>, vector<1x1x16x1xf32>
    %40 = vector.shape_cast %39 : vector<1x1x16x1xf32> to vector<16x1xf32>
    %41 = arith.mulf %26, %10 : vector<16x1xf32>
    %c0_28 = arith.constant 0 : index
    %c0_29 = arith.constant 0 : index
    %c0_30 = arith.constant 0 : index
    %42 = vector.load %arg7[%c0_28, %c0_29, %c0_30] : memref<8x16x384xf32, #tpu.memory_space<vmem>>, vector<1x16x384xf32>
    %43 = vector.shape_cast %42 : vector<1x16x384xf32> to vector<16x384xf32>
    %44 = vector.broadcast %41 : vector<16x1xf32> to vector<16x384xf32>
    %45 = arith.mulf %44, %43 : vector<16x384xf32>
    %46 = arith.mulf %28, %12 : vector<16x1xf32>
    %c1_31 = arith.constant 1 : index
    %c0_32 = arith.constant 0 : index
    %c0_33 = arith.constant 0 : index
    %47 = vector.load %arg7[%c1_31, %c0_32, %c0_33] : memref<8x16x384xf32, #tpu.memory_space<vmem>>, vector<1x16x384xf32>
    %48 = vector.shape_cast %47 : vector<1x16x384xf32> to vector<16x384xf32>
    %49 = vector.broadcast %46 : vector<16x1xf32> to vector<16x384xf32>
    %50 = arith.mulf %49, %48 : vector<16x384xf32>
    %51 = arith.addf %45, %50 : vector<16x384xf32>
    %52 = arith.mulf %30, %14 : vector<16x1xf32>
    %c2_34 = arith.constant 2 : index
    %c0_35 = arith.constant 0 : index
    %c0_36 = arith.constant 0 : index
    %53 = vector.load %arg7[%c2_34, %c0_35, %c0_36] : memref<8x16x384xf32, #tpu.memory_space<vmem>>, vector<1x16x384xf32>
    %54 = vector.shape_cast %53 : vector<1x16x384xf32> to vector<16x384xf32>
    %55 = vector.broadcast %52 : vector<16x1xf32> to vector<16x384xf32>
    %56 = arith.mulf %55, %54 : vector<16x384xf32>
    %57 = arith.addf %51, %56 : vector<16x384xf32>
    %58 = arith.mulf %32, %16 : vector<16x1xf32>
    %c3_37 = arith.constant 3 : index
    %c0_38 = arith.constant 0 : index
    %c0_39 = arith.constant 0 : index
    %59 = vector.load %arg7[%c3_37, %c0_38, %c0_39] : memref<8x16x384xf32, #tpu.memory_space<vmem>>, vector<1x16x384xf32>
    %60 = vector.shape_cast %59 : vector<1x16x384xf32> to vector<16x384xf32>
    %61 = vector.broadcast %58 : vector<16x1xf32> to vector<16x384xf32>
    %62 = arith.mulf %61, %60 : vector<16x384xf32>
    %63 = arith.addf %57, %62 : vector<16x384xf32>
    %64 = arith.mulf %34, %18 : vector<16x1xf32>
    %c4_40 = arith.constant 4 : index
    %c0_41 = arith.constant 0 : index
    %c0_42 = arith.constant 0 : index
    %65 = vector.load %arg7[%c4_40, %c0_41, %c0_42] : memref<8x16x384xf32, #tpu.memory_space<vmem>>, vector<1x16x384xf32>
    %66 = vector.shape_cast %65 : vector<1x16x384xf32> to vector<16x384xf32>
    %67 = vector.broadcast %64 : vector<16x1xf32> to vector<16x384xf32>
    %68 = arith.mulf %67, %66 : vector<16x384xf32>
    %69 = arith.addf %63, %68 : vector<16x384xf32>
    %70 = arith.mulf %36, %20 : vector<16x1xf32>
    %c5_43 = arith.constant 5 : index
    %c0_44 = arith.constant 0 : index
    %c0_45 = arith.constant 0 : index
    %71 = vector.load %arg7[%c5_43, %c0_44, %c0_45] : memref<8x16x384xf32, #tpu.memory_space<vmem>>, vector<1x16x384xf32>
    %72 = vector.shape_cast %71 : vector<1x16x384xf32> to vector<16x384xf32>
    %73 = vector.broadcast %70 : vector<16x1xf32> to vector<16x384xf32>
    %74 = arith.mulf %73, %72 : vector<16x384xf32>
    %75 = arith.addf %69, %74 : vector<16x384xf32>
    %76 = arith.mulf %38, %22 : vector<16x1xf32>
    %c6_46 = arith.constant 6 : index
    %c0_47 = arith.constant 0 : index
    %c0_48 = arith.constant 0 : index
    %77 = vector.load %arg7[%c6_46, %c0_47, %c0_48] : memref<8x16x384xf32, #tpu.memory_space<vmem>>, vector<1x16x384xf32>
    %78 = vector.shape_cast %77 : vector<1x16x384xf32> to vector<16x384xf32>
    %79 = vector.broadcast %76 : vector<16x1xf32> to vector<16x384xf32>
    %80 = arith.mulf %79, %78 : vector<16x384xf32>
    %81 = arith.addf %75, %80 : vector<16x384xf32>
    %82 = arith.mulf %40, %24 : vector<16x1xf32>
    %c7_49 = arith.constant 7 : index
    %c0_50 = arith.constant 0 : index
    %c0_51 = arith.constant 0 : index
    %83 = vector.load %arg7[%c7_49, %c0_50, %c0_51] : memref<8x16x384xf32, #tpu.memory_space<vmem>>, vector<1x16x384xf32>
    %84 = vector.shape_cast %83 : vector<1x16x384xf32> to vector<16x384xf32>
    %85 = vector.broadcast %82 : vector<16x1xf32> to vector<16x384xf32>
    %86 = arith.mulf %85, %84 : vector<16x384xf32>
    %87 = arith.addf %81, %86 : vector<16x384xf32>
    %c0_52 = arith.constant 0 : index
    %c0_53 = arith.constant 0 : index
    %c0_54 = arith.constant 0 : index
    %88 = vector.load %arg5[%c0_52, %c0_53, %c0_54] : memref<2x16x384xf32, #tpu.memory_space<vmem>>, vector<1x16x384xf32>
    %89 = vector.shape_cast %88 : vector<1x16x384xf32> to vector<16x384xf32>
    %90 = vector.shape_cast %87 : vector<16x384xf32> to vector<1x16x384xf32>
    tpu.vector_store %arg5[%c0_52, %c0_53, %c0_54], %90 {strides = array<i32>} : memref<2x16x384xf32, #tpu.memory_space<vmem>>, vector<1x16x384xf32>,
    %c1_55 = arith.constant 1 : index
    %c0_56 = arith.constant 0 : index
    %c0_57 = arith.constant 0 : index
    %c0_58 = arith.constant 0 : index
    %91 = vector.load %arg3[%c1_55, %c0_56, %c0_57, %c0_58] : memref<2x8x16x1xf32, #tpu.memory_space<vmem>>, vector<1x1x16x1xf32>
    %92 = vector.shape_cast %91 : vector<1x1x16x1xf32> to vector<16x1xf32>
    %c1_59 = arith.constant 1 : index
    %c1_60 = arith.constant 1 : index
    %c0_61 = arith.constant 0 : index
    %c0_62 = arith.constant 0 : index
    %93 = vector.load %arg3[%c1_59, %c1_60, %c0_61, %c0_62] : memref<2x8x16x1xf32, #tpu.memory_space<vmem>>, vector<1x1x16x1xf32>
    %94 = vector.shape_cast %93 : vector<1x1x16x1xf32> to vector<16x1xf32>
    %c1_63 = arith.constant 1 : index
    %c2_64 = arith.constant 2 : index
    %c0_65 = arith.constant 0 : index
    %c0_66 = arith.constant 0 : index
    %95 = vector.load %arg3[%c1_63, %c2_64, %c0_65, %c0_66] : memref<2x8x16x1xf32, #tpu.memory_space<vmem>>, vector<1x1x16x1xf32>
    %96 = vector.shape_cast %95 : vector<1x1x16x1xf32> to vector<16x1xf32>
    %c1_67 = arith.constant 1 : index
    %c3_68 = arith.constant 3 : index
    %c0_69 = arith.constant 0 : index
    %c0_70 = arith.constant 0 : index
    %97 = vector.load %arg3[%c1_67, %c3_68, %c0_69, %c0_70] : memref<2x8x16x1xf32, #tpu.memory_space<vmem>>, vector<1x1x16x1xf32>
    %98 = vector.shape_cast %97 : vector<1x1x16x1xf32> to vector<16x1xf32>
    %c1_71 = arith.constant 1 : index
    %c4_72 = arith.constant 4 : index
    %c0_73 = arith.constant 0 : index
    %c0_74 = arith.constant 0 : index
    %99 = vector.load %arg3[%c1_71, %c4_72, %c0_73, %c0_74] : memref<2x8x16x1xf32, #tpu.memory_space<vmem>>, vector<1x1x16x1xf32>
    %100 = vector.shape_cast %99 : vector<1x1x16x1xf32> to vector<16x1xf32>
    %c1_75 = arith.constant 1 : index
    %c5_76 = arith.constant 5 : index
    %c0_77 = arith.constant 0 : index
    %c0_78 = arith.constant 0 : index
    %101 = vector.load %arg3[%c1_75, %c5_76, %c0_77, %c0_78] : memref<2x8x16x1xf32, #tpu.memory_space<vmem>>, vector<1x1x16x1xf32>
    %102 = vector.shape_cast %101 : vector<1x1x16x1xf32> to vector<16x1xf32>
    %c1_79 = arith.constant 1 : index
    %c6_80 = arith.constant 6 : index
    %c0_81 = arith.constant 0 : index
    %c0_82 = arith.constant 0 : index
    %103 = vector.load %arg3[%c1_79, %c6_80, %c0_81, %c0_82] : memref<2x8x16x1xf32, #tpu.memory_space<vmem>>, vector<1x1x16x1xf32>
    %104 = vector.shape_cast %103 : vector<1x1x16x1xf32> to vector<16x1xf32>
    %c1_83 = arith.constant 1 : index
    %c7_84 = arith.constant 7 : index
    %c0_85 = arith.constant 0 : index
    %c0_86 = arith.constant 0 : index
    %105 = vector.load %arg3[%c1_83, %c7_84, %c0_85, %c0_86] : memref<2x8x16x1xf32, #tpu.memory_space<vmem>>, vector<1x1x16x1xf32>
    %106 = vector.shape_cast %105 : vector<1x1x16x1xf32> to vector<16x1xf32>
    %107 = arith.mulf %92, %10 : vector<16x1xf32>
    %c0_87 = arith.constant 0 : index
    %c0_88 = arith.constant 0 : index
    %c0_89 = arith.constant 0 : index
    %108 = vector.load %arg7[%c0_87, %c0_88, %c0_89] : memref<8x16x384xf32, #tpu.memory_space<vmem>>, vector<1x16x384xf32>
    %109 = vector.shape_cast %108 : vector<1x16x384xf32> to vector<16x384xf32>
    %110 = vector.broadcast %107 : vector<16x1xf32> to vector<16x384xf32>
    %111 = arith.mulf %110, %109 : vector<16x384xf32>
    %112 = arith.mulf %94, %12 : vector<16x1xf32>
    %c1_90 = arith.constant 1 : index
    %c0_91 = arith.constant 0 : index
    %c0_92 = arith.constant 0 : index
    %113 = vector.load %arg7[%c1_90, %c0_91, %c0_92] : memref<8x16x384xf32, #tpu.memory_space<vmem>>, vector<1x16x384xf32>
    %114 = vector.shape_cast %113 : vector<1x16x384xf32> to vector<16x384xf32>
    %115 = vector.broadcast %112 : vector<16x1xf32> to vector<16x384xf32>
    %116 = arith.mulf %115, %114 : vector<16x384xf32>
    %117 = arith.addf %111, %116 : vector<16x384xf32>
    %118 = arith.mulf %96, %14 : vector<16x1xf32>
    %c2_93 = arith.constant 2 : index
    %c0_94 = arith.constant 0 : index
    %c0_95 = arith.constant 0 : index
    %119 = vector.load %arg7[%c2_93, %c0_94, %c0_95] : memref<8x16x384xf32, #tpu.memory_space<vmem>>, vector<1x16x384xf32>
    %120 = vector.shape_cast %119 : vector<1x16x384xf32> to vector<16x384xf32>
    %121 = vector.broadcast %118 : vector<16x1xf32> to vector<16x384xf32>
    %122 = arith.mulf %121, %120 : vector<16x384xf32>
    %123 = arith.addf %117, %122 : vector<16x384xf32>
    %124 = arith.mulf %98, %16 : vector<16x1xf32>
    %c3_96 = arith.constant 3 : index
    %c0_97 = arith.constant 0 : index
    %c0_98 = arith.constant 0 : index
    %125 = vector.load %arg7[%c3_96, %c0_97, %c0_98] : memref<8x16x384xf32, #tpu.memory_space<vmem>>, vector<1x16x384xf32>
    %126 = vector.shape_cast %125 : vector<1x16x384xf32> to vector<16x384xf32>
    %127 = vector.broadcast %124 : vector<16x1xf32> to vector<16x384xf32>
    %128 = arith.mulf %127, %126 : vector<16x384xf32>
    %129 = arith.addf %123, %128 : vector<16x384xf32>
    %130 = arith.mulf %100, %18 : vector<16x1xf32>
    %c4_99 = arith.constant 4 : index
    %c0_100 = arith.constant 0 : index
    %c0_101 = arith.constant 0 : index
    %131 = vector.load %arg7[%c4_99, %c0_100, %c0_101] : memref<8x16x384xf32, #tpu.memory_space<vmem>>, vector<1x16x384xf32>
    %132 = vector.shape_cast %131 : vector<1x16x384xf32> to vector<16x384xf32>
    %133 = vector.broadcast %130 : vector<16x1xf32> to vector<16x384xf32>
    %134 = arith.mulf %133, %132 : vector<16x384xf32>
    %135 = arith.addf %129, %134 : vector<16x384xf32>
    %136 = arith.mulf %102, %20 : vector<16x1xf32>
    %c5_102 = arith.constant 5 : index
    %c0_103 = arith.constant 0 : index
    %c0_104 = arith.constant 0 : index
    %137 = vector.load %arg7[%c5_102, %c0_103, %c0_104] : memref<8x16x384xf32, #tpu.memory_space<vmem>>, vector<1x16x384xf32>
    %138 = vector.shape_cast %137 : vector<1x16x384xf32> to vector<16x384xf32>
    %139 = vector.broadcast %136 : vector<16x1xf32> to vector<16x384xf32>
    %140 = arith.mulf %139, %138 : vector<16x384xf32>
    %141 = arith.addf %135, %140 : vector<16x384xf32>
    %142 = arith.mulf %104, %22 : vector<16x1xf32>
    %c6_105 = arith.constant 6 : index
    %c0_106 = arith.constant 0 : index
    %c0_107 = arith.constant 0 : index
    %143 = vector.load %arg7[%c6_105, %c0_106, %c0_107] : memref<8x16x384xf32, #tpu.memory_space<vmem>>, vector<1x16x384xf32>
    %144 = vector.shape_cast %143 : vector<1x16x384xf32> to vector<16x384xf32>
    %145 = vector.broadcast %142 : vector<16x1xf32> to vector<16x384xf32>
    %146 = arith.mulf %145, %144 : vector<16x384xf32>
    %147 = arith.addf %141, %146 : vector<16x384xf32>
    %148 = arith.mulf %106, %24 : vector<16x1xf32>
    %c7_108 = arith.constant 7 : index
    %c0_109 = arith.constant 0 : index
    %c0_110 = arith.constant 0 : index
    %149 = vector.load %arg7[%c7_108, %c0_109, %c0_110] : memref<8x16x384xf32, #tpu.memory_space<vmem>>, vector<1x16x384xf32>
    %150 = vector.shape_cast %149 : vector<1x16x384xf32> to vector<16x384xf32>
    %151 = vector.broadcast %148 : vector<16x1xf32> to vector<16x384xf32>
    %152 = arith.mulf %151, %150 : vector<16x384xf32>
    %153 = arith.addf %147, %152 : vector<16x384xf32>
    %c1_111 = arith.constant 1 : index
    %c0_112 = arith.constant 0 : index
    %c0_113 = arith.constant 0 : index
    %154 = vector.load %arg5[%c1_111, %c0_112, %c0_113] : memref<2x16x384xf32, #tpu.memory_space<vmem>>, vector<1x16x384xf32>
    %155 = vector.shape_cast %154 : vector<1x16x384xf32> to vector<16x384xf32>
    %156 = vector.shape_cast %153 : vector<16x384xf32> to vector<1x16x384xf32>
    tpu.vector_store %arg5[%c1_111, %c0_112, %c0_113], %156 {strides = array<i32>} : memref<2x16x384xf32, #tpu.memory_space<vmem>>, vector<1x16x384xf32>,
    %c0_114 = arith.constant 0 : index
    %c0_115 = arith.constant 0 : index
    %c0_116 = arith.constant 0 : index
    %c0_117 = arith.constant 0 : index
    %157 = vector.load %arg4[%c0_114, %c0_115, %c0_116, %c0_117] : memref<2x8x16x1xf32, #tpu.memory_space<vmem>>, vector<1x1x16x1xf32>
    %158 = vector.shape_cast %157 : vector<1x1x16x1xf32> to vector<16x1xf32>
    %c0_118 = arith.constant 0 : index
    %c1_119 = arith.constant 1 : index
    %c0_120 = arith.constant 0 : index
    %c0_121 = arith.constant 0 : index
    %159 = vector.load %arg4[%c0_118, %c1_119, %c0_120, %c0_121] : memref<2x8x16x1xf32, #tpu.memory_space<vmem>>, vector<1x1x16x1xf32>
    %160 = vector.shape_cast %159 : vector<1x1x16x1xf32> to vector<16x1xf32>
    %c0_122 = arith.constant 0 : index
    %c2_123 = arith.constant 2 : index
    %c0_124 = arith.constant 0 : index
    %c0_125 = arith.constant 0 : index
    %161 = vector.load %arg4[%c0_122, %c2_123, %c0_124, %c0_125] : memref<2x8x16x1xf32, #tpu.memory_space<vmem>>, vector<1x1x16x1xf32>
    %162 = vector.shape_cast %161 : vector<1x1x16x1xf32> to vector<16x1xf32>
    %c0_126 = arith.constant 0 : index
    %c3_127 = arith.constant 3 : index
    %c0_128 = arith.constant 0 : index
    %c0_129 = arith.constant 0 : index
    %163 = vector.load %arg4[%c0_126, %c3_127, %c0_128, %c0_129] : memref<2x8x16x1xf32, #tpu.memory_space<vmem>>, vector<1x1x16x1xf32>
    %164 = vector.shape_cast %163 : vector<1x1x16x1xf32> to vector<16x1xf32>
    %c0_130 = arith.constant 0 : index
    %c4_131 = arith.constant 4 : index
    %c0_132 = arith.constant 0 : index
    %c0_133 = arith.constant 0 : index
    %165 = vector.load %arg4[%c0_130, %c4_131, %c0_132, %c0_133] : memref<2x8x16x1xf32, #tpu.memory_space<vmem>>, vector<1x1x16x1xf32>
    %166 = vector.shape_cast %165 : vector<1x1x16x1xf32> to vector<16x1xf32>
    %c0_134 = arith.constant 0 : index
    %c5_135 = arith.constant 5 : index
    %c0_136 = arith.constant 0 : index
    %c0_137 = arith.constant 0 : index
    %167 = vector.load %arg4[%c0_134, %c5_135, %c0_136, %c0_137] : memref<2x8x16x1xf32, #tpu.memory_space<vmem>>, vector<1x1x16x1xf32>
    %168 = vector.shape_cast %167 : vector<1x1x16x1xf32> to vector<16x1xf32>
    %c0_138 = arith.constant 0 : index
    %c6_139 = arith.constant 6 : index
    %c0_140 = arith.constant 0 : index
    %c0_141 = arith.constant 0 : index
    %169 = vector.load %arg4[%c0_138, %c6_139, %c0_140, %c0_141] : memref<2x8x16x1xf32, #tpu.memory_space<vmem>>, vector<1x1x16x1xf32>
    %170 = vector.shape_cast %169 : vector<1x1x16x1xf32> to vector<16x1xf32>
    %c0_142 = arith.constant 0 : index
    %c7_143 = arith.constant 7 : index
    %c0_144 = arith.constant 0 : index
    %c0_145 = arith.constant 0 : index
    %171 = vector.load %arg4[%c0_142, %c7_143, %c0_144, %c0_145] : memref<2x8x16x1xf32, #tpu.memory_space<vmem>>, vector<1x1x16x1xf32>
    %172 = vector.shape_cast %171 : vector<1x1x16x1xf32> to vector<16x1xf32>
    %173 = arith.mulf %158, %10 : vector<16x1xf32>
    %c0_146 = arith.constant 0 : index
    %c0_147 = arith.constant 0 : index
    %c0_148 = arith.constant 0 : index
    %174 = vector.load %arg7[%c0_146, %c0_147, %c0_148] : memref<8x16x384xf32, #tpu.memory_space<vmem>>, vector<1x16x384xf32>
    %175 = vector.shape_cast %174 : vector<1x16x384xf32> to vector<16x384xf32>
    %176 = vector.broadcast %173 : vector<16x1xf32> to vector<16x384xf32>
    %177 = arith.mulf %176, %175 : vector<16x384xf32>
    %178 = arith.mulf %160, %12 : vector<16x1xf32>
    %c1_149 = arith.constant 1 : index
    %c0_150 = arith.constant 0 : index
    %c0_151 = arith.constant 0 : index
    %179 = vector.load %arg7[%c1_149, %c0_150, %c0_151] : memref<8x16x384xf32, #tpu.memory_space<vmem>>, vector<1x16x384xf32>
    %180 = vector.shape_cast %179 : vector<1x16x384xf32> to vector<16x384xf32>
    %181 = vector.broadcast %178 : vector<16x1xf32> to vector<16x384xf32>
    %182 = arith.mulf %181, %180 : vector<16x384xf32>
    %183 = arith.addf %177, %182 : vector<16x384xf32>
    %184 = arith.mulf %162, %14 : vector<16x1xf32>
    %c2_152 = arith.constant 2 : index
    %c0_153 = arith.constant 0 : index
    %c0_154 = arith.constant 0 : index
    %185 = vector.load %arg7[%c2_152, %c0_153, %c0_154] : memref<8x16x384xf32, #tpu.memory_space<vmem>>, vector<1x16x384xf32>
    %186 = vector.shape_cast %185 : vector<1x16x384xf32> to vector<16x384xf32>
    %187 = vector.broadcast %184 : vector<16x1xf32> to vector<16x384xf32>
    %188 = arith.mulf %187, %186 : vector<16x384xf32>
    %189 = arith.addf %183, %188 : vector<16x384xf32>
    %190 = arith.mulf %164, %16 : vector<16x1xf32>
    %c3_155 = arith.constant 3 : index
    %c0_156 = arith.constant 0 : index
    %c0_157 = arith.constant 0 : index
    %191 = vector.load %arg7[%c3_155, %c0_156, %c0_157] : memref<8x16x384xf32, #tpu.memory_space<vmem>>, vector<1x16x384xf32>
    %192 = vector.shape_cast %191 : vector<1x16x384xf32> to vector<16x384xf32>
    %193 = vector.broadcast %190 : vector<16x1xf32> to vector<16x384xf32>
    %194 = arith.mulf %193, %192 : vector<16x384xf32>
    %195 = arith.addf %189, %194 : vector<16x384xf32>
    %196 = arith.mulf %166, %18 : vector<16x1xf32>
    %c4_158 = arith.constant 4 : index
    %c0_159 = arith.constant 0 : index
    %c0_160 = arith.constant 0 : index
    %197 = vector.load %arg7[%c4_158, %c0_159, %c0_160] : memref<8x16x384xf32, #tpu.memory_space<vmem>>, vector<1x16x384xf32>
    %198 = vector.shape_cast %197 : vector<1x16x384xf32> to vector<16x384xf32>
    %199 = vector.broadcast %196 : vector<16x1xf32> to vector<16x384xf32>
    %200 = arith.mulf %199, %198 : vector<16x384xf32>
    %201 = arith.addf %195, %200 : vector<16x384xf32>
    %202 = arith.mulf %168, %20 : vector<16x1xf32>
    %c5_161 = arith.constant 5 : index
    %c0_162 = arith.constant 0 : index
    %c0_163 = arith.constant 0 : index
    %203 = vector.load %arg7[%c5_161, %c0_162, %c0_163] : memref<8x16x384xf32, #tpu.memory_space<vmem>>, vector<1x16x384xf32>
    %204 = vector.shape_cast %203 : vector<1x16x384xf32> to vector<16x384xf32>
    %205 = vector.broadcast %202 : vector<16x1xf32> to vector<16x384xf32>
    %206 = arith.mulf %205, %204 : vector<16x384xf32>
    %207 = arith.addf %201, %206 : vector<16x384xf32>
    %208 = arith.mulf %170, %22 : vector<16x1xf32>
    %c6_164 = arith.constant 6 : index
    %c0_165 = arith.constant 0 : index
    %c0_166 = arith.constant 0 : index
    %209 = vector.load %arg7[%c6_164, %c0_165, %c0_166] : memref<8x16x384xf32, #tpu.memory_space<vmem>>, vector<1x16x384xf32>
    %210 = vector.shape_cast %209 : vector<1x16x384xf32> to vector<16x384xf32>
    %211 = vector.broadcast %208 : vector<16x1xf32> to vector<16x384xf32>
    %212 = arith.mulf %211, %210 : vector<16x384xf32>
    %213 = arith.addf %207, %212 : vector<16x384xf32>
    %214 = arith.mulf %172, %24 : vector<16x1xf32>
    %c7_167 = arith.constant 7 : index
    %c0_168 = arith.constant 0 : index
    %c0_169 = arith.constant 0 : index
    %215 = vector.load %arg7[%c7_167, %c0_168, %c0_169] : memref<8x16x384xf32, #tpu.memory_space<vmem>>, vector<1x16x384xf32>
    %216 = vector.shape_cast %215 : vector<1x16x384xf32> to vector<16x384xf32>
    %217 = vector.broadcast %214 : vector<16x1xf32> to vector<16x384xf32>
    %218 = arith.mulf %217, %216 : vector<16x384xf32>
    %219 = arith.addf %213, %218 : vector<16x384xf32>
    %c0_170 = arith.constant 0 : index
    %c0_171 = arith.constant 0 : index
    %c0_172 = arith.constant 0 : index
    %220 = vector.load %arg6[%c0_170, %c0_171, %c0_172] : memref<2x16x384xf32, #tpu.memory_space<vmem>>, vector<1x16x384xf32>
    %221 = vector.shape_cast %220 : vector<1x16x384xf32> to vector<16x384xf32>
    %222 = vector.shape_cast %219 : vector<16x384xf32> to vector<1x16x384xf32>
    tpu.vector_store %arg6[%c0_170, %c0_171, %c0_172], %222 {strides = array<i32>} : memref<2x16x384xf32, #tpu.memory_space<vmem>>, vector<1x16x384xf32>,
    %c1_173 = arith.constant 1 : index
    %c0_174 = arith.constant 0 : index
    %c0_175 = arith.constant 0 : index
    %c0_176 = arith.constant 0 : index
    %223 = vector.load %arg4[%c1_173, %c0_174, %c0_175, %c0_176] : memref<2x8x16x1xf32, #tpu.memory_space<vmem>>, vector<1x1x16x1xf32>
    %224 = vector.shape_cast %223 : vector<1x1x16x1xf32> to vector<16x1xf32>
    %c1_177 = arith.constant 1 : index
    %c1_178 = arith.constant 1 : index
    %c0_179 = arith.constant 0 : index
    %c0_180 = arith.constant 0 : index
    %225 = vector.load %arg4[%c1_177, %c1_178, %c0_179, %c0_180] : memref<2x8x16x1xf32, #tpu.memory_space<vmem>>, vector<1x1x16x1xf32>
    %226 = vector.shape_cast %225 : vector<1x1x16x1xf32> to vector<16x1xf32>
    %c1_181 = arith.constant 1 : index
    %c2_182 = arith.constant 2 : index
    %c0_183 = arith.constant 0 : index
    %c0_184 = arith.constant 0 : index
    %227 = vector.load %arg4[%c1_181, %c2_182, %c0_183, %c0_184] : memref<2x8x16x1xf32, #tpu.memory_space<vmem>>, vector<1x1x16x1xf32>
    %228 = vector.shape_cast %227 : vector<1x1x16x1xf32> to vector<16x1xf32>
    %c1_185 = arith.constant 1 : index
    %c3_186 = arith.constant 3 : index
    %c0_187 = arith.constant 0 : index
    %c0_188 = arith.constant 0 : index
    %229 = vector.load %arg4[%c1_185, %c3_186, %c0_187, %c0_188] : memref<2x8x16x1xf32, #tpu.memory_space<vmem>>, vector<1x1x16x1xf32>
    %230 = vector.shape_cast %229 : vector<1x1x16x1xf32> to vector<16x1xf32>
    %c1_189 = arith.constant 1 : index
    %c4_190 = arith.constant 4 : index
    %c0_191 = arith.constant 0 : index
    %c0_192 = arith.constant 0 : index
    %231 = vector.load %arg4[%c1_189, %c4_190, %c0_191, %c0_192] : memref<2x8x16x1xf32, #tpu.memory_space<vmem>>, vector<1x1x16x1xf32>
    %232 = vector.shape_cast %231 : vector<1x1x16x1xf32> to vector<16x1xf32>
    %c1_193 = arith.constant 1 : index
    %c5_194 = arith.constant 5 : index
    %c0_195 = arith.constant 0 : index
    %c0_196 = arith.constant 0 : index
    %233 = vector.load %arg4[%c1_193, %c5_194, %c0_195, %c0_196] : memref<2x8x16x1xf32, #tpu.memory_space<vmem>>, vector<1x1x16x1xf32>
    %234 = vector.shape_cast %233 : vector<1x1x16x1xf32> to vector<16x1xf32>
    %c1_197 = arith.constant 1 : index
    %c6_198 = arith.constant 6 : index
    %c0_199 = arith.constant 0 : index
    %c0_200 = arith.constant 0 : index
    %235 = vector.load %arg4[%c1_197, %c6_198, %c0_199, %c0_200] : memref<2x8x16x1xf32, #tpu.memory_space<vmem>>, vector<1x1x16x1xf32>
    %236 = vector.shape_cast %235 : vector<1x1x16x1xf32> to vector<16x1xf32>
    %c1_201 = arith.constant 1 : index
    %c7_202 = arith.constant 7 : index
    %c0_203 = arith.constant 0 : index
    %c0_204 = arith.constant 0 : index
    %237 = vector.load %arg4[%c1_201, %c7_202, %c0_203, %c0_204] : memref<2x8x16x1xf32, #tpu.memory_space<vmem>>, vector<1x1x16x1xf32>
    %238 = vector.shape_cast %237 : vector<1x1x16x1xf32> to vector<16x1xf32>
    %239 = arith.mulf %224, %10 : vector<16x1xf32>
    %c0_205 = arith.constant 0 : index
    %c0_206 = arith.constant 0 : index
    %c0_207 = arith.constant 0 : index
    %240 = vector.load %arg7[%c0_205, %c0_206, %c0_207] : memref<8x16x384xf32, #tpu.memory_space<vmem>>, vector<1x16x384xf32>
    %241 = vector.shape_cast %240 : vector<1x16x384xf32> to vector<16x384xf32>
    %242 = vector.broadcast %239 : vector<16x1xf32> to vector<16x384xf32>
    %243 = arith.mulf %242, %241 : vector<16x384xf32>
    %244 = arith.mulf %226, %12 : vector<16x1xf32>
    %c1_208 = arith.constant 1 : index
    %c0_209 = arith.constant 0 : index
    %c0_210 = arith.constant 0 : index
    %245 = vector.load %arg7[%c1_208, %c0_209, %c0_210] : memref<8x16x384xf32, #tpu.memory_space<vmem>>, vector<1x16x384xf32>
    %246 = vector.shape_cast %245 : vector<1x16x384xf32> to vector<16x384xf32>
    %247 = vector.broadcast %244 : vector<16x1xf32> to vector<16x384xf32>
    %248 = arith.mulf %247, %246 : vector<16x384xf32>
    %249 = arith.addf %243, %248 : vector<16x384xf32>
    %250 = arith.mulf %228, %14 : vector<16x1xf32>
    %c2_211 = arith.constant 2 : index
    %c0_212 = arith.constant 0 : index
    %c0_213 = arith.constant 0 : index
    %251 = vector.load %arg7[%c2_211, %c0_212, %c0_213] : memref<8x16x384xf32, #tpu.memory_space<vmem>>, vector<1x16x384xf32>
    %252 = vector.shape_cast %251 : vector<1x16x384xf32> to vector<16x384xf32>
    %253 = vector.broadcast %250 : vector<16x1xf32> to vector<16x384xf32>
    %254 = arith.mulf %253, %252 : vector<16x384xf32>
    %255 = arith.addf %249, %254 : vector<16x384xf32>
    %256 = arith.mulf %230, %16 : vector<16x1xf32>
    %c3_214 = arith.constant 3 : index
    %c0_215 = arith.constant 0 : index
    %c0_216 = arith.constant 0 : index
    %257 = vector.load %arg7[%c3_214, %c0_215, %c0_216] : memref<8x16x384xf32, #tpu.memory_space<vmem>>, vector<1x16x384xf32>
    %258 = vector.shape_cast %257 : vector<1x16x384xf32> to vector<16x384xf32>
    %259 = vector.broadcast %256 : vector<16x1xf32> to vector<16x384xf32>
    %260 = arith.mulf %259, %258 : vector<16x384xf32>
    %261 = arith.addf %255, %260 : vector<16x384xf32>
    %262 = arith.mulf %232, %18 : vector<16x1xf32>
    %c4_217 = arith.constant 4 : index
    %c0_218 = arith.constant 0 : index
    %c0_219 = arith.constant 0 : index
    %263 = vector.load %arg7[%c4_217, %c0_218, %c0_219] : memref<8x16x384xf32, #tpu.memory_space<vmem>>, vector<1x16x384xf32>
    %264 = vector.shape_cast %263 : vector<1x16x384xf32> to vector<16x384xf32>
    %265 = vector.broadcast %262 : vector<16x1xf32> to vector<16x384xf32>
    %266 = arith.mulf %265, %264 : vector<16x384xf32>
    %267 = arith.addf %261, %266 : vector<16x384xf32>
    %268 = arith.mulf %234, %20 : vector<16x1xf32>
    %c5_220 = arith.constant 5 : index
    %c0_221 = arith.constant 0 : index
    %c0_222 = arith.constant 0 : index
    %269 = vector.load %arg7[%c5_220, %c0_221, %c0_222] : memref<8x16x384xf32, #tpu.memory_space<vmem>>, vector<1x16x384xf32>
    %270 = vector.shape_cast %269 : vector<1x16x384xf32> to vector<16x384xf32>
    %271 = vector.broadcast %268 : vector<16x1xf32> to vector<16x384xf32>
    %272 = arith.mulf %271, %270 : vector<16x384xf32>
    %273 = arith.addf %267, %272 : vector<16x384xf32>
    %274 = arith.mulf %236, %22 : vector<16x1xf32>
    %c6_223 = arith.constant 6 : index
    %c0_224 = arith.constant 0 : index
    %c0_225 = arith.constant 0 : index
    %275 = vector.load %arg7[%c6_223, %c0_224, %c0_225] : memref<8x16x384xf32, #tpu.memory_space<vmem>>, vector<1x16x384xf32>
    %276 = vector.shape_cast %275 : vector<1x16x384xf32> to vector<16x384xf32>
    %277 = vector.broadcast %274 : vector<16x1xf32> to vector<16x384xf32>
    %278 = arith.mulf %277, %276 : vector<16x384xf32>
    %279 = arith.addf %273, %278 : vector<16x384xf32>
    %280 = arith.mulf %238, %24 : vector<16x1xf32>
    %c7_226 = arith.constant 7 : index
    %c0_227 = arith.constant 0 : index
    %c0_228 = arith.constant 0 : index
    %281 = vector.load %arg7[%c7_226, %c0_227, %c0_228] : memref<8x16x384xf32, #tpu.memory_space<vmem>>, vector<1x16x384xf32>
    %282 = vector.shape_cast %281 : vector<1x16x384xf32> to vector<16x384xf32>
    %283 = vector.broadcast %280 : vector<16x1xf32> to vector<16x384xf32>
    %284 = arith.mulf %283, %282 : vector<16x384xf32>
    %285 = arith.addf %279, %284 : vector<16x384xf32>
    %c1_229 = arith.constant 1 : index
    %c0_230 = arith.constant 0 : index
    %c0_231 = arith.constant 0 : index
    %286 = vector.load %arg6[%c1_229, %c0_230, %c0_231] : memref<2x16x384xf32, #tpu.memory_space<vmem>>, vector<1x16x384xf32>
    %287 = vector.shape_cast %286 : vector<1x16x384xf32> to vector<16x384xf32>
    %288 = vector.shape_cast %285 : vector<16x384xf32> to vector<1x16x384xf32>
    tpu.vector_store %arg6[%c1_229, %c0_230, %c0_231], %288 {strides = array<i32>} : memref<2x16x384xf32, #tpu.memory_space<vmem>>, vector<1x16x384xf32>,
    return
  }
  func.func @transform_0(%arg0: i32, %arg1: i32) -> (i32, i32, i32) {
    %c0_i32 = arith.constant 0 : i32
    %c0_i32_0 = arith.constant 0 : i32
    %c0_i32_1 = arith.constant 0 : i32
    return %c0_i32, %arg0, %c0_i32_0 : i32, i32, i32
  }
  func.func @transform_1(%arg0: i32, %arg1: i32) -> (i32, i32, i32, i32) {
    %c0_i32 = arith.constant 0 : i32
    %c0_i32_0 = arith.constant 0 : i32
    %c0_i32_1 = arith.constant 0 : i32
    %c0_i32_2 = arith.constant 0 : i32
    return %c0_i32, %c0_i32_0, %arg0, %c0_i32_1 : i32, i32, i32, i32
  }
  func.func @transform_2(%arg0: i32, %arg1: i32) -> (i32, i32, i32, i32) {
    %c0_i32 = arith.constant 0 : i32
    %c0_i32_0 = arith.constant 0 : i32
    %c0_i32_1 = arith.constant 0 : i32
    %c0_i32_2 = arith.constant 0 : i32
    return %c0_i32, %c0_i32_0, %arg0, %c0_i32_1 : i32, i32, i32, i32
  }
  func.func @transform_3(%arg0: i32, %arg1: i32) -> (i32, i32, i32) {
    %c0_i32 = arith.constant 0 : i32
    %c0_i32_0 = arith.constant 0 : i32
    return %c0_i32, %arg0, %arg1 : i32, i32, i32
  }
  func.func @transform_4(%arg0: i32, %arg1: i32) -> (i32, i32, i32) {
    %c0_i32 = arith.constant 0 : i32
    %c0_i32_0 = arith.constant 0 : i32
    return %c0_i32, %arg0, %arg1 : i32, i32, i32
  }
}

</mosaic_0001>

<llo_original>
// kernel: tpu_custom_call.1
$region0: #{tpu_custom_call.1}
  #allocation0 [shape = 'u32[]', space=smem, size = 0x4, offset = 0x4, fixed_abs, tag = 'smem constant byte address 0x4 - core index']
  #allocation1 [shape = 'u32[144,128]{1,0:T(1,128)}', space=vmem, size = 0x12000, scoped, tag = 'internal scratch']
  #allocation2 [shape = 'f32[8,16,384]{2,1,0:T(8,128)}', space=vmem, size = 0x30000, scoped, tag = 'scratch operand']
  #allocation10 [shape = 's32[]', space=sflag, size = 0x4, offset = 0, fixed_abs, tag = 'sflag constant byte address 0x0 - dummy sync flag']
  #allocation12 [shape = 's32[]', space=sflag, size = 0x4, offset = 0, fixed_abs, tag = 'sflag constant byte address 0x0 - dummy sync flag']
  %s0 = inlined_call_operand.vmem [shape: f32[8,32,1], index: 0, kind: input, shape index: {}]
  %s1 = inlined_call_operand.vmem [shape: f32[2,8,32,1], index: 1, kind: input, shape index: {}]
  %s2 = inlined_call_operand.vmem [shape: f32[2,8,32,1], index: 2, kind: input, shape index: {}]
  %s3 = inlined_call_operand.hbm [shape: f32[2,32,384], index: 3, kind: output, shape index: {0}]
  %s4 = inlined_call_operand.hbm [shape: f32[2,32,384], index: 4, kind: output, shape index: {1}]
  %5 = xla_tuple %s3, %s4
  %s6 = sld [smem:[#allocation0]]
  $region171: #{tpu_custom_call.1} parent=0
    _
  %s8 = ssub.s32 1, %s6
  %s9 = scalar_select 0, %s8, %s6
  $region1: #{tpu_custom_call.1} parent=0
    #allocation3 [shape = 'u8[131072]{0}', space=vmem, size = 0x20000, scoped, tag = 'input window, operand 0']
    #allocation4 [shape = 'u8[262144]{0}', space=vmem, size = 0x40000, scoped, tag = 'input window, operand 1']
    #allocation5 [shape = 'u8[262144]{0}', space=vmem, size = 0x40000, scoped, tag = 'input window, operand 2']
    #allocation6 [shape = 'u8[98304]{0}', space=vmem, size = 0x18000, scoped, tag = 'output window, operand 0']
    #allocation7 [shape = 's32[2]{0}', space=sflag, size = 0x8, scoped, tag = 'scoped memory for tpu_custom_call.1']
    #allocation8 [shape = 'u8[98304]{0}', space=vmem, size = 0x18000, scoped, tag = 'output window, operand 1']
    #allocation9 [shape = 's32[2]{0}', space=sflag, size = 0x8, scoped, tag = 'scoped memory for tpu_custom_call.1']
    %10 = vsyncpa [#allocation7], 0
    %s11 = scalar_lea.sflag [#allocation7], 1
    %12 = vsyncpa %s11, 0
    %13 = vsyncpa [#allocation9], 0
    %s14 = scalar_lea.sflag [#allocation9], 1
    %15 = vsyncpa %s14, 0
    loop: start=0, step=1, limit=4
    $region2: #{tpu_custom_call.1} parent=1 // loop_pre_header
      _
    $region3: #{tpu_custom_call.1} parent=1 // loop_header
      %s17 = sphi 0, %s21
      %p18 = scmp.ge.s32.totalorder %s17, 4
      %s24 = sphi 0, %s36
      %s25 = sphi 0, %s32
      %s26 = sphi 0, %s24
      %s27 = sphi 0, %s25
      %s28 = sphi 0, %s26
      %s29 = sphi 0, %s27
      %s39 = sphi 0, %s41
      %s42 = sphi 0, %s39
      %s43 = sphi 0, %s42
      %s59 = sphi 0, %s43
      %s65 = sphi 0, %s67
      %s68 = sphi 0, %s65
      %s69 = sphi 0, %s68
      %s85 = sphi 0, %s69
      %s91 = sphi 0, %s93
      %s94 = sphi 0, %s91
      %s95 = sphi 0, %s94
      %s111 = sphi 0, %s95
      %s119 = sphi 0, %s121
      %s122 = sphi 0, %s119
      %s123 = sphi 0, %s122
      %s139 = sphi 0, %s123
      %s147 = sphi 0, %s149
      %s150 = sphi 0, %s147
      %s151 = sphi 0, %s150
      %s167 = sphi 0, %s151
    $region4: #{tpu_custom_call.1} parent=1 // loop_header_branch
      %20 = sbr.rel (%p18) target = $region8
    $region5: #{tpu_custom_call.1} parent=1 // loop_body
      %s22 = ssub.s32 %s17, 1
      %s23 = ssub.s32 %s17, 2
      %s30 = sadd.s32 1, %s25
      %p31 = scmp.ge.s32.totalorder %s30, 1
      %s32 = scalar_select %p31, 0, %s30
      %s33 = sadd.s32 1, %s24
      %s34 = scalar_select %p31, %s33, %s24
      %p35 = scmp.ge.s32.totalorder %s34, 2
      %s36 = scalar_select %p35, 0, %s34
      %s37 = ssub.s32 %s24, %s36
      %p38 = scmp.eq.s32.totalorder %s37, 0
      %s40 = sadd.s32 %s39, 1
      %s41 = scalar_select %p38, %s39, %s40
      %p44 = pneg %p38
      %p45 = scmp.eq.s32.totalorder %s17, 1
      %p46 = por %p44, %p45
      %p47 = scmp.ne.s32.totalorder %s39, %s42
      %p48 = scmp.eq.s32.totalorder %s17, 0
      %p49 = por %p47, %p48
      %p50 = scmp.ne.s32.totalorder %s39, %s42
      %p51 = scmp.eq.s32.totalorder %s22, 1
      %p52 = por %p50, %p51
      %p53 = scmp.ne.s32.totalorder %s42, %s43
      %p54 = scmp.eq.s32.totalorder %s22, 0
      %p55 = por %p53, %p54
      %p56 = scmp.ne.s32.totalorder %s42, %s43
      %p57 = scmp.eq.s32.totalorder %s23, 1
      %p58 = por %p56, %p57
      %p60 = scmp.ne.s32.totalorder %s43, %s59
      %p61 = scmp.eq.s32.totalorder %s23, 0
      %p62 = por %p60, %p61
      %s63 = ssub.s32 %s24, %s36
      %p64 = scmp.eq.s32.totalorder %s63, 0
      %s66 = sadd.s32 %s65, 1
      %s67 = scalar_select %p64, %s65, %s66
      %p70 = pneg %p64
      %p71 = scmp.eq.s32.totalorder %s17, 1
      %p72 = por %p70, %p71
      %p73 = scmp.ne.s32.totalorder %s65, %s68
      %p74 = scmp.eq.s32.totalorder %s17, 0
      %p75 = por %p73, %p74
      %p76 = scmp.ne.s32.totalorder %s65, %s68
      %p77 = scmp.eq.s32.totalorder %s22, 1
      %p78 = por %p76, %p77
      %p79 = scmp.ne.s32.totalorder %s68, %s69
      %p80 = scmp.eq.s32.totalorder %s22, 0
      %p81 = por %p79, %p80
      %p82 = scmp.ne.s32.totalorder %s68, %s69
      %p83 = scmp.eq.s32.totalorder %s23, 1
      %p84 = por %p82, %p83
      %p86 = scmp.ne.s32.totalorder %s69, %s85
      %p87 = scmp.eq.s32.totalorder %s23, 0
      %p88 = por %p86, %p87
      %s89 = ssub.s32 %s24, %s36
      %p90 = scmp.eq.s32.totalorder %s89, 0
      %s92 = sadd.s32 %s91, 1
      %s93 = scalar_select %p90, %s91, %s92
      %p96 = pneg %p90
      %p97 = scmp.eq.s32.totalorder %s17, 1
      %p98 = por %p96, %p97
      %p99 = scmp.ne.s32.totalorder %s91, %s94
      %p100 = scmp.eq.s32.totalorder %s17, 0
      %p101 = por %p99, %p100
      %p102 = scmp.ne.s32.totalorder %s91, %s94
      %p103 = scmp.eq.s32.totalorder %s22, 1
      %p104 = por %p102, %p103
      %p105 = scmp.ne.s32.totalorder %s94, %s95
      %p106 = scmp.eq.s32.totalorder %s22, 0
      %p107 = por %p105, %p106
      %p108 = scmp.ne.s32.totalorder %s94, %s95
      %p109 = scmp.eq.s32.totalorder %s23, 1
      %p110 = por %p108, %p109
      %p112 = scmp.ne.s32.totalorder %s95, %s111
      %p113 = scmp.eq.s32.totalorder %s23, 0
      %p114 = por %p112, %p113
      %s115 = ssub.s32 %s24, %s36
      %s116 = ssub.s32 %s25, %s32
      %s117 = sor.u32 %s115, %s116
      %p118 = scmp.eq.s32.totalorder %s117, 0
      %s120 = sadd.s32 %s119, 1
      %s121 = scalar_select %p118, %s119, %s120
      %p124 = pneg %p118
      %p125 = scmp.eq.s32.totalorder %s17, 1
      %p126 = por %p124, %p125
      %p127 = scmp.ne.s32.totalorder %s119, %s122
      %p128 = scmp.eq.s32.totalorder %s17, 0
      %p129 = por %p127, %p128
      %p130 = scmp.ne.s32.totalorder %s119, %s122
      %p131 = scmp.eq.s32.totalorder %s22, 1
      %p132 = por %p130, %p131
      %p133 = scmp.ne.s32.totalorder %s122, %s123
      %p134 = scmp.eq.s32.totalorder %s22, 0
      %p135 = por %p133, %p134
      %p136 = scmp.ne.s32.totalorder %s122, %s123
      %p137 = scmp.eq.s32.totalorder %s23, 1
      %p138 = por %p136, %p137
      %p140 = scmp.ne.s32.totalorder %s123, %s139
      %p141 = scmp.eq.s32.totalorder %s23, 0
      %p142 = por %p140, %p141
      %s143 = ssub.s32 %s24, %s36
      %s144 = ssub.s32 %s25, %s32
      %s145 = sor.u32 %s143, %s144
      %p146 = scmp.eq.s32.totalorder %s145, 0
      %s148 = sadd.s32 %s147, 1
      %s149 = scalar_select %p146, %s147, %s148
      %p152 = pneg %p146
      %p153 = scmp.eq.s32.totalorder %s17, 1
      %p154 = por %p152, %p153
      %p155 = scmp.ne.s32.totalorder %s147, %s150
      %p156 = scmp.eq.s32.totalorder %s17, 0
      %p157 = por %p155, %p156
      %p158 = scmp.ne.s32.totalorder %s147, %s150
      %p159 = scmp.eq.s32.totalorder %s22, 1
      %p160 = por %p158, %p159
      %p161 = scmp.ne.s32.totalorder %s150, %s151
      %p162 = scmp.eq.s32.totalorder %s22, 0
      %p163 = por %p161, %p162
      %p164 = scmp.ne.s32.totalorder %s150, %s151
      %p165 = scmp.eq.s32.totalorder %s23, 1
      %p166 = por %p164, %p165
      %p168 = scmp.ne.s32.totalorder %s151, %s167
      %p169 = scmp.eq.s32.totalorder %s23, 0
      %p170 = por %p168, %p169
      %p171 = scmp.le.s32.totalorder 1, %s17
      %p172 = scmp.lt.s32.totalorder %s17, 3
      %p173 = pnand %p171, %p172
      %p174 = pneg %p173
      // Predicated region
      $region9: #{tpu_custom_call.1} parent=5 // pred_check
        _
      $region10: #{tpu_custom_call.1} parent=5 // pred_check_branch
        %176 = sbr.rel (%p173) target = $region12
      $region11: #{tpu_custom_call.1} parent=5 // pred_region
        %s177 = ssub.s32 %s17, 1
      $region12: #{tpu_custom_call.1} parent=5 // pred_fallthru
        _
      %p178 = scmp.lt.s32.totalorder %s17, 2
      // Predicated region
      $region13: #{tpu_custom_call.1} parent=5 // pred_check
        %p179 = pneg %p178
      $region14: #{tpu_custom_call.1} parent=5 // pred_check_branch
        %181 = sbr.rel (%p179) target = $region16
      $region15: #{tpu_custom_call.1} parent=5 // pred_region
        // Predicated region
        $region17: #{tpu_custom_call.1} parent=15 // pred_check
          %p182 = pneg %p49
        $region18: #{tpu_custom_call.1} parent=15 // pred_check_branch
          %184 = sbr.rel (%p182) target = $region20
        $region19: #{tpu_custom_call.1} parent=15 // pred_region
          %s185 = sand.u32 %s39, 1
          %s186 = sand.u32 %s39, 1
          %s187 = smul.addr %s186, 128
          %s188 = scalar_lea.vmem [#allocation3], %s187
          %s189 = smul.u32 2, %s24
          %s190 = smul.addr %s189, 8
          %s191 = scalar_lea.vmem %s0, %s190
          // Predicated region
          $region21: #{tpu_custom_call.1} parent=19 // pred_check
            _
          $region22: #{tpu_custom_call.1} parent=19 // pred_check_branch
            %193 = sbr.rel (0) target = $region24
          $region23: #{tpu_custom_call.1} parent=19 // pred_region
            // Predicated region
            $region25: #{tpu_custom_call.1} parent=23 // pred_check
              _
            $region26: #{tpu_custom_call.1} parent=23 // pred_check_branch
              %195 = sbr.rel (0) target = $region28
            $region27: #{tpu_custom_call.1} parent=23 // pred_region
              // Predicated region
              $region40: #{tpu_custom_call.1} parent=27 // pred_check
                _
              $region41: #{tpu_custom_call.1} parent=27 // pred_check_branch
                %240 = sbr.rel (0) target = $region43
              $region42: #{tpu_custom_call.1} parent=27 // pred_region
                loop: start=0, step=1, limit=1
                $region44: #{tpu_custom_call.1} parent=42 // loop_pre_header
                  _
                $region45: #{tpu_custom_call.1} parent=42 // loop_header
                  %s242 = sphi 0, %s246
                  %p243 = scmp.ge.s32.totalorder %s242, 1
                  %s247 = sphi %s191, %s191
                  %s248 = sphi %s188, %s188
                $region46: #{tpu_custom_call.1} parent=42 // loop_header_branch
                  %245 = sbr.rel (%p243) target = $region50
                $region47: #{tpu_custom_call.1} parent=42 // loop_body
                  %v249 = vld [vmem:[%s247] sm:$0xff]
                  %250 = vst [vmem:[%s248] sm:$0xff] %v249
                  %v251 = vld [vmem:[%s247 + $0x8] sm:$0xff]
                  %252 = vst [vmem:[%s248 + $0x8] sm:$0xff] %v251
                  %v253 = vld [vmem:[%s247 + $0x20] sm:$0xff]
                  %254 = vst [vmem:[%s248 + $0x10] sm:$0xff] %v253
                  %v255 = vld [vmem:[%s247 + $0x28] sm:$0xff]
                  %256 = vst [vmem:[%s248 + $0x18] sm:$0xff] %v255
                  %v257 = vld [vmem:[%s247 + $0x40] sm:$0xff]
                  %258 = vst [vmem:[%s248 + $0x20] sm:$0xff] %v257
                  %v259 = vld [vmem:[%s247 + $0x48] sm:$0xff]
                  %260 = vst [vmem:[%s248 + $0x28] sm:$0xff] %v259
                  %v261 = vld [vmem:[%s247 + $0x60] sm:$0xff]
                  %262 = vst [vmem:[%s248 + $0x30] sm:$0xff] %v261
                  %v263 = vld [vmem:[%s247 + $0x68] sm:$0xff]
                  %264 = vst [vmem:[%s248 + $0x38] sm:$0xff] %v263
                  %v265 = vld [vmem:[%s247 + $0x80] sm:$0xff]
                  %266 = vst [vmem:[%s248 + $0x40] sm:$0xff] %v265
                  %v267 = vld [vmem:[%s247 + $0x88] sm:$0xff]
                  %268 = vst [vmem:[%s248 + $0x48] sm:$0xff] %v267
                  %v269 = vld [vmem:[%s247 + $0xa0] sm:$0xff]
                  %270 = vst [vmem:[%s248 + $0x50] sm:$0xff] %v269
                  %v271 = vld [vmem:[%s247 + $0xa8] sm:$0xff]
                  %272 = vst [vmem:[%s248 + $0x58] sm:$0xff] %v271
                  %v273 = vld [vmem:[%s247 + $0xc0] sm:$0xff]
                  %274 = vst [vmem:[%s248 + $0x60] sm:$0xff] %v273
                  %v275 = vld [vmem:[%s247 + $0xc8] sm:$0xff]
                  %276 = vst [vmem:[%s248 + $0x68] sm:$0xff] %v275
                  %v277 = vld [vmem:[%s247 + $0xe0] sm:$0xff]
                  %278 = vst [vmem:[%s248 + $0x70] sm:$0xff] %v277
                  %v279 = vld [vmem:[%s247 + $0xe8] sm:$0xff]
                  %280 = vst [vmem:[%s248 + $0x78] sm:$0xff] %v279
                $region48: #{tpu_custom_call.1} parent=42 // loop_footer
                  %s246 = sadd.s32 1, %s242
                $region49: #{tpu_custom_call.1} parent=42 // loop_footer_branch
                  %241 = sbr.rel target = $region45
                $region50: #{tpu_custom_call.1} parent=42 // loop_exit
                  _
              $region43: #{tpu_custom_call.1} parent=27 // pred_fallthru
                _
              // Predicated region
              $region51: #{tpu_custom_call.1} parent=27 // pred_check
                _
              $region52: #{tpu_custom_call.1} parent=27 // pred_check_branch
                %282 = sbr.rel target = $region54
              $region53: #{tpu_custom_call.1} parent=27 // pred_region
                _
              $region54: #{tpu_custom_call.1} parent=27 // pred_fallthru
                _
            $region28: #{tpu_custom_call.1} parent=23 // pred_fallthru
              _
            // Predicated region
            $region29: #{tpu_custom_call.1} parent=23 // pred_check
              _
            $region30: #{tpu_custom_call.1} parent=23 // pred_check_branch
              %197 = sbr.rel target = $region32
            $region31: #{tpu_custom_call.1} parent=23 // pred_region
              loop: start=0, step=1, limit=1
              $region33: #{tpu_custom_call.1} parent=31 // loop_pre_header
                _
              $region34: #{tpu_custom_call.1} parent=31 // loop_header
                %s200 = sphi 0, %s204
                %p201 = scmp.ge.s32.totalorder %s200, 1
                %s205 = sphi %s191, %s191
                %s206 = sphi %s188, %s188
              $region35: #{tpu_custom_call.1} parent=31 // loop_header_branch
                %203 = sbr.rel (%p201) target = $region39
              $region36: #{tpu_custom_call.1} parent=31 // loop_body
                %v207 = vld [vmem:[%s205] sm:$0xff]
                %208 = vst [vmem:[%s206] sm:$0xff] %v207
                %v209 = vld [vmem:[%s205 + $0x8] sm:$0xff]
                %210 = vst [vmem:[%s206 + $0x8] sm:$0xff] %v209
                %v211 = vld [vmem:[%s205 + $0x20] sm:$0xff]
                %212 = vst [vmem:[%s206 + $0x10] sm:$0xff] %v211
                %v213 = vld [vmem:[%s205 + $0x28] sm:$0xff]
                %214 = vst [vmem:[%s206 + $0x18] sm:$0xff] %v213
                %v215 = vld [vmem:[%s205 + $0x40] sm:$0xff]
                %216 = vst [vmem:[%s206 + $0x20] sm:$0xff] %v215
                %v217 = vld [vmem:[%s205 + $0x48] sm:$0xff]
                %218 = vst [vmem:[%s206 + $0x28] sm:$0xff] %v217
                %v219 = vld [vmem:[%s205 + $0x60] sm:$0xff]
                %220 = vst [vmem:[%s206 + $0x30] sm:$0xff] %v219
                %v221 = vld [vmem:[%s205 + $0x68] sm:$0xff]
                %222 = vst [vmem:[%s206 + $0x38] sm:$0xff] %v221
                %v223 = vld [vmem:[%s205 + $0x80] sm:$0xff]
                %224 = vst [vmem:[%s206 + $0x40] sm:$0xff] %v223
                %v225 = vld [vmem:[%s205 + $0x88] sm:$0xff]
                %226 = vst [vmem:[%s206 + $0x48] sm:$0xff] %v225
                %v227 = vld [vmem:[%s205 + $0xa0] sm:$0xff]
                %228 = vst [vmem:[%s206 + $0x50] sm:$0xff] %v227
                %v229 = vld [vmem:[%s205 + $0xa8] sm:$0xff]
                %230 = vst [vmem:[%s206 + $0x58] sm:$0xff] %v229
                %v231 = vld [vmem:[%s205 + $0xc0] sm:$0xff]
                %232 = vst [vmem:[%s206 + $0x60] sm:$0xff] %v231
                %v233 = vld [vmem:[%s205 + $0xc8] sm:$0xff]
                %234 = vst [vmem:[%s206 + $0x68] sm:$0xff] %v233
                %v235 = vld [vmem:[%s205 + $0xe0] sm:$0xff]
                %236 = vst [vmem:[%s206 + $0x70] sm:$0xff] %v235
                %v237 = vld [vmem:[%s205 + $0xe8] sm:$0xff]
                %238 = vst [vmem:[%s206 + $0x78] sm:$0xff] %v237
              $region37: #{tpu_custom_call.1} parent=31 // loop_footer
                %s204 = sadd.s32 1, %s200
              $region38: #{tpu_custom_call.1} parent=31 // loop_footer_branch
                %199 = sbr.rel target = $region34
              $region39: #{tpu_custom_call.1} parent=31 // loop_exit
                _
            $region32: #{tpu_custom_call.1} parent=23 // pred_fallthru
              _
          $region24: #{tpu_custom_call.1} parent=19 // pred_fallthru
            _
          %283 = vnop
        $region20: #{tpu_custom_call.1} parent=15 // pred_fallthru
          _
        // Predicated region
        $region55: #{tpu_custom_call.1} parent=15 // pred_check
          %p284 = pneg %p75
        $region56: #{tpu_custom_call.1} parent=15 // pred_check_branch
          %286 = sbr.rel (%p284) target = $region58
        $region57: #{tpu_custom_call.1} parent=15 // pred_region
          %s287 = sand.u32 %s65, 1
          %s288 = sand.u32 %s65, 1
          %s289 = smul.addr %s288, 256
          %s290 = scalar_lea.vmem [#allocation4], %s289
          %s291 = smul.u32 2, %s24
          %s292 = smul.addr %s291, 8
          %s293 = scalar_lea.vmem %s1, %s292
          // Predicated region
          $region59: #{tpu_custom_call.1} parent=57 // pred_check
            _
          $region60: #{tpu_custom_call.1} parent=57 // pred_check_branch
            %295 = sbr.rel (0) target = $region62
          $region61: #{tpu_custom_call.1} parent=57 // pred_region
            // Predicated region
            $region63: #{tpu_custom_call.1} parent=61 // pred_check
              _
            $region64: #{tpu_custom_call.1} parent=61 // pred_check_branch
              %297 = sbr.rel (0) target = $region66
            $region65: #{tpu_custom_call.1} parent=61 // pred_region
              // Predicated region
              $region78: #{tpu_custom_call.1} parent=65 // pred_check
                _
              $region79: #{tpu_custom_call.1} parent=65 // pred_check_branch
                %374 = sbr.rel (0) target = $region81
              $region80: #{tpu_custom_call.1} parent=65 // pred_region
                loop: start=0, step=1, limit=1
                $region82: #{tpu_custom_call.1} parent=80 // loop_pre_header
                  _
                $region83: #{tpu_custom_call.1} parent=80 // loop_header
                  %s376 = sphi 0, %s380
                  %p377 = scmp.ge.s32.totalorder %s376, 1
                  %s381 = sphi %s293, %s293
                  %s382 = sphi %s290, %s290
                $region84: #{tpu_custom_call.1} parent=80 // loop_header_branch
                  %379 = sbr.rel (%p377) target = $region88
                $region85: #{tpu_custom_call.1} parent=80 // loop_body
                  %v383 = vld [vmem:[%s381] sm:$0xff]
                  %384 = vst [vmem:[%s382] sm:$0xff] %v383
                  %v385 = vld [vmem:[%s381 + $0x8] sm:$0xff]
                  %386 = vst [vmem:[%s382 + $0x8] sm:$0xff] %v385
                  %v387 = vld [vmem:[%s381 + $0x20] sm:$0xff]
                  %388 = vst [vmem:[%s382 + $0x10] sm:$0xff] %v387
                  %v389 = vld [vmem:[%s381 + $0x28] sm:$0xff]
                  %390 = vst [vmem:[%s382 + $0x18] sm:$0xff] %v389
                  %v391 = vld [vmem:[%s381 + $0x40] sm:$0xff]
                  %392 = vst [vmem:[%s382 + $0x20] sm:$0xff] %v391
                  %v393 = vld [vmem:[%s381 + $0x48] sm:$0xff]
                  %394 = vst [vmem:[%s382 + $0x28] sm:$0xff] %v393
                  %v395 = vld [vmem:[%s381 + $0x60] sm:$0xff]
                  %396 = vst [vmem:[%s382 + $0x30] sm:$0xff] %v395
                  %v397 = vld [vmem:[%s381 + $0x68] sm:$0xff]
                  %398 = vst [vmem:[%s382 + $0x38] sm:$0xff] %v397
                  %v399 = vld [vmem:[%s381 + $0x80] sm:$0xff]
                  %400 = vst [vmem:[%s382 + $0x40] sm:$0xff] %v399
                  %v401 = vld [vmem:[%s381 + $0x88] sm:$0xff]
                  %402 = vst [vmem:[%s382 + $0x48] sm:$0xff] %v401
                  %v403 = vld [vmem:[%s381 + $0xa0] sm:$0xff]
                  %404 = vst [vmem:[%s382 + $0x50] sm:$0xff] %v403
                  %v405 = vld [vmem:[%s381 + $0xa8] sm:$0xff]
                  %406 = vst [vmem:[%s382 + $0x58] sm:$0xff] %v405
                  %v407 = vld [vmem:[%s381 + $0xc0] sm:$0xff]
                  %408 = vst [vmem:[%s382 + $0x60] sm:$0xff] %v407
                  %v409 = vld [vmem:[%s381 + $0xc8] sm:$0xff]
                  %410 = vst [vmem:[%s382 + $0x68] sm:$0xff] %v409
                  %v411 = vld [vmem:[%s381 + $0xe0] sm:$0xff]
                  %412 = vst [vmem:[%s382 + $0x70] sm:$0xff] %v411
                  %v413 = vld [vmem:[%s381 + $0xe8] sm:$0xff]
                  %414 = vst [vmem:[%s382 + $0x78] sm:$0xff] %v413
                  %v415 = vld [vmem:[%s381 + $0x100] sm:$0xff]
                  %416 = vst [vmem:[%s382 + $0x80] sm:$0xff] %v415
                  %v417 = vld [vmem:[%s381 + $0x108] sm:$0xff]
                  %418 = vst [vmem:[%s382 + $0x88] sm:$0xff] %v417
                  %v419 = vld [vmem:[%s381 + $0x120] sm:$0xff]
                  %420 = vst [vmem:[%s382 + $0x90] sm:$0xff] %v419
                  %v421 = vld [vmem:[%s381 + $0x128] sm:$0xff]
                  %422 = vst [vmem:[%s382 + $0x98] sm:$0xff] %v421
                  %v423 = vld [vmem:[%s381 + $0x140] sm:$0xff]
                  %424 = vst [vmem:[%s382 + $0xa0] sm:$0xff] %v423
                  %v425 = vld [vmem:[%s381 + $0x148] sm:$0xff]
                  %426 = vst [vmem:[%s382 + $0xa8] sm:$0xff] %v425
                  %v427 = vld [vmem:[%s381 + $0x160] sm:$0xff]
                  %428 = vst [vmem:[%s382 + $0xb0] sm:$0xff] %v427
                  %v429 = vld [vmem:[%s381 + $0x168] sm:$0xff]
                  %430 = vst [vmem:[%s382 + $0xb8] sm:$0xff] %v429
                  %v431 = vld [vmem:[%s381 + $0x180] sm:$0xff]
                  %432 = vst [vmem:[%s382 + $0xc0] sm:$0xff] %v431
                  %v433 = vld [vmem:[%s381 + $0x188] sm:$0xff]
                  %434 = vst [vmem:[%s382 + $0xc8] sm:$0xff] %v433
                  %v435 = vld [vmem:[%s381 + $0x1a0] sm:$0xff]
                  %436 = vst [vmem:[%s382 + $0xd0] sm:$0xff] %v435
                  %v437 = vld [vmem:[%s381 + $0x1a8] sm:$0xff]
                  %438 = vst [vmem:[%s382 + $0xd8] sm:$0xff] %v437
                  %v439 = vld [vmem:[%s381 + $0x1c0] sm:$0xff]
                  %440 = vst [vmem:[%s382 + $0xe0] sm:$0xff] %v439
                  %v441 = vld [vmem:[%s381 + $0x1c8] sm:$0xff]
                  %442 = vst [vmem:[%s382 + $0xe8] sm:$0xff] %v441
                  %v443 = vld [vmem:[%s381 + $0x1e0] sm:$0xff]
                  %444 = vst [vmem:[%s382 + $0xf0] sm:$0xff] %v443
                  %v445 = vld [vmem:[%s381 + $0x1e8] sm:$0xff]
                  %446 = vst [vmem:[%s382 + $0xf8] sm:$0xff] %v445
                $region86: #{tpu_custom_call.1} parent=80 // loop_footer
                  %s380 = sadd.s32 1, %s376
                $region87: #{tpu_custom_call.1} parent=80 // loop_footer_branch
                  %375 = sbr.rel target = $region83
                $region88: #{tpu_custom_call.1} parent=80 // loop_exit
                  _
              $region81: #{tpu_custom_call.1} parent=65 // pred_fallthru
                _
              // Predicated region
              $region89: #{tpu_custom_call.1} parent=65 // pred_check
                _
              $region90: #{tpu_custom_call.1} parent=65 // pred_check_branch
                %448 = sbr.rel target = $region92
              $region91: #{tpu_custom_call.1} parent=65 // pred_region
                _
              $region92: #{tpu_custom_call.1} parent=65 // pred_fallthru
                _
            $region66: #{tpu_custom_call.1} parent=61 // pred_fallthru
              _
            // Predicated region
            $region67: #{tpu_custom_call.1} parent=61 // pred_check
              _
            $region68: #{tpu_custom_call.1} parent=61 // pred_check_branch
              %299 = sbr.rel target = $region70
            $region69: #{tpu_custom_call.1} parent=61 // pred_region
              loop: start=0, step=1, limit=1
              $region71: #{tpu_custom_call.1} parent=69 // loop_pre_header
                _
              $region72: #{tpu_custom_call.1} parent=69 // loop_header
                %s302 = sphi 0, %s306
                %p303 = scmp.ge.s32.totalorder %s302, 1
                %s307 = sphi %s293, %s293
                %s308 = sphi %s290, %s290
              $region73: #{tpu_custom_call.1} parent=69 // loop_header_branch
                %305 = sbr.rel (%p303) target = $region77
              $region74: #{tpu_custom_call.1} parent=69 // loop_body
                %v309 = vld [vmem:[%s307] sm:$0xff]
                %310 = vst [vmem:[%s308] sm:$0xff] %v309
                %v311 = vld [vmem:[%s307 + $0x8] sm:$0xff]
                %312 = vst [vmem:[%s308 + $0x8] sm:$0xff] %v311
                %v313 = vld [vmem:[%s307 + $0x20] sm:$0xff]
                %314 = vst [vmem:[%s308 + $0x10] sm:$0xff] %v313
                %v315 = vld [vmem:[%s307 + $0x28] sm:$0xff]
                %316 = vst [vmem:[%s308 + $0x18] sm:$0xff] %v315
                %v317 = vld [vmem:[%s307 + $0x40] sm:$0xff]
                %318 = vst [vmem:[%s308 + $0x20] sm:$0xff] %v317
                %v319 = vld [vmem:[%s307 + $0x48] sm:$0xff]
                %320 = vst [vmem:[%s308 + $0x28] sm:$0xff] %v319
                %v321 = vld [vmem:[%s307 + $0x60] sm:$0xff]
                %322 = vst [vmem:[%s308 + $0x30] sm:$0xff] %v321
                %v323 = vld [vmem:[%s307 + $0x68] sm:$0xff]
                %324 = vst [vmem:[%s308 + $0x38] sm:$0xff] %v323
                %v325 = vld [vmem:[%s307 + $0x80] sm:$0xff]
                %326 = vst [vmem:[%s308 + $0x40] sm:$0xff] %v325
                %v327 = vld [vmem:[%s307 + $0x88] sm:$0xff]
                %328 = vst [vmem:[%s308 + $0x48] sm:$0xff] %v327
                %v329 = vld [vmem:[%s307 + $0xa0] sm:$0xff]
                %330 = vst [vmem:[%s308 + $0x50] sm:$0xff] %v329
                %v331 = vld [vmem:[%s307 + $0xa8] sm:$0xff]
                %332 = vst [vmem:[%s308 + $0x58] sm:$0xff] %v331
                %v333 = vld [vmem:[%s307 + $0xc0] sm:$0xff]
                %334 = vst [vmem:[%s308 + $0x60] sm:$0xff] %v333
                %v335 = vld [vmem:[%s307 + $0xc8] sm:$0xff]
                %336 = vst [vmem:[%s308 + $0x68] sm:$0xff] %v335
                %v337 = vld [vmem:[%s307 + $0xe0] sm:$0xff]
                %338 = vst [vmem:[%s308 + $0x70] sm:$0xff] %v337
                %v339 = vld [vmem:[%s307 + $0xe8] sm:$0xff]
                %340 = vst [vmem:[%s308 + $0x78] sm:$0xff] %v339
                %v341 = vld [vmem:[%s307 + $0x100] sm:$0xff]
                %342 = vst [vmem:[%s308 + $0x80] sm:$0xff] %v341
                %v343 = vld [vmem:[%s307 + $0x108] sm:$0xff]
                %344 = vst [vmem:[%s308 + $0x88] sm:$0xff] %v343
                %v345 = vld [vmem:[%s307 + $0x120] sm:$0xff]
                %346 = vst [vmem:[%s308 + $0x90] sm:$0xff] %v345
                %v347 = vld [vmem:[%s307 + $0x128] sm:$0xff]
                %348 = vst [vmem:[%s308 + $0x98] sm:$0xff] %v347
                %v349 = vld [vmem:[%s307 + $0x140] sm:$0xff]
                %350 = vst [vmem:[%s308 + $0xa0] sm:$0xff] %v349
                %v351 = vld [vmem:[%s307 + $0x148] sm:$0xff]
                %352 = vst [vmem:[%s308 + $0xa8] sm:$0xff] %v351
                %v353 = vld [vmem:[%s307 + $0x160] sm:$0xff]
                %354 = vst [vmem:[%s308 + $0xb0] sm:$0xff] %v353
                %v355 = vld [vmem:[%s307 + $0x168] sm:$0xff]
                %356 = vst [vmem:[%s308 + $0xb8] sm:$0xff] %v355
                %v357 = vld [vmem:[%s307 + $0x180] sm:$0xff]
                %358 = vst [vmem:[%s308 + $0xc0] sm:$0xff] %v357
                %v359 = vld [vmem:[%s307 + $0x188] sm:$0xff]
                %360 = vst [vmem:[%s308 + $0xc8] sm:$0xff] %v359
                %v361 = vld [vmem:[%s307 + $0x1a0] sm:$0xff]
                %362 = vst [vmem:[%s308 + $0xd0] sm:$0xff] %v361
                %v363 = vld [vmem:[%s307 + $0x1a8] sm:$0xff]
                %364 = vst [vmem:[%s308 + $0xd8] sm:$0xff] %v363
                %v365 = vld [vmem:[%s307 + $0x1c0] sm:$0xff]
                %366 = vst [vmem:[%s308 + $0xe0] sm:$0xff] %v365
                %v367 = vld [vmem:[%s307 + $0x1c8] sm:$0xff]
                %368 = vst [vmem:[%s308 + $0xe8] sm:$0xff] %v367
                %v369 = vld [vmem:[%s307 + $0x1e0] sm:$0xff]
                %370 = vst [vmem:[%s308 + $0xf0] sm:$0xff] %v369
                %v371 = vld [vmem:[%s307 + $0x1e8] sm:$0xff]
                %372 = vst [vmem:[%s308 + $0xf8] sm:$0xff] %v371
              $region75: #{tpu_custom_call.1} parent=69 // loop_footer
                %s306 = sadd.s32 1, %s302
              $region76: #{tpu_custom_call.1} parent=69 // loop_footer_branch
                %301 = sbr.rel target = $region72
              $region77: #{tpu_custom_call.1} parent=69 // loop_exit
                _
            $region70: #{tpu_custom_call.1} parent=61 // pred_fallthru
              _
          $region62: #{tpu_custom_call.1} parent=57 // pred_fallthru
            _
          %449 = vnop
        $region58: #{tpu_custom_call.1} parent=15 // pred_fallthru
          _
        // Predicated region
        $region93: #{tpu_custom_call.1} parent=15 // pred_check
          %p450 = pneg %p101
        $region94: #{tpu_custom_call.1} parent=15 // pred_check_branch
          %452 = sbr.rel (%p450) target = $region96
        $region95: #{tpu_custom_call.1} parent=15 // pred_region
          %s453 = sand.u32 %s91, 1
          %s454 = sand.u32 %s91, 1
          %s455 = smul.addr %s454, 256
          %s456 = scalar_lea.vmem [#allocation5], %s455
          %s457 = smul.u32 2, %s24
          %s458 = smul.addr %s457, 8
          %s459 = scalar_lea.vmem %s2, %s458
          // Predicated region
          $region97: #{tpu_custom_call.1} parent=95 // pred_check
            _
          $region98: #{tpu_custom_call.1} parent=95 // pred_check_branch
            %461 = sbr.rel (0) target = $region100
          $region99: #{tpu_custom_call.1} parent=95 // pred_region
            // Predicated region
            $region101: #{tpu_custom_call.1} parent=99 // pred_check
              _
            $region102: #{tpu_custom_call.1} parent=99 // pred_check_branch
              %463 = sbr.rel (0) target = $region104
            $region103: #{tpu_custom_call.1} parent=99 // pred_region
              // Predicated region
              $region116: #{tpu_custom_call.1} parent=103 // pred_check
                _
              $region117: #{tpu_custom_call.1} parent=103 // pred_check_branch
                %540 = sbr.rel (0) target = $region119
              $region118: #{tpu_custom_call.1} parent=103 // pred_region
                loop: start=0, step=1, limit=1
                $region120: #{tpu_custom_call.1} parent=118 // loop_pre_header
                  _
                $region121: #{tpu_custom_call.1} parent=118 // loop_header
                  %s542 = sphi 0, %s546
                  %p543 = scmp.ge.s32.totalorder %s542, 1
                  %s547 = sphi %s459, %s459
                  %s548 = sphi %s456, %s456
                $region122: #{tpu_custom_call.1} parent=118 // loop_header_branch
                  %545 = sbr.rel (%p543) target = $region126
                $region123: #{tpu_custom_call.1} parent=118 // loop_body
                  %v549 = vld [vmem:[%s547] sm:$0xff]
                  %550 = vst [vmem:[%s548] sm:$0xff] %v549
                  %v551 = vld [vmem:[%s547 + $0x8] sm:$0xff]
                  %552 = vst [vmem:[%s548 + $0x8] sm:$0xff] %v551
                  %v553 = vld [vmem:[%s547 + $0x20] sm:$0xff]
                  %554 = vst [vmem:[%s548 + $0x10] sm:$0xff] %v553
                  %v555 = vld [vmem:[%s547 + $0x28] sm:$0xff]
                  %556 = vst [vmem:[%s548 + $0x18] sm:$0xff] %v555
                  %v557 = vld [vmem:[%s547 + $0x40] sm:$0xff]
                  %558 = vst [vmem:[%s548 + $0x20] sm:$0xff] %v557
                  %v559 = vld [vmem:[%s547 + $0x48] sm:$0xff]
                  %560 = vst [vmem:[%s548 + $0x28] sm:$0xff] %v559
                  %v561 = vld [vmem:[%s547 + $0x60] sm:$0xff]
                  %562 = vst [vmem:[%s548 + $0x30] sm:$0xff] %v561
                  %v563 = vld [vmem:[%s547 + $0x68] sm:$0xff]
                  %564 = vst [vmem:[%s548 + $0x38] sm:$0xff] %v563
                  %v565 = vld [vmem:[%s547 + $0x80] sm:$0xff]
                  %566 = vst [vmem:[%s548 + $0x40] sm:$0xff] %v565
                  %v567 = vld [vmem:[%s547 + $0x88] sm:$0xff]
                  %568 = vst [vmem:[%s548 + $0x48] sm:$0xff] %v567
                  %v569 = vld [vmem:[%s547 + $0xa0] sm:$0xff]
                  %570 = vst [vmem:[%s548 + $0x50] sm:$0xff] %v569
                  %v571 = vld [vmem:[%s547 + $0xa8] sm:$0xff]
                  %572 = vst [vmem:[%s548 + $0x58] sm:$0xff] %v571
                  %v573 = vld [vmem:[%s547 + $0xc0] sm:$0xff]
                  %574 = vst [vmem:[%s548 + $0x60] sm:$0xff] %v573
                  %v575 = vld [vmem:[%s547 + $0xc8] sm:$0xff]
                  %576 = vst [vmem:[%s548 + $0x68] sm:$0xff] %v575
                  %v577 = vld [vmem:[%s547 + $0xe0] sm:$0xff]
                  %578 = vst [vmem:[%s548 + $0x70] sm:$0xff] %v577
                  %v579 = vld [vmem:[%s547 + $0xe8] sm:$0xff]
                  %580 = vst [vmem:[%s548 + $0x78] sm:$0xff] %v579
                  %v581 = vld [vmem:[%s547 + $0x100] sm:$0xff]
                  %582 = vst [vmem:[%s548 + $0x80] sm:$0xff] %v581
                  %v583 = vld [vmem:[%s547 + $0x108] sm:$0xff]
                  %584 = vst [vmem:[%s548 + $0x88] sm:$0xff] %v583
                  %v585 = vld [vmem:[%s547 + $0x120] sm:$0xff]
                  %586 = vst [vmem:[%s548 + $0x90] sm:$0xff] %v585
                  %v587 = vld [vmem:[%s547 + $0x128] sm:$0xff]
                  %588 = vst [vmem:[%s548 + $0x98] sm:$0xff] %v587
                  %v589 = vld [vmem:[%s547 + $0x140] sm:$0xff]
                  %590 = vst [vmem:[%s548 + $0xa0] sm:$0xff] %v589
                  %v591 = vld [vmem:[%s547 + $0x148] sm:$0xff]
                  %592 = vst [vmem:[%s548 + $0xa8] sm:$0xff] %v591
                  %v593 = vld [vmem:[%s547 + $0x160] sm:$0xff]
                  %594 = vst [vmem:[%s548 + $0xb0] sm:$0xff] %v593
                  %v595 = vld [vmem:[%s547 + $0x168] sm:$0xff]
                  %596 = vst [vmem:[%s548 + $0xb8] sm:$0xff] %v595
                  %v597 = vld [vmem:[%s547 + $0x180] sm:$0xff]
                  %598 = vst [vmem:[%s548 + $0xc0] sm:$0xff] %v597
                  %v599 = vld [vmem:[%s547 + $0x188] sm:$0xff]
                  %600 = vst [vmem:[%s548 + $0xc8] sm:$0xff] %v599
                  %v601 = vld [vmem:[%s547 + $0x1a0] sm:$0xff]
                  %602 = vst [vmem:[%s548 + $0xd0] sm:$0xff] %v601
                  %v603 = vld [vmem:[%s547 + $0x1a8] sm:$0xff]
                  %604 = vst [vmem:[%s548 + $0xd8] sm:$0xff] %v603
                  %v605 = vld [vmem:[%s547 + $0x1c0] sm:$0xff]
                  %606 = vst [vmem:[%s548 + $0xe0] sm:$0xff] %v605
                  %v607 = vld [vmem:[%s547 + $0x1c8] sm:$0xff]
                  %608 = vst [vmem:[%s548 + $0xe8] sm:$0xff] %v607
                  %v609 = vld [vmem:[%s547 + $0x1e0] sm:$0xff]
                  %610 = vst [vmem:[%s548 + $0xf0] sm:$0xff] %v609
                  %v611 = vld [vmem:[%s547 + $0x1e8] sm:$0xff]
                  %612 = vst [vmem:[%s548 + $0xf8] sm:$0xff] %v611
                $region124: #{tpu_custom_call.1} parent=118 // loop_footer
                  %s546 = sadd.s32 1, %s542
                $region125: #{tpu_custom_call.1} parent=118 // loop_footer_branch
                  %541 = sbr.rel target = $region121
                $region126: #{tpu_custom_call.1} parent=118 // loop_exit
                  _
              $region119: #{tpu_custom_call.1} parent=103 // pred_fallthru
                _
              // Predicated region
              $region127: #{tpu_custom_call.1} parent=103 // pred_check
                _
              $region128: #{tpu_custom_call.1} parent=103 // pred_check_branch
                %614 = sbr.rel target = $region130
              $region129: #{tpu_custom_call.1} parent=103 // pred_region
                _
              $region130: #{tpu_custom_call.1} parent=103 // pred_fallthru
                _
            $region104: #{tpu_custom_call.1} parent=99 // pred_fallthru
              _
            // Predicated region
            $region105: #{tpu_custom_call.1} parent=99 // pred_check
              _
            $region106: #{tpu_custom_call.1} parent=99 // pred_check_branch
              %465 = sbr.rel target = $region108
            $region107: #{tpu_custom_call.1} parent=99 // pred_region
              loop: start=0, step=1, limit=1
              $region109: #{tpu_custom_call.1} parent=107 // loop_pre_header
                _
              $region110: #{tpu_custom_call.1} parent=107 // loop_header
                %s468 = sphi 0, %s472
                %p469 = scmp.ge.s32.totalorder %s468, 1
                %s473 = sphi %s459, %s459
                %s474 = sphi %s456, %s456
              $region111: #{tpu_custom_call.1} parent=107 // loop_header_branch
                %471 = sbr.rel (%p469) target = $region115
              $region112: #{tpu_custom_call.1} parent=107 // loop_body
                %v475 = vld [vmem:[%s473] sm:$0xff]
                %476 = vst [vmem:[%s474] sm:$0xff] %v475
                %v477 = vld [vmem:[%s473 + $0x8] sm:$0xff]
                %478 = vst [vmem:[%s474 + $0x8] sm:$0xff] %v477
                %v479 = vld [vmem:[%s473 + $0x20] sm:$0xff]
                %480 = vst [vmem:[%s474 + $0x10] sm:$0xff] %v479
                %v481 = vld [vmem:[%s473 + $0x28] sm:$0xff]
                %482 = vst [vmem:[%s474 + $0x18] sm:$0xff] %v481
                %v483 = vld [vmem:[%s473 + $0x40] sm:$0xff]
                %484 = vst [vmem:[%s474 + $0x20] sm:$0xff] %v483
                %v485 = vld [vmem:[%s473 + $0x48] sm:$0xff]
                %486 = vst [vmem:[%s474 + $0x28] sm:$0xff] %v485
                %v487 = vld [vmem:[%s473 + $0x60] sm:$0xff]
                %488 = vst [vmem:[%s474 + $0x30] sm:$0xff] %v487
                %v489 = vld [vmem:[%s473 + $0x68] sm:$0xff]
                %490 = vst [vmem:[%s474 + $0x38] sm:$0xff] %v489
                %v491 = vld [vmem:[%s473 + $0x80] sm:$0xff]
                %492 = vst [vmem:[%s474 + $0x40] sm:$0xff] %v491
                %v493 = vld [vmem:[%s473 + $0x88] sm:$0xff]
                %494 = vst [vmem:[%s474 + $0x48] sm:$0xff] %v493
                %v495 = vld [vmem:[%s473 + $0xa0] sm:$0xff]
                %496 = vst [vmem:[%s474 + $0x50] sm:$0xff] %v495
                %v497 = vld [vmem:[%s473 + $0xa8] sm:$0xff]
                %498 = vst [vmem:[%s474 + $0x58] sm:$0xff] %v497
                %v499 = vld [vmem:[%s473 + $0xc0] sm:$0xff]
                %500 = vst [vmem:[%s474 + $0x60] sm:$0xff] %v499
                %v501 = vld [vmem:[%s473 + $0xc8] sm:$0xff]
                %502 = vst [vmem:[%s474 + $0x68] sm:$0xff] %v501
                %v503 = vld [vmem:[%s473 + $0xe0] sm:$0xff]
                %504 = vst [vmem:[%s474 + $0x70] sm:$0xff] %v503
                %v505 = vld [vmem:[%s473 + $0xe8] sm:$0xff]
                %506 = vst [vmem:[%s474 + $0x78] sm:$0xff] %v505
                %v507 = vld [vmem:[%s473 + $0x100] sm:$0xff]
                %508 = vst [vmem:[%s474 + $0x80] sm:$0xff] %v507
                %v509 = vld [vmem:[%s473 + $0x108] sm:$0xff]
                %510 = vst [vmem:[%s474 + $0x88] sm:$0xff] %v509
                %v511 = vld [vmem:[%s473 + $0x120] sm:$0xff]
                %512 = vst [vmem:[%s474 + $0x90] sm:$0xff] %v511
                %v513 = vld [vmem:[%s473 + $0x128] sm:$0xff]
                %514 = vst [vmem:[%s474 + $0x98] sm:$0xff] %v513
                %v515 = vld [vmem:[%s473 + $0x140] sm:$0xff]
                %516 = vst [vmem:[%s474 + $0xa0] sm:$0xff] %v515
                %v517 = vld [vmem:[%s473 + $0x148] sm:$0xff]
                %518 = vst [vmem:[%s474 + $0xa8] sm:$0xff] %v517
                %v519 = vld [vmem:[%s473 + $0x160] sm:$0xff]
                %520 = vst [vmem:[%s474 + $0xb0] sm:$0xff] %v519
                %v521 = vld [vmem:[%s473 + $0x168] sm:$0xff]
                %522 = vst [vmem:[%s474 + $0xb8] sm:$0xff] %v521
                %v523 = vld [vmem:[%s473 + $0x180] sm:$0xff]
                %524 = vst [vmem:[%s474 + $0xc0] sm:$0xff] %v523
                %v525 = vld [vmem:[%s473 + $0x188] sm:$0xff]
                %526 = vst [vmem:[%s474 + $0xc8] sm:$0xff] %v525
                %v527 = vld [vmem:[%s473 + $0x1a0] sm:$0xff]
                %528 = vst [vmem:[%s474 + $0xd0] sm:$0xff] %v527
                %v529 = vld [vmem:[%s473 + $0x1a8] sm:$0xff]
                %530 = vst [vmem:[%s474 + $0xd8] sm:$0xff] %v529
                %v531 = vld [vmem:[%s473 + $0x1c0] sm:$0xff]
                %532 = vst [vmem:[%s474 + $0xe0] sm:$0xff] %v531
                %v533 = vld [vmem:[%s473 + $0x1c8] sm:$0xff]
                %534 = vst [vmem:[%s474 + $0xe8] sm:$0xff] %v533
                %v535 = vld [vmem:[%s473 + $0x1e0] sm:$0xff]
                %536 = vst [vmem:[%s474 + $0xf0] sm:$0xff] %v535
                %v537 = vld [vmem:[%s473 + $0x1e8] sm:$0xff]
                %538 = vst [vmem:[%s474 + $0xf8] sm:$0xff] %v537
              $region113: #{tpu_custom_call.1} parent=107 // loop_footer
                %s472 = sadd.s32 1, %s468
              $region114: #{tpu_custom_call.1} parent=107 // loop_footer_branch
                %467 = sbr.rel target = $region110
              $region115: #{tpu_custom_call.1} parent=107 // loop_exit
                _
            $region108: #{tpu_custom_call.1} parent=99 // pred_fallthru
              _
          $region100: #{tpu_custom_call.1} parent=95 // pred_fallthru
            _
          %615 = vnop
        $region96: #{tpu_custom_call.1} parent=15 // pred_fallthru
          _
      $region16: #{tpu_custom_call.1} parent=5 // pred_fallthru
        _
      %p616 = scmp.le.s32.totalorder 1, %s17
      %p617 = scmp.lt.s32.totalorder %s17, 3
      %p618 = pnand %p616, %p617
      %p619 = pneg %p618
      // Predicated region
      $region131: #{tpu_custom_call.1} parent=5 // pred_check
        _
      $region132: #{tpu_custom_call.1} parent=5 // pred_check_branch
        %621 = sbr.rel (%p618) target = $region134
      $region133: #{tpu_custom_call.1} parent=5 // pred_region
        %s622 = ssub.s32 %s17, 1
        %s623 = sand.u32 %s42, 1
        %s624 = sand.u32 %s42, 1
        %s625 = smul.addr %s624, 128
        %s626 = scalar_lea.vmem [#allocation3], %s625
        // Predicated region
        $region135: #{tpu_custom_call.1} parent=133 // pred_check
          %p627 = pneg %p55
        $region136: #{tpu_custom_call.1} parent=133 // pred_check_branch
          %629 = sbr.rel (%p627) target = $region138
        $region137: #{tpu_custom_call.1} parent=133 // pred_region
          _
        $region138: #{tpu_custom_call.1} parent=133 // pred_fallthru
          _
        %s630 = sand.u32 %s68, 1
        %s631 = sand.u32 %s68, 1
        %s632 = smul.addr %s631, 256
        %s633 = scalar_lea.vmem [#allocation4], %s632
        // Predicated region
        $region139: #{tpu_custom_call.1} parent=133 // pred_check
          %p634 = pneg %p81
        $region140: #{tpu_custom_call.1} parent=133 // pred_check_branch
          %636 = sbr.rel (%p634) target = $region142
        $region141: #{tpu_custom_call.1} parent=133 // pred_region
          _
        $region142: #{tpu_custom_call.1} parent=133 // pred_fallthru
          _
        %s637 = sand.u32 %s94, 1
        %s638 = sand.u32 %s94, 1
        %s639 = smul.addr %s638, 256
        %s640 = scalar_lea.vmem [#allocation5], %s639
        // Predicated region
        $region143: #{tpu_custom_call.1} parent=133 // pred_check
          %p641 = pneg %p107
        $region144: #{tpu_custom_call.1} parent=133 // pred_check_branch
          %643 = sbr.rel (%p641) target = $region146
        $region145: #{tpu_custom_call.1} parent=133 // pred_region
          _
        $region146: #{tpu_custom_call.1} parent=133 // pred_fallthru
          _
        %s644 = sand.u32 %s42, 1
        %s645 = sand.u32 %s42, 1
        %s646 = smul.addr %s645, 128
        %s647 = scalar_lea.vmem [#allocation3], %s646
        %p648 = pneg %p55
        %p649 = pneg %p52
        %s650 = sand.u32 %s68, 1
        %s651 = sand.u32 %s68, 1
        %s652 = smul.addr %s651, 256
        %s653 = scalar_lea.vmem [#allocation4], %s652
        %p654 = pneg %p81
        %p655 = pneg %p78
        %s656 = sand.u32 %s94, 1
        %s657 = sand.u32 %s94, 1
        %s658 = smul.addr %s657, 256
        %s659 = scalar_lea.vmem [#allocation5], %s658
        %p660 = pneg %p107
        %p661 = pneg %p104
        %p662 = pneg %p135
        %p663 = pneg %p132
        %s664 = sand.u32 %s122, 1
        %s665 = scalar_lea.sflag [#allocation7], %s664
        %s666 = sand.u32 %s122, 1
        %s667 = smul.addr %s666, 96
        %s668 = scalar_lea.vmem [#allocation6], %s667
        %p669 = pneg %p163
        %p670 = pneg %p160
        %s671 = sand.u32 %s150, 1
        %s672 = scalar_lea.sflag [#allocation9], %s671
        %s673 = sand.u32 %s150, 1
        %s674 = smul.addr %s673, 96
        %s675 = scalar_lea.vmem [#allocation8], %s674
        %s676 = smul.u32 2, %s26
        %s677 = smul.u32 2, %s26
        %s678 = smul.u32 2, %s26
        %s679 = smul.u32 2, %s26
        %s680 = smul.u32 3, %s27
        %s681 = smul.u32 2, %s26
        %s682 = smul.u32 3, %s27
        %p683 = scmp.eq.s32.totalorder %s27, 0
        // Predicated region
        $region147: #{tpu_custom_call.1} parent=133 // pred_check
          %p684 = pneg %p683
        $region148: #{tpu_custom_call.1} parent=133 // pred_check_branch
          %686 = sbr.rel (%p684) target = $region150
        $region149: #{tpu_custom_call.1} parent=133 // pred_region
          %v687 = vlaneseq
          %v688 = vand.u32 %v687, 127
          %v689 = vcvt.s32.f32 %v688
          %v690 = vld [vmem:[%s626] sm:$0xff]
          %v691 = vld [vmem:[%s626 + $0x8] sm:$0xff]
          %693 = vset.pattern.permute.xlu0 0
          %694 = vperm.xlu0 %693, %v690
          %v695 = vpop.permute.xlu0 %694
          %698 = vset.pattern.permute.xlu0 0
          %699 = vperm.xlu0 %698, %v691
          %v700 = vpop.permute.xlu0 %699
          %v702 = vmul.f32 %v695, %v689
          %v703 = vmul.f32 %v700, %v689
          %v704 = vmul.f32 %v702, 1.442695
          %v705 = vpow.pop %v704
          %v706 = vmul.f32 %v703, 1.442695
          %v707 = vpow.pop %v706
          %708 = vst [vmem:[#allocation2] sm:$0xff] %v705
          %709 = vst [vmem:[#allocation2 + $0x18] sm:$0xff] %v707
          %v710 = vmul.f32 %v690, 128.0
          %v711 = vmul.f32 %v691, 128.0
          %v712 = vmul.f32 %v710, 1.442695
          %v713 = vpow.pop %v712
          %v714 = vmul.f32 %v711, 1.442695
          %v715 = vpow.pop %v714
          %717 = vset.pattern.permute.xlu0 0
          %718 = vperm.xlu0 %717, %v713
          %v719 = vpop.permute.xlu0 %718
          %722 = vset.pattern.permute.xlu0 0
          %723 = vperm.xlu0 %722, %v715
          %v724 = vpop.permute.xlu0 %723
          %v726 = vmul.f32 %v705, %v719
          %v727 = vmul.f32 %v707, %v724
          %728 = vst [vmem:[#allocation2 + $0x8] sm:$0xff] %v726
          %729 = vst [vmem:[#allocation2 + $0x20] sm:$0xff] %v727
          %v730 = vmul.f32 %v726, %v719
          %v731 = vmul.f32 %v727, %v724
          %732 = vst [vmem:[#allocation2 + $0x10] sm:$0xff] %v730
          %733 = vst [vmem:[#allocation2 + $0x28] sm:$0xff] %v731
          %s734 = scalar_lea.vmem %s626, 16 [#allocation3]
          %v735 = vld [vmem:[%s734] sm:$0xff]
          %v736 = vld [vmem:[%s734 + $0x8] sm:$0xff]
          %738 = vset.pattern.permute.xlu0 0
          %739 = vperm.xlu0 %738, %v735
          %v740 = vpop.permute.xlu0 %739
          %743 = vset.pattern.permute.xlu0 0
          %744 = vperm.xlu0 %743, %v736
          %v745 = vpop.permute.xlu0 %744
          %v747 = vmul.f32 %v740, %v689
          %v748 = vmul.f32 %v745, %v689
          %v749 = vmul.f32 %v747, 1.442695
          %v750 = vpow.pop %v749
          %v751 = vmul.f32 %v748, 1.442695
          %v752 = vpow.pop %v751
          %s753 = scalar_lea.vmem [#allocation2], 48
          %754 = vst [vmem:[%s753] sm:$0xff] %v750
          %755 = vst [vmem:[%s753 + $0x18] sm:$0xff] %v752
          %v756 = vmul.f32 %v735, 128.0
          %v757 = vmul.f32 %v736, 128.0
          %v758 = vmul.f32 %v756, 1.442695
          %v759 = vpow.pop %v758
          %v760 = vmul.f32 %v757, 1.442695
          %v761 = vpow.pop %v760
          %763 = vset.pattern.permute.xlu0 0
          %764 = vperm.xlu0 %763, %v759
          %v765 = vpop.permute.xlu0 %764
          %768 = vset.pattern.permute.xlu0 0
          %769 = vperm.xlu0 %768, %v761
          %v770 = vpop.permute.xlu0 %769
          %v772 = vmul.f32 %v750, %v765
          %v773 = vmul.f32 %v752, %v770
          %774 = vst [vmem:[%s753 + $0x8] sm:$0xff] %v772
          %775 = vst [vmem:[%s753 + $0x20] sm:$0xff] %v773
          %v776 = vmul.f32 %v772, %v765
          %v777 = vmul.f32 %v773, %v770
          %778 = vst [vmem:[%s753 + $0x10] sm:$0xff] %v776
          %779 = vst [vmem:[%s753 + $0x28] sm:$0xff] %v777
          %s780 = scalar_lea.vmem %s626, 32 [#allocation3]
          %v781 = vld [vmem:[%s780] sm:$0xff]
          %v782 = vld [vmem:[%s780 + $0x8] sm:$0xff]
          %784 = vset.pattern.permute.xlu0 0
          %785 = vperm.xlu0 %784, %v781
          %v786 = vpop.permute.xlu0 %785
          %789 = vset.pattern.permute.xlu0 0
          %790 = vperm.xlu0 %789, %v782
          %v791 = vpop.permute.xlu0 %790
          %v793 = vmul.f32 %v786, %v689
          %v794 = vmul.f32 %v791, %v689
          %v795 = vmul.f32 %v793, 1.442695
          %v796 = vpow.pop %v795
          %v797 = vmul.f32 %v794, 1.442695
          %v798 = vpow.pop %v797
          %s799 = scalar_lea.vmem [#allocation2], 96
          %800 = vst [vmem:[%s799] sm:$0xff] %v796
          %801 = vst [vmem:[%s799 + $0x18] sm:$0xff] %v798
          %v802 = vmul.f32 %v781, 128.0
          %v803 = vmul.f32 %v782, 128.0
          %v804 = vmul.f32 %v802, 1.442695
          %v805 = vpow.pop %v804
          %v806 = vmul.f32 %v803, 1.442695
          %v807 = vpow.pop %v806
          %809 = vset.pattern.permute.xlu0 0
          %810 = vperm.xlu0 %809, %v805
          %v811 = vpop.permute.xlu0 %810
          %814 = vset.pattern.permute.xlu0 0
          %815 = vperm.xlu0 %814, %v807
          %v816 = vpop.permute.xlu0 %815
          %v818 = vmul.f32 %v796, %v811
          %v819 = vmul.f32 %v798, %v816
          %820 = vst [vmem:[%s799 + $0x8] sm:$0xff] %v818
          %821 = vst [vmem:[%s799 + $0x20] sm:$0xff] %v819
          %v822 = vmul.f32 %v818, %v811
          %v823 = vmul.f32 %v819, %v816
          %824 = vst [vmem:[%s799 + $0x10] sm:$0xff] %v822
          %825 = vst [vmem:[%s799 + $0x28] sm:$0xff] %v823
          %s826 = scalar_lea.vmem %s626, 48 [#allocation3]
          %v827 = vld [vmem:[%s826] sm:$0xff]
          %v828 = vld [vmem:[%s826 + $0x8] sm:$0xff]
          %830 = vset.pattern.permute.xlu0 0
          %831 = vperm.xlu0 %830, %v827
          %v832 = vpop.permute.xlu0 %831
          %835 = vset.pattern.permute.xlu0 0
          %836 = vperm.xlu0 %835, %v828
          %v837 = vpop.permute.xlu0 %836
          %v839 = vmul.f32 %v832, %v689
          %v840 = vmul.f32 %v837, %v689
          %v841 = vmul.f32 %v839, 1.442695
          %v842 = vpow.pop %v841
          %v843 = vmul.f32 %v840, 1.442695
          %v844 = vpow.pop %v843
          %s845 = scalar_lea.vmem [#allocation2], 144
          %846 = vst [vmem:[%s845] sm:$0xff] %v842
          %847 = vst [vmem:[%s845 + $0x18] sm:$0xff] %v844
          %v848 = vmul.f32 %v827, 128.0
          %v849 = vmul.f32 %v828, 128.0
          %v850 = vmul.f32 %v848, 1.442695
          %v851 = vpow.pop %v850
          %v852 = vmul.f32 %v849, 1.442695
          %v853 = vpow.pop %v852
          %855 = vset.pattern.permute.xlu0 0
          %856 = vperm.xlu0 %855, %v851
          %v857 = vpop.permute.xlu0 %856
          %860 = vset.pattern.permute.xlu0 0
          %861 = vperm.xlu0 %860, %v853
          %v862 = vpop.permute.xlu0 %861
          %v864 = vmul.f32 %v842, %v857
          %v865 = vmul.f32 %v844, %v862
          %866 = vst [vmem:[%s845 + $0x8] sm:$0xff] %v864
          %867 = vst [vmem:[%s845 + $0x20] sm:$0xff] %v865
          %v868 = vmul.f32 %v864, %v857
          %v869 = vmul.f32 %v865, %v862
          %870 = vst [vmem:[%s845 + $0x10] sm:$0xff] %v868
          %871 = vst [vmem:[%s845 + $0x28] sm:$0xff] %v869
          %s872 = scalar_lea.vmem %s626, 64 [#allocation3]
          %v873 = vld [vmem:[%s872] sm:$0xff]
          %v874 = vld [vmem:[%s872 + $0x8] sm:$0xff]
          %876 = vset.pattern.permute.xlu0 0
          %877 = vperm.xlu0 %876, %v873
          %v878 = vpop.permute.xlu0 %877
          %881 = vset.pattern.permute.xlu0 0
          %882 = vperm.xlu0 %881, %v874
          %v883 = vpop.permute.xlu0 %882
          %v885 = vmul.f32 %v878, %v689
          %v886 = vmul.f32 %v883, %v689
          %v887 = vmul.f32 %v885, 1.442695
          %v888 = vpow.pop %v887
          %v889 = vmul.f32 %v886, 1.442695
          %v890 = vpow.pop %v889
          %s891 = scalar_lea.vmem [#allocation2], 192
          %892 = vst [vmem:[%s891] sm:$0xff] %v888
          %893 = vst [vmem:[%s891 + $0x18] sm:$0xff] %v890
          %v894 = vmul.f32 %v873, 128.0
          %v895 = vmul.f32 %v874, 128.0
          %v896 = vmul.f32 %v894, 1.442695
          %v897 = vpow.pop %v896
          %v898 = vmul.f32 %v895, 1.442695
          %v899 = vpow.pop %v898
          %901 = vset.pattern.permute.xlu0 0
          %902 = vperm.xlu0 %901, %v897
          %v903 = vpop.permute.xlu0 %902
          %906 = vset.pattern.permute.xlu0 0
          %907 = vperm.xlu0 %906, %v899
          %v908 = vpop.permute.xlu0 %907
          %v910 = vmul.f32 %v888, %v903
          %v911 = vmul.f32 %v890, %v908
          %912 = vst [vmem:[%s891 + $0x8] sm:$0xff] %v910
          %913 = vst [vmem:[%s891 + $0x20] sm:$0xff] %v911
          %v914 = vmul.f32 %v910, %v903
          %v915 = vmul.f32 %v911, %v908
          %916 = vst [vmem:[%s891 + $0x10] sm:$0xff] %v914
          %917 = vst [vmem:[%s891 + $0x28] sm:$0xff] %v915
          %s918 = scalar_lea.vmem %s626, 80 [#allocation3]
          %v919 = vld [vmem:[%s918] sm:$0xff]
          %v920 = vld [vmem:[%s918 + $0x8] sm:$0xff]
          %922 = vset.pattern.permute.xlu0 0
          %923 = vperm.xlu0 %922, %v919
          %v924 = vpop.permute.xlu0 %923
          %927 = vset.pattern.permute.xlu0 0
          %928 = vperm.xlu0 %927, %v920
          %v929 = vpop.permute.xlu0 %928
          %v931 = vmul.f32 %v924, %v689
          %v932 = vmul.f32 %v929, %v689
          %v933 = vmul.f32 %v931, 1.442695
          %v934 = vpow.pop %v933
          %v935 = vmul.f32 %v932, 1.442695
          %v936 = vpow.pop %v935
          %s937 = scalar_lea.vmem [#allocation2], 240
          %938 = vst [vmem:[%s937] sm:$0xff] %v934
          %939 = vst [vmem:[%s937 + $0x18] sm:$0xff] %v936
          %v940 = vmul.f32 %v919, 128.0
          %v941 = vmul.f32 %v920, 128.0
          %v942 = vmul.f32 %v940, 1.442695
          %v943 = vpow.pop %v942
          %v944 = vmul.f32 %v941, 1.442695
          %v945 = vpow.pop %v944
          %947 = vset.pattern.permute.xlu0 0
          %948 = vperm.xlu0 %947, %v943
          %v949 = vpop.permute.xlu0 %948
          %952 = vset.pattern.permute.xlu0 0
          %953 = vperm.xlu0 %952, %v945
          %v954 = vpop.permute.xlu0 %953
          %v956 = vmul.f32 %v934, %v949
          %v957 = vmul.f32 %v936, %v954
          %958 = vst [vmem:[%s937 + $0x8] sm:$0xff] %v956
          %959 = vst [vmem:[%s937 + $0x20] sm:$0xff] %v957
          %v960 = vmul.f32 %v956, %v949
          %v961 = vmul.f32 %v957, %v954
          %962 = vst [vmem:[%s937 + $0x10] sm:$0xff] %v960
          %963 = vst [vmem:[%s937 + $0x28] sm:$0xff] %v961
          %s964 = scalar_lea.vmem %s626, 96 [#allocation3]
          %v965 = vld [vmem:[%s964] sm:$0xff]
          %v966 = vld [vmem:[%s964 + $0x8] sm:$0xff]
          %968 = vset.pattern.permute.xlu0 0
          %969 = vperm.xlu0 %968, %v965
          %v970 = vpop.permute.xlu0 %969
          %973 = vset.pattern.permute.xlu0 0
          %974 = vperm.xlu0 %973, %v966
          %v975 = vpop.permute.xlu0 %974
          %v977 = vmul.f32 %v970, %v689
          %v978 = vmul.f32 %v975, %v689
          %v979 = vmul.f32 %v977, 1.442695
          %v980 = vpow.pop %v979
          %v981 = vmul.f32 %v978, 1.442695
          %v982 = vpow.pop %v981
          %s983 = scalar_lea.vmem [#allocation2], 288
          %984 = vst [vmem:[%s983] sm:$0xff] %v980
          %985 = vst [vmem:[%s983 + $0x18] sm:$0xff] %v982
          %v986 = vmul.f32 %v965, 128.0
          %v987 = vmul.f32 %v966, 128.0
          %v988 = vmul.f32 %v986, 1.442695
          %v989 = vpow.pop %v988
          %v990 = vmul.f32 %v987, 1.442695
          %v991 = vpow.pop %v990
          %993 = vset.pattern.permute.xlu0 0
          %994 = vperm.xlu0 %993, %v989
          %v995 = vpop.permute.xlu0 %994
          %998 = vset.pattern.permute.xlu0 0
          %999 = vperm.xlu0 %998, %v991
          %v1000 = vpop.permute.xlu0 %999
          %v1002 = vmul.f32 %v980, %v995
          %v1003 = vmul.f32 %v982, %v1000
          %1004 = vst [vmem:[%s983 + $0x8] sm:$0xff] %v1002
          %1005 = vst [vmem:[%s983 + $0x20] sm:$0xff] %v1003
          %v1006 = vmul.f32 %v1002, %v995
          %v1007 = vmul.f32 %v1003, %v1000
          %1008 = vst [vmem:[%s983 + $0x10] sm:$0xff] %v1006
          %1009 = vst [vmem:[%s983 + $0x28] sm:$0xff] %v1007
          %s1010 = scalar_lea.vmem %s626, 112 [#allocation3]
          %v1011 = vld [vmem:[%s1010] sm:$0xff]
          %v1012 = vld [vmem:[%s1010 + $0x8] sm:$0xff]
          %1014 = vset.pattern.permute.xlu0 0
          %1015 = vperm.xlu0 %1014, %v1011
          %v1016 = vpop.permute.xlu0 %1015
          %1019 = vset.pattern.permute.xlu0 0
          %1020 = vperm.xlu0 %1019, %v1012
          %v1021 = vpop.permute.xlu0 %1020
          %v1023 = vmul.f32 %v1016, %v689
          %v1024 = vmul.f32 %v1021, %v689
          %v1025 = vmul.f32 %v1023, 1.442695
          %v1026 = vpow.pop %v1025
          %v1027 = vmul.f32 %v1024, 1.442695
          %v1028 = vpow.pop %v1027
          %s1029 = scalar_lea.vmem [#allocation2], 336
          %1030 = vst [vmem:[%s1029] sm:$0xff] %v1026
          %1031 = vst [vmem:[%s1029 + $0x18] sm:$0xff] %v1028
          %v1032 = vmul.f32 %v1011, 128.0
          %v1033 = vmul.f32 %v1012, 128.0
          %v1034 = vmul.f32 %v1032, 1.442695
          %v1035 = vpow.pop %v1034
          %v1036 = vmul.f32 %v1033, 1.442695
          %v1037 = vpow.pop %v1036
          %1039 = vset.pattern.permute.xlu0 0
          %1040 = vperm.xlu0 %1039, %v1035
          %v1041 = vpop.permute.xlu0 %1040
          %1044 = vset.pattern.permute.xlu0 0
          %1045 = vperm.xlu0 %1044, %v1037
          %v1046 = vpop.permute.xlu0 %1045
          %v1048 = vmul.f32 %v1026, %v1041
          %v1049 = vmul.f32 %v1028, %v1046
          %1050 = vst [vmem:[%s1029 + $0x8] sm:$0xff] %v1048
          %1051 = vst [vmem:[%s1029 + $0x20] sm:$0xff] %v1049
          %v1052 = vmul.f32 %v1048, %v1041
          %v1053 = vmul.f32 %v1049, %v1046
          %1054 = vst [vmem:[%s1029 + $0x10] sm:$0xff] %v1052
          %1055 = vst [vmem:[%s1029 + $0x28] sm:$0xff] %v1053
        $region150: #{tpu_custom_call.1} parent=133 // pred_fallthru
          _
        %s1056 = smul.u32 %s27, 384
        %s1057 = scvt.s32.f32 %s1056
        %v1058 = vld [vmem:[%s626] sm:$0xff]
        %v1059 = vld [vmem:[%s626 + $0x8] sm:$0xff]
        %v1060 = vld [vmem:[%s626 + $0x10] sm:$0xff]
        %v1061 = vld [vmem:[%s626 + $0x18] sm:$0xff]
        %v1062 = vld [vmem:[%s626 + $0x20] sm:$0xff]
        %v1063 = vld [vmem:[%s626 + $0x28] sm:$0xff]
        %v1064 = vld [vmem:[%s626 + $0x30] sm:$0xff]
        %v1065 = vld [vmem:[%s626 + $0x38] sm:$0xff]
        %v1066 = vld [vmem:[%s626 + $0x40] sm:$0xff]
        %v1067 = vld [vmem:[%s626 + $0x48] sm:$0xff]
        %v1068 = vld [vmem:[%s626 + $0x50] sm:$0xff]
        %v1069 = vld [vmem:[%s626 + $0x58] sm:$0xff]
        %v1070 = vld [vmem:[%s626 + $0x60] sm:$0xff]
        %v1071 = vld [vmem:[%s626 + $0x68] sm:$0xff]
        %v1072 = vld [vmem:[%s626 + $0x70] sm:$0xff]
        %v1073 = vld [vmem:[%s626 + $0x78] sm:$0xff]
        %v1074 = vstv %s1057
        %v1075 = vmul.f32 %v1058, %v1074
        %v1076 = vmul.f32 %v1059, %v1074
        %v1077 = vmul.f32 %v1060, %v1074
        %v1078 = vmul.f32 %v1061, %v1074
        %v1079 = vmul.f32 %v1062, %v1074
        %v1080 = vmul.f32 %v1063, %v1074
        %v1081 = vmul.f32 %v1064, %v1074
        %v1082 = vmul.f32 %v1065, %v1074
        %v1083 = vmul.f32 %v1066, %v1074
        %v1084 = vmul.f32 %v1067, %v1074
        %v1085 = vmul.f32 %v1068, %v1074
        %v1086 = vmul.f32 %v1069, %v1074
        %v1087 = vmul.f32 %v1070, %v1074
        %v1088 = vmul.f32 %v1071, %v1074
        %v1089 = vmul.f32 %v1072, %v1074
        %v1090 = vmul.f32 %v1073, %v1074
        %v1091 = vmul.f32 %v1075, 1.442695
        %v1092 = vpow.pop %v1091
        %v1093 = vmul.f32 %v1076, 1.442695
        %v1094 = vpow.pop %v1093
        %v1095 = vmul.f32 %v1077, 1.442695
        %v1096 = vpow.pop %v1095
        %v1097 = vmul.f32 %v1078, 1.442695
        %v1098 = vpow.pop %v1097
        %v1099 = vmul.f32 %v1079, 1.442695
        %v1100 = vpow.pop %v1099
        %v1101 = vmul.f32 %v1080, 1.442695
        %v1102 = vpow.pop %v1101
        %v1103 = vmul.f32 %v1081, 1.442695
        %v1104 = vpow.pop %v1103
        %v1105 = vmul.f32 %v1082, 1.442695
        %v1106 = vpow.pop %v1105
        %v1107 = vmul.f32 %v1083, 1.442695
        %v1108 = vpow.pop %v1107
        %v1109 = vmul.f32 %v1084, 1.442695
        %v1110 = vpow.pop %v1109
        %v1111 = vmul.f32 %v1085, 1.442695
        %v1112 = vpow.pop %v1111
        %v1113 = vmul.f32 %v1086, 1.442695
        %v1114 = vpow.pop %v1113
        %v1115 = vmul.f32 %v1087, 1.442695
        %v1116 = vpow.pop %v1115
        %v1117 = vmul.f32 %v1088, 1.442695
        %v1118 = vpow.pop %v1117
        %v1119 = vmul.f32 %v1089, 1.442695
        %v1120 = vpow.pop %v1119
        %v1121 = vmul.f32 %v1090, 1.442695
        %v1122 = vpow.pop %v1121
        %v1123 = vld [vmem:[%s633] sm:$0xff]
        %v1124 = vld [vmem:[%s633 + $0x8] sm:$0xff]
        %s1125 = scalar_lea.vmem %s633, 16 [#allocation4]
        %v1126 = vld [vmem:[%s1125] sm:$0xff]
        %v1127 = vld [vmem:[%s1125 + $0x8] sm:$0xff]
        %s1128 = scalar_lea.vmem %s633, 32 [#allocation4]
        %v1129 = vld [vmem:[%s1128] sm:$0xff]
        %v1130 = vld [vmem:[%s1128 + $0x8] sm:$0xff]
        %s1131 = scalar_lea.vmem %s633, 48 [#allocation4]
        %v1132 = vld [vmem:[%s1131] sm:$0xff]
        %v1133 = vld [vmem:[%s1131 + $0x8] sm:$0xff]
        %s1134 = scalar_lea.vmem %s633, 64 [#allocation4]
        %v1135 = vld [vmem:[%s1134] sm:$0xff]
        %v1136 = vld [vmem:[%s1134 + $0x8] sm:$0xff]
        %s1137 = scalar_lea.vmem %s633, 80 [#allocation4]
        %v1138 = vld [vmem:[%s1137] sm:$0xff]
        %v1139 = vld [vmem:[%s1137 + $0x8] sm:$0xff]
        %s1140 = scalar_lea.vmem %s633, 96 [#allocation4]
        %v1141 = vld [vmem:[%s1140] sm:$0xff]
        %v1142 = vld [vmem:[%s1140 + $0x8] sm:$0xff]
        %s1143 = scalar_lea.vmem %s633, 112 [#allocation4]
        %v1144 = vld [vmem:[%s1143] sm:$0xff]
        %v1145 = vld [vmem:[%s1143 + $0x8] sm:$0xff]
        %v1146 = vmul.f32 %v1123, %v1092
        %v1147 = vmul.f32 %v1124, %v1094
        %v1148 = vld [vmem:[#allocation2] sm:$0xff]
        %v1149 = vld [vmem:[#allocation2 + $0x8] sm:$0xff]
        %v1150 = vld [vmem:[#allocation2 + $0x10] sm:$0xff]
        %v1151 = vld [vmem:[#allocation2 + $0x18] sm:$0xff]
        %v1152 = vld [vmem:[#allocation2 + $0x20] sm:$0xff]
        %v1153 = vld [vmem:[#allocation2 + $0x28] sm:$0xff]
        %1155 = vset.pattern.permute.xlu0 0
        %1156 = vperm.xlu0 %1155, %v1146
        %v1157 = vpop.permute.xlu0 %1156
        %1160 = vset.pattern.permute.xlu0 0
        %1161 = vperm.xlu0 %1160, %v1147
        %v1162 = vpop.permute.xlu0 %1161
        %v1164 = vmul.f32 %v1157, %v1148
        %v1165 = vmul.f32 %v1157, %v1149
        %v1166 = vmul.f32 %v1157, %v1150
        %v1167 = vmul.f32 %v1162, %v1151
        %v1168 = vmul.f32 %v1162, %v1152
        %v1169 = vmul.f32 %v1162, %v1153
        %v1170 = vmul.f32 %v1126, %v1096
        %v1171 = vmul.f32 %v1127, %v1098
        %s1172 = scalar_lea.vmem [#allocation2], 48
        %v1173 = vld [vmem:[%s1172] sm:$0xff]
        %v1174 = vld [vmem:[%s1172 + $0x8] sm:$0xff]
        %v1175 = vld [vmem:[%s1172 + $0x10] sm:$0xff]
        %v1176 = vld [vmem:[%s1172 + $0x18] sm:$0xff]
        %v1177 = vld [vmem:[%s1172 + $0x20] sm:$0xff]
        %v1178 = vld [vmem:[%s1172 + $0x28] sm:$0xff]
        %1180 = vset.pattern.permute.xlu0 0
        %1181 = vperm.xlu0 %1180, %v1170
        %v1182 = vpop.permute.xlu0 %1181
        %1185 = vset.pattern.permute.xlu0 0
        %1186 = vperm.xlu0 %1185, %v1171
        %v1187 = vpop.permute.xlu0 %1186
        %v1189 = vmul.f32 %v1182, %v1173
        %v1190 = vmul.f32 %v1182, %v1174
        %v1191 = vmul.f32 %v1182, %v1175
        %v1192 = vmul.f32 %v1187, %v1176
        %v1193 = vmul.f32 %v1187, %v1177
        %v1194 = vmul.f32 %v1187, %v1178
        %v1195 = vadd.f32 %v1164, %v1189
        %v1196 = vadd.f32 %v1165, %v1190
        %v1197 = vadd.f32 %v1166, %v1191
        %v1198 = vadd.f32 %v1167, %v1192
        %v1199 = vadd.f32 %v1168, %v1193
        %v1200 = vadd.f32 %v1169, %v1194
        %v1201 = vmul.f32 %v1129, %v1100
        %v1202 = vmul.f32 %v1130, %v1102
        %s1203 = scalar_lea.vmem [#allocation2], 96
        %v1204 = vld [vmem:[%s1203] sm:$0xff]
        %v1205 = vld [vmem:[%s1203 + $0x8] sm:$0xff]
        %v1206 = vld [vmem:[%s1203 + $0x10] sm:$0xff]
        %v1207 = vld [vmem:[%s1203 + $0x18] sm:$0xff]
        %v1208 = vld [vmem:[%s1203 + $0x20] sm:$0xff]
        %v1209 = vld [vmem:[%s1203 + $0x28] sm:$0xff]
        %1211 = vset.pattern.permute.xlu0 0
        %1212 = vperm.xlu0 %1211, %v1201
        %v1213 = vpop.permute.xlu0 %1212
        %1216 = vset.pattern.permute.xlu0 0
        %1217 = vperm.xlu0 %1216, %v1202
        %v1218 = vpop.permute.xlu0 %1217
        %v1220 = vmul.f32 %v1213, %v1204
        %v1221 = vmul.f32 %v1213, %v1205
        %v1222 = vmul.f32 %v1213, %v1206
        %v1223 = vmul.f32 %v1218, %v1207
        %v1224 = vmul.f32 %v1218, %v1208
        %v1225 = vmul.f32 %v1218, %v1209
        %v1226 = vadd.f32 %v1195, %v1220
        %v1227 = vadd.f32 %v1196, %v1221
        %v1228 = vadd.f32 %v1197, %v1222
        %v1229 = vadd.f32 %v1198, %v1223
        %v1230 = vadd.f32 %v1199, %v1224
        %v1231 = vadd.f32 %v1200, %v1225
        %v1232 = vmul.f32 %v1132, %v1104
        %v1233 = vmul.f32 %v1133, %v1106
        %s1234 = scalar_lea.vmem [#allocation2], 144
        %v1235 = vld [vmem:[%s1234] sm:$0xff]
        %v1236 = vld [vmem:[%s1234 + $0x8] sm:$0xff]
        %v1237 = vld [vmem:[%s1234 + $0x10] sm:$0xff]
        %v1238 = vld [vmem:[%s1234 + $0x18] sm:$0xff]
        %v1239 = vld [vmem:[%s1234 + $0x20] sm:$0xff]
        %v1240 = vld [vmem:[%s1234 + $0x28] sm:$0xff]
        %1242 = vset.pattern.permute.xlu0 0
        %1243 = vperm.xlu0 %1242, %v1232
        %v1244 = vpop.permute.xlu0 %1243
        %1247 = vset.pattern.permute.xlu0 0
        %1248 = vperm.xlu0 %1247, %v1233
        %v1249 = vpop.permute.xlu0 %1248
        %v1251 = vmul.f32 %v1244, %v1235
        %v1252 = vmul.f32 %v1244, %v1236
        %v1253 = vmul.f32 %v1244, %v1237
        %v1254 = vmul.f32 %v1249, %v1238
        %v1255 = vmul.f32 %v1249, %v1239
        %v1256 = vmul.f32 %v1249, %v1240
        %v1257 = vadd.f32 %v1226, %v1251
        %v1258 = vadd.f32 %v1227, %v1252
        %v1259 = vadd.f32 %v1228, %v1253
        %v1260 = vadd.f32 %v1229, %v1254
        %v1261 = vadd.f32 %v1230, %v1255
        %v1262 = vadd.f32 %v1231, %v1256
        %v1263 = vmul.f32 %v1135, %v1108
        %v1264 = vmul.f32 %v1136, %v1110
        %s1265 = scalar_lea.vmem [#allocation2], 192
        %v1266 = vld [vmem:[%s1265] sm:$0xff]
        %v1267 = vld [vmem:[%s1265 + $0x8] sm:$0xff]
        %v1268 = vld [vmem:[%s1265 + $0x10] sm:$0xff]
        %v1269 = vld [vmem:[%s1265 + $0x18] sm:$0xff]
        %v1270 = vld [vmem:[%s1265 + $0x20] sm:$0xff]
        %v1271 = vld [vmem:[%s1265 + $0x28] sm:$0xff]
        %1273 = vset.pattern.permute.xlu0 0
        %1274 = vperm.xlu0 %1273, %v1263
        %v1275 = vpop.permute.xlu0 %1274
        %1278 = vset.pattern.permute.xlu0 0
        %1279 = vperm.xlu0 %1278, %v1264
        %v1280 = vpop.permute.xlu0 %1279
        %v1282 = vmul.f32 %v1275, %v1266
        %v1283 = vmul.f32 %v1275, %v1267
        %v1284 = vmul.f32 %v1275, %v1268
        %v1285 = vmul.f32 %v1280, %v1269
        %v1286 = vmul.f32 %v1280, %v1270
        %v1287 = vmul.f32 %v1280, %v1271
        %v1288 = vadd.f32 %v1257, %v1282
        %v1289 = vadd.f32 %v1258, %v1283
        %v1290 = vadd.f32 %v1259, %v1284
        %v1291 = vadd.f32 %v1260, %v1285
        %v1292 = vadd.f32 %v1261, %v1286
        %v1293 = vadd.f32 %v1262, %v1287
        %v1294 = vmul.f32 %v1138, %v1112
        %v1295 = vmul.f32 %v1139, %v1114
        %s1296 = scalar_lea.vmem [#allocation2], 240
        %v1297 = vld [vmem:[%s1296] sm:$0xff]
        %v1298 = vld [vmem:[%s1296 + $0x8] sm:$0xff]
        %v1299 = vld [vmem:[%s1296 + $0x10] sm:$0xff]
        %v1300 = vld [vmem:[%s1296 + $0x18] sm:$0xff]
        %v1301 = vld [vmem:[%s1296 + $0x20] sm:$0xff]
        %v1302 = vld [vmem:[%s1296 + $0x28] sm:$0xff]
        %1304 = vset.pattern.permute.xlu0 0
        %1305 = vperm.xlu0 %1304, %v1294
        %v1306 = vpop.permute.xlu0 %1305
        %1309 = vset.pattern.permute.xlu0 0
        %1310 = vperm.xlu0 %1309, %v1295
        %v1311 = vpop.permute.xlu0 %1310
        %v1313 = vmul.f32 %v1306, %v1297
        %v1314 = vmul.f32 %v1306, %v1298
        %v1315 = vmul.f32 %v1306, %v1299
        %v1316 = vmul.f32 %v1311, %v1300
        %v1317 = vmul.f32 %v1311, %v1301
        %v1318 = vmul.f32 %v1311, %v1302
        %v1319 = vadd.f32 %v1288, %v1313
        %v1320 = vadd.f32 %v1289, %v1314
        %v1321 = vadd.f32 %v1290, %v1315
        %v1322 = vadd.f32 %v1291, %v1316
        %v1323 = vadd.f32 %v1292, %v1317
        %v1324 = vadd.f32 %v1293, %v1318
        %v1325 = vmul.f32 %v1141, %v1116
        %v1326 = vmul.f32 %v1142, %v1118
        %s1327 = scalar_lea.vmem [#allocation2], 288
        %v1328 = vld [vmem:[%s1327] sm:$0xff]
        %v1329 = vld [vmem:[%s1327 + $0x8] sm:$0xff]
        %v1330 = vld [vmem:[%s1327 + $0x10] sm:$0xff]
        %v1331 = vld [vmem:[%s1327 + $0x18] sm:$0xff]
        %v1332 = vld [vmem:[%s1327 + $0x20] sm:$0xff]
        %v1333 = vld [vmem:[%s1327 + $0x28] sm:$0xff]
        %1335 = vset.pattern.permute.xlu0 0
        %1336 = vperm.xlu0 %1335, %v1325
        %v1337 = vpop.permute.xlu0 %1336
        %1340 = vset.pattern.permute.xlu0 0
        %1341 = vperm.xlu0 %1340, %v1326
        %v1342 = vpop.permute.xlu0 %1341
        %v1344 = vmul.f32 %v1337, %v1328
        %v1345 = vmul.f32 %v1337, %v1329
        %v1346 = vmul.f32 %v1337, %v1330
        %v1347 = vmul.f32 %v1342, %v1331
        %v1348 = vmul.f32 %v1342, %v1332
        %v1349 = vmul.f32 %v1342, %v1333
        %v1350 = vadd.f32 %v1319, %v1344
        %v1351 = vadd.f32 %v1320, %v1345
        %v1352 = vadd.f32 %v1321, %v1346
        %v1353 = vadd.f32 %v1322, %v1347
        %v1354 = vadd.f32 %v1323, %v1348
        %v1355 = vadd.f32 %v1324, %v1349
        %v1356 = vmul.f32 %v1144, %v1120
        %v1357 = vmul.f32 %v1145, %v1122
        %s1358 = scalar_lea.vmem [#allocation2], 336
        %v1359 = vld [vmem:[%s1358] sm:$0xff]
        %v1360 = vld [vmem:[%s1358 + $0x8] sm:$0xff]
        %v1361 = vld [vmem:[%s1358 + $0x10] sm:$0xff]
        %v1362 = vld [vmem:[%s1358 + $0x18] sm:$0xff]
        %v1363 = vld [vmem:[%s1358 + $0x20] sm:$0xff]
        %v1364 = vld [vmem:[%s1358 + $0x28] sm:$0xff]
        %1366 = vset.pattern.permute.xlu0 0
        %1367 = vperm.xlu0 %1366, %v1356
        %v1368 = vpop.permute.xlu0 %1367
        %1371 = vset.pattern.permute.xlu0 0
        %1372 = vperm.xlu0 %1371, %v1357
        %v1373 = vpop.permute.xlu0 %1372
        %v1375 = vmul.f32 %v1368, %v1359
        %v1376 = vmul.f32 %v1368, %v1360
        %v1377 = vmul.f32 %v1368, %v1361
        %v1378 = vmul.f32 %v1373, %v1362
        %v1379 = vmul.f32 %v1373, %v1363
        %v1380 = vmul.f32 %v1373, %v1364
        %v1381 = vadd.f32 %v1350, %v1375
        %v1382 = vadd.f32 %v1351, %v1376
        %v1383 = vadd.f32 %v1352, %v1377
        %v1384 = vadd.f32 %v1353, %v1378
        %v1385 = vadd.f32 %v1354, %v1379
        %v1386 = vadd.f32 %v1355, %v1380
        %1387 = vst [vmem:[%s668] sm:$0xff] %v1381
        %1388 = vst [vmem:[%s668 + $0x8] sm:$0xff] %v1382
        %1389 = vst [vmem:[%s668 + $0x10] sm:$0xff] %v1383
        %1390 = vst [vmem:[%s668 + $0x18] sm:$0xff] %v1384
        %1391 = vst [vmem:[%s668 + $0x20] sm:$0xff] %v1385
        %1392 = vst [vmem:[%s668 + $0x28] sm:$0xff] %v1386
        %s1393 = scalar_lea.vmem %s633, 128 [#allocation4]
        %v1394 = vld [vmem:[%s1393] sm:$0xff]
        %v1395 = vld [vmem:[%s1393 + $0x8] sm:$0xff]
        %s1396 = scalar_lea.vmem %s633, 144 [#allocation4]
        %v1397 = vld [vmem:[%s1396] sm:$0xff]
        %v1398 = vld [vmem:[%s1396 + $0x8] sm:$0xff]
        %s1399 = scalar_lea.vmem %s633, 160 [#allocation4]
        %v1400 = vld [vmem:[%s1399] sm:$0xff]
        %v1401 = vld [vmem:[%s1399 + $0x8] sm:$0xff]
        %s1402 = scalar_lea.vmem %s633, 176 [#allocation4]
        %v1403 = vld [vmem:[%s1402] sm:$0xff]
        %v1404 = vld [vmem:[%s1402 + $0x8] sm:$0xff]
        %s1405 = scalar_lea.vmem %s633, 192 [#allocation4]
        %v1406 = vld [vmem:[%s1405] sm:$0xff]
        %v1407 = vld [vmem:[%s1405 + $0x8] sm:$0xff]
        %s1408 = scalar_lea.vmem %s633, 208 [#allocation4]
        %v1409 = vld [vmem:[%s1408] sm:$0xff]
        %v1410 = vld [vmem:[%s1408 + $0x8] sm:$0xff]
        %s1411 = scalar_lea.vmem %s633, 224 [#allocation4]
        %v1412 = vld [vmem:[%s1411] sm:$0xff]
        %v1413 = vld [vmem:[%s1411 + $0x8] sm:$0xff]
        %s1414 = scalar_lea.vmem %s633, 240 [#allocation4]
        %v1415 = vld [vmem:[%s1414] sm:$0xff]
        %v1416 = vld [vmem:[%s1414 + $0x8] sm:$0xff]
        %v1417 = vmul.f32 %v1394, %v1092
        %v1418 = vmul.f32 %v1395, %v1094
        %v1419 = vld [vmem:[#allocation2] sm:$0xff]
        %v1420 = vld [vmem:[#allocation2 + $0x8] sm:$0xff]
        %v1421 = vld [vmem:[#allocation2 + $0x10] sm:$0xff]
        %v1422 = vld [vmem:[#allocation2 + $0x18] sm:$0xff]
        %v1423 = vld [vmem:[#allocation2 + $0x20] sm:$0xff]
        %v1424 = vld [vmem:[#allocation2 + $0x28] sm:$0xff]
        %1426 = vset.pattern.permute.xlu0 0
        %1427 = vperm.xlu0 %1426, %v1417
        %v1428 = vpop.permute.xlu0 %1427
        %1431 = vset.pattern.permute.xlu0 0
        %1432 = vperm.xlu0 %1431, %v1418
        %v1433 = vpop.permute.xlu0 %1432
        %v1435 = vmul.f32 %v1428, %v1419
        %v1436 = vmul.f32 %v1428, %v1420
        %v1437 = vmul.f32 %v1428, %v1421
        %v1438 = vmul.f32 %v1433, %v1422
        %v1439 = vmul.f32 %v1433, %v1423
        %v1440 = vmul.f32 %v1433, %v1424
        %v1441 = vmul.f32 %v1397, %v1096
        %v1442 = vmul.f32 %v1398, %v1098
        %v1443 = vld [vmem:[%s1172] sm:$0xff]
        %v1444 = vld [vmem:[%s1172 + $0x8] sm:$0xff]
        %v1445 = vld [vmem:[%s1172 + $0x10] sm:$0xff]
        %v1446 = vld [vmem:[%s1172 + $0x18] sm:$0xff]
        %v1447 = vld [vmem:[%s1172 + $0x20] sm:$0xff]
        %v1448 = vld [vmem:[%s1172 + $0x28] sm:$0xff]
        %1450 = vset.pattern.permute.xlu0 0
        %1451 = vperm.xlu0 %1450, %v1441
        %v1452 = vpop.permute.xlu0 %1451
        %1455 = vset.pattern.permute.xlu0 0
        %1456 = vperm.xlu0 %1455, %v1442
        %v1457 = vpop.permute.xlu0 %1456
        %v1459 = vmul.f32 %v1452, %v1443
        %v1460 = vmul.f32 %v1452, %v1444
        %v1461 = vmul.f32 %v1452, %v1445
        %v1462 = vmul.f32 %v1457, %v1446
        %v1463 = vmul.f32 %v1457, %v1447
        %v1464 = vmul.f32 %v1457, %v1448
        %v1465 = vadd.f32 %v1435, %v1459
        %v1466 = vadd.f32 %v1436, %v1460
        %v1467 = vadd.f32 %v1437, %v1461
        %v1468 = vadd.f32 %v1438, %v1462
        %v1469 = vadd.f32 %v1439, %v1463
        %v1470 = vadd.f32 %v1440, %v1464
        %v1471 = vmul.f32 %v1400, %v1100
        %v1472 = vmul.f32 %v1401, %v1102
        %v1473 = vld [vmem:[%s1203] sm:$0xff]
        %v1474 = vld [vmem:[%s1203 + $0x8] sm:$0xff]
        %v1475 = vld [vmem:[%s1203 + $0x10] sm:$0xff]
        %v1476 = vld [vmem:[%s1203 + $0x18] sm:$0xff]
        %v1477 = vld [vmem:[%s1203 + $0x20] sm:$0xff]
        %v1478 = vld [vmem:[%s1203 + $0x28] sm:$0xff]
        %1480 = vset.pattern.permute.xlu0 0
        %1481 = vperm.xlu0 %1480, %v1471
        %v1482 = vpop.permute.xlu0 %1481
        %1485 = vset.pattern.permute.xlu0 0
        %1486 = vperm.xlu0 %1485, %v1472
        %v1487 = vpop.permute.xlu0 %1486
        %v1489 = vmul.f32 %v1482, %v1473
        %v1490 = vmul.f32 %v1482, %v1474
        %v1491 = vmul.f32 %v1482, %v1475
        %v1492 = vmul.f32 %v1487, %v1476
        %v1493 = vmul.f32 %v1487, %v1477
        %v1494 = vmul.f32 %v1487, %v1478
        %v1495 = vadd.f32 %v1465, %v1489
        %v1496 = vadd.f32 %v1466, %v1490
        %v1497 = vadd.f32 %v1467, %v1491
        %v1498 = vadd.f32 %v1468, %v1492
        %v1499 = vadd.f32 %v1469, %v1493
        %v1500 = vadd.f32 %v1470, %v1494
        %v1501 = vmul.f32 %v1403, %v1104
        %v1502 = vmul.f32 %v1404, %v1106
        %v1503 = vld [vmem:[%s1234] sm:$0xff]
        %v1504 = vld [vmem:[%s1234 + $0x8] sm:$0xff]
        %v1505 = vld [vmem:[%s1234 + $0x10] sm:$0xff]
        %v1506 = vld [vmem:[%s1234 + $0x18] sm:$0xff]
        %v1507 = vld [vmem:[%s1234 + $0x20] sm:$0xff]
        %v1508 = vld [vmem:[%s1234 + $0x28] sm:$0xff]
        %1510 = vset.pattern.permute.xlu0 0
        %1511 = vperm.xlu0 %1510, %v1501
        %v1512 = vpop.permute.xlu0 %1511
        %1515 = vset.pattern.permute.xlu0 0
        %1516 = vperm.xlu0 %1515, %v1502
        %v1517 = vpop.permute.xlu0 %1516
        %v1519 = vmul.f32 %v1512, %v1503
        %v1520 = vmul.f32 %v1512, %v1504
        %v1521 = vmul.f32 %v1512, %v1505
        %v1522 = vmul.f32 %v1517, %v1506
        %v1523 = vmul.f32 %v1517, %v1507
        %v1524 = vmul.f32 %v1517, %v1508
        %v1525 = vadd.f32 %v1495, %v1519
        %v1526 = vadd.f32 %v1496, %v1520
        %v1527 = vadd.f32 %v1497, %v1521
        %v1528 = vadd.f32 %v1498, %v1522
        %v1529 = vadd.f32 %v1499, %v1523
        %v1530 = vadd.f32 %v1500, %v1524
        %v1531 = vmul.f32 %v1406, %v1108
        %v1532 = vmul.f32 %v1407, %v1110
        %v1533 = vld [vmem:[%s1265] sm:$0xff]
        %v1534 = vld [vmem:[%s1265 + $0x8] sm:$0xff]
        %v1535 = vld [vmem:[%s1265 + $0x10] sm:$0xff]
        %v1536 = vld [vmem:[%s1265 + $0x18] sm:$0xff]
        %v1537 = vld [vmem:[%s1265 + $0x20] sm:$0xff]
        %v1538 = vld [vmem:[%s1265 + $0x28] sm:$0xff]
        %1540 = vset.pattern.permute.xlu0 0
        %1541 = vperm.xlu0 %1540, %v1531
        %v1542 = vpop.permute.xlu0 %1541
        %1545 = vset.pattern.permute.xlu0 0
        %1546 = vperm.xlu0 %1545, %v1532
        %v1547 = vpop.permute.xlu0 %1546
        %v1549 = vmul.f32 %v1542, %v1533
        %v1550 = vmul.f32 %v1542, %v1534
        %v1551 = vmul.f32 %v1542, %v1535
        %v1552 = vmul.f32 %v1547, %v1536
        %v1553 = vmul.f32 %v1547, %v1537
        %v1554 = vmul.f32 %v1547, %v1538
        %v1555 = vadd.f32 %v1525, %v1549
        %v1556 = vadd.f32 %v1526, %v1550
        %v1557 = vadd.f32 %v1527, %v1551
        %v1558 = vadd.f32 %v1528, %v1552
        %v1559 = vadd.f32 %v1529, %v1553
        %v1560 = vadd.f32 %v1530, %v1554
        %v1561 = vmul.f32 %v1409, %v1112
        %v1562 = vmul.f32 %v1410, %v1114
        %v1563 = vld [vmem:[%s1296] sm:$0xff]
        %v1564 = vld [vmem:[%s1296 + $0x8] sm:$0xff]
        %v1565 = vld [vmem:[%s1296 + $0x10] sm:$0xff]
        %v1566 = vld [vmem:[%s1296 + $0x18] sm:$0xff]
        %v1567 = vld [vmem:[%s1296 + $0x20] sm:$0xff]
        %v1568 = vld [vmem:[%s1296 + $0x28] sm:$0xff]
        %1570 = vset.pattern.permute.xlu0 0
        %1571 = vperm.xlu0 %1570, %v1561
        %v1572 = vpop.permute.xlu0 %1571
        %1575 = vset.pattern.permute.xlu0 0
        %1576 = vperm.xlu0 %1575, %v1562
        %v1577 = vpop.permute.xlu0 %1576
        %v1579 = vmul.f32 %v1572, %v1563
        %v1580 = vmul.f32 %v1572, %v1564
        %v1581 = vmul.f32 %v1572, %v1565
        %v1582 = vmul.f32 %v1577, %v1566
        %v1583 = vmul.f32 %v1577, %v1567
        %v1584 = vmul.f32 %v1577, %v1568
        %v1585 = vadd.f32 %v1555, %v1579
        %v1586 = vadd.f32 %v1556, %v1580
        %v1587 = vadd.f32 %v1557, %v1581
        %v1588 = vadd.f32 %v1558, %v1582
        %v1589 = vadd.f32 %v1559, %v1583
        %v1590 = vadd.f32 %v1560, %v1584
        %v1591 = vmul.f32 %v1412, %v1116
        %v1592 = vmul.f32 %v1413, %v1118
        %v1593 = vld [vmem:[%s1327] sm:$0xff]
        %v1594 = vld [vmem:[%s1327 + $0x8] sm:$0xff]
        %v1595 = vld [vmem:[%s1327 + $0x10] sm:$0xff]
        %v1596 = vld [vmem:[%s1327 + $0x18] sm:$0xff]
        %v1597 = vld [vmem:[%s1327 + $0x20] sm:$0xff]
        %v1598 = vld [vmem:[%s1327 + $0x28] sm:$0xff]
        %1600 = vset.pattern.permute.xlu0 0
        %1601 = vperm.xlu0 %1600, %v1591
        %v1602 = vpop.permute.xlu0 %1601
        %1605 = vset.pattern.permute.xlu0 0
        %1606 = vperm.xlu0 %1605, %v1592
        %v1607 = vpop.permute.xlu0 %1606
        %v1609 = vmul.f32 %v1602, %v1593
        %v1610 = vmul.f32 %v1602, %v1594
        %v1611 = vmul.f32 %v1602, %v1595
        %v1612 = vmul.f32 %v1607, %v1596
        %v1613 = vmul.f32 %v1607, %v1597
        %v1614 = vmul.f32 %v1607, %v1598
        %v1615 = vadd.f32 %v1585, %v1609
        %v1616 = vadd.f32 %v1586, %v1610
        %v1617 = vadd.f32 %v1587, %v1611
        %v1618 = vadd.f32 %v1588, %v1612
        %v1619 = vadd.f32 %v1589, %v1613
        %v1620 = vadd.f32 %v1590, %v1614
        %v1621 = vmul.f32 %v1415, %v1120
        %v1622 = vmul.f32 %v1416, %v1122
        %v1623 = vld [vmem:[%s1358] sm:$0xff]
        %v1624 = vld [vmem:[%s1358 + $0x8] sm:$0xff]
        %v1625 = vld [vmem:[%s1358 + $0x10] sm:$0xff]
        %v1626 = vld [vmem:[%s1358 + $0x18] sm:$0xff]
        %v1627 = vld [vmem:[%s1358 + $0x20] sm:$0xff]
        %v1628 = vld [vmem:[%s1358 + $0x28] sm:$0xff]
        %1630 = vset.pattern.permute.xlu0 0
        %1631 = vperm.xlu0 %1630, %v1621
        %v1632 = vpop.permute.xlu0 %1631
        %1635 = vset.pattern.permute.xlu0 0
        %1636 = vperm.xlu0 %1635, %v1622
        %v1637 = vpop.permute.xlu0 %1636
        %v1639 = vmul.f32 %v1632, %v1623
        %v1640 = vmul.f32 %v1632, %v1624
        %v1641 = vmul.f32 %v1632, %v1625
        %v1642 = vmul.f32 %v1637, %v1626
        %v1643 = vmul.f32 %v1637, %v1627
        %v1644 = vmul.f32 %v1637, %v1628
        %v1645 = vadd.f32 %v1615, %v1639
        %v1646 = vadd.f32 %v1616, %v1640
        %v1647 = vadd.f32 %v1617, %v1641
        %v1648 = vadd.f32 %v1618, %v1642
        %v1649 = vadd.f32 %v1619, %v1643
        %v1650 = vadd.f32 %v1620, %v1644
        %s1651 = scalar_lea.vmem %s668, 48 [#allocation6]
        %1652 = vst [vmem:[%s1651] sm:$0xff] %v1645
        %1653 = vst [vmem:[%s1651 + $0x8] sm:$0xff] %v1646
        %1654 = vst [vmem:[%s1651 + $0x10] sm:$0xff] %v1647
        %1655 = vst [vmem:[%s1651 + $0x18] sm:$0xff] %v1648
        %1656 = vst [vmem:[%s1651 + $0x20] sm:$0xff] %v1649
        %1657 = vst [vmem:[%s1651 + $0x28] sm:$0xff] %v1650
        %v1658 = vld [vmem:[%s640] sm:$0xff]
        %v1659 = vld [vmem:[%s640 + $0x8] sm:$0xff]
        %s1660 = scalar_lea.vmem %s640, 16 [#allocation5]
        %v1661 = vld [vmem:[%s1660] sm:$0xff]
        %v1662 = vld [vmem:[%s1660 + $0x8] sm:$0xff]
        %s1663 = scalar_lea.vmem %s640, 32 [#allocation5]
        %v1664 = vld [vmem:[%s1663] sm:$0xff]
        %v1665 = vld [vmem:[%s1663 + $0x8] sm:$0xff]
        %s1666 = scalar_lea.vmem %s640, 48 [#allocation5]
        %v1667 = vld [vmem:[%s1666] sm:$0xff]
        %v1668 = vld [vmem:[%s1666 + $0x8] sm:$0xff]
        %s1669 = scalar_lea.vmem %s640, 64 [#allocation5]
        %v1670 = vld [vmem:[%s1669] sm:$0xff]
        %v1671 = vld [vmem:[%s1669 + $0x8] sm:$0xff]
        %s1672 = scalar_lea.vmem %s640, 80 [#allocation5]
        %v1673 = vld [vmem:[%s1672] sm:$0xff]
        %v1674 = vld [vmem:[%s1672 + $0x8] sm:$0xff]
        %s1675 = scalar_lea.vmem %s640, 96 [#allocation5]
        %v1676 = vld [vmem:[%s1675] sm:$0xff]
        %v1677 = vld [vmem:[%s1675 + $0x8] sm:$0xff]
        %s1678 = scalar_lea.vmem %s640, 112 [#allocation5]
        %v1679 = vld [vmem:[%s1678] sm:$0xff]
        %v1680 = vld [vmem:[%s1678 + $0x8] sm:$0xff]
        %v1681 = vmul.f32 %v1658, %v1092
        %v1682 = vmul.f32 %v1659, %v1094
        %v1683 = vld [vmem:[#allocation2] sm:$0xff]
        %v1684 = vld [vmem:[#allocation2 + $0x8] sm:$0xff]
        %v1685 = vld [vmem:[#allocation2 + $0x10] sm:$0xff]
        %v1686 = vld [vmem:[#allocation2 + $0x18] sm:$0xff]
        %v1687 = vld [vmem:[#allocation2 + $0x20] sm:$0xff]
        %v1688 = vld [vmem:[#allocation2 + $0x28] sm:$0xff]
        %1690 = vset.pattern.permute.xlu0 0
        %1691 = vperm.xlu0 %1690, %v1681
        %v1692 = vpop.permute.xlu0 %1691
        %1695 = vset.pattern.permute.xlu0 0
        %1696 = vperm.xlu0 %1695, %v1682
        %v1697 = vpop.permute.xlu0 %1696
        %v1699 = vmul.f32 %v1692, %v1683
        %v1700 = vmul.f32 %v1692, %v1684
        %v1701 = vmul.f32 %v1692, %v1685
        %v1702 = vmul.f32 %v1697, %v1686
        %v1703 = vmul.f32 %v1697, %v1687
        %v1704 = vmul.f32 %v1697, %v1688
        %v1705 = vmul.f32 %v1661, %v1096
        %v1706 = vmul.f32 %v1662, %v1098
        %v1707 = vld [vmem:[%s1172] sm:$0xff]
        %v1708 = vld [vmem:[%s1172 + $0x8] sm:$0xff]
        %v1709 = vld [vmem:[%s1172 + $0x10] sm:$0xff]
        %v1710 = vld [vmem:[%s1172 + $0x18] sm:$0xff]
        %v1711 = vld [vmem:[%s1172 + $0x20] sm:$0xff]
        %v1712 = vld [vmem:[%s1172 + $0x28] sm:$0xff]
        %1714 = vset.pattern.permute.xlu0 0
        %1715 = vperm.xlu0 %1714, %v1705
        %v1716 = vpop.permute.xlu0 %1715
        %1719 = vset.pattern.permute.xlu0 0
        %1720 = vperm.xlu0 %1719, %v1706
        %v1721 = vpop.permute.xlu0 %1720
        %v1723 = vmul.f32 %v1716, %v1707
        %v1724 = vmul.f32 %v1716, %v1708
        %v1725 = vmul.f32 %v1716, %v1709
        %v1726 = vmul.f32 %v1721, %v1710
        %v1727 = vmul.f32 %v1721, %v1711
        %v1728 = vmul.f32 %v1721, %v1712
        %v1729 = vadd.f32 %v1699, %v1723
        %v1730 = vadd.f32 %v1700, %v1724
        %v1731 = vadd.f32 %v1701, %v1725
        %v1732 = vadd.f32 %v1702, %v1726
        %v1733 = vadd.f32 %v1703, %v1727
        %v1734 = vadd.f32 %v1704, %v1728
        %v1735 = vmul.f32 %v1664, %v1100
        %v1736 = vmul.f32 %v1665, %v1102
        %v1737 = vld [vmem:[%s1203] sm:$0xff]
        %v1738 = vld [vmem:[%s1203 + $0x8] sm:$0xff]
        %v1739 = vld [vmem:[%s1203 + $0x10] sm:$0xff]
        %v1740 = vld [vmem:[%s1203 + $0x18] sm:$0xff]
        %v1741 = vld [vmem:[%s1203 + $0x20] sm:$0xff]
        %v1742 = vld [vmem:[%s1203 + $0x28] sm:$0xff]
        %1744 = vset.pattern.permute.xlu0 0
        %1745 = vperm.xlu0 %1744, %v1735
        %v1746 = vpop.permute.xlu0 %1745
        %1749 = vset.pattern.permute.xlu0 0
        %1750 = vperm.xlu0 %1749, %v1736
        %v1751 = vpop.permute.xlu0 %1750
        %v1753 = vmul.f32 %v1746, %v1737
        %v1754 = vmul.f32 %v1746, %v1738
        %v1755 = vmul.f32 %v1746, %v1739
        %v1756 = vmul.f32 %v1751, %v1740
        %v1757 = vmul.f32 %v1751, %v1741
        %v1758 = vmul.f32 %v1751, %v1742
        %v1759 = vadd.f32 %v1729, %v1753
        %v1760 = vadd.f32 %v1730, %v1754
        %v1761 = vadd.f32 %v1731, %v1755
        %v1762 = vadd.f32 %v1732, %v1756
        %v1763 = vadd.f32 %v1733, %v1757
        %v1764 = vadd.f32 %v1734, %v1758
        %v1765 = vmul.f32 %v1667, %v1104
        %v1766 = vmul.f32 %v1668, %v1106
        %v1767 = vld [vmem:[%s1234] sm:$0xff]
        %v1768 = vld [vmem:[%s1234 + $0x8] sm:$0xff]
        %v1769 = vld [vmem:[%s1234 + $0x10] sm:$0xff]
        %v1770 = vld [vmem:[%s1234 + $0x18] sm:$0xff]
        %v1771 = vld [vmem:[%s1234 + $0x20] sm:$0xff]
        %v1772 = vld [vmem:[%s1234 + $0x28] sm:$0xff]
        %1774 = vset.pattern.permute.xlu0 0
        %1775 = vperm.xlu0 %1774, %v1765
        %v1776 = vpop.permute.xlu0 %1775
        %1779 = vset.pattern.permute.xlu0 0
        %1780 = vperm.xlu0 %1779, %v1766
        %v1781 = vpop.permute.xlu0 %1780
        %v1783 = vmul.f32 %v1776, %v1767
        %v1784 = vmul.f32 %v1776, %v1768
        %v1785 = vmul.f32 %v1776, %v1769
        %v1786 = vmul.f32 %v1781, %v1770
        %v1787 = vmul.f32 %v1781, %v1771
        %v1788 = vmul.f32 %v1781, %v1772
        %v1789 = vadd.f32 %v1759, %v1783
        %v1790 = vadd.f32 %v1760, %v1784
        %v1791 = vadd.f32 %v1761, %v1785
        %v1792 = vadd.f32 %v1762, %v1786
        %v1793 = vadd.f32 %v1763, %v1787
        %v1794 = vadd.f32 %v1764, %v1788
        %v1795 = vmul.f32 %v1670, %v1108
        %v1796 = vmul.f32 %v1671, %v1110
        %v1797 = vld [vmem:[%s1265] sm:$0xff]
        %v1798 = vld [vmem:[%s1265 + $0x8] sm:$0xff]
        %v1799 = vld [vmem:[%s1265 + $0x10] sm:$0xff]
        %v1800 = vld [vmem:[%s1265 + $0x18] sm:$0xff]
        %v1801 = vld [vmem:[%s1265 + $0x20] sm:$0xff]
        %v1802 = vld [vmem:[%s1265 + $0x28] sm:$0xff]
        %1804 = vset.pattern.permute.xlu0 0
        %1805 = vperm.xlu0 %1804, %v1795
        %v1806 = vpop.permute.xlu0 %1805
        %1809 = vset.pattern.permute.xlu0 0
        %1810 = vperm.xlu0 %1809, %v1796
        %v1811 = vpop.permute.xlu0 %1810
        %v1813 = vmul.f32 %v1806, %v1797
        %v1814 = vmul.f32 %v1806, %v1798
        %v1815 = vmul.f32 %v1806, %v1799
        %v1816 = vmul.f32 %v1811, %v1800
        %v1817 = vmul.f32 %v1811, %v1801
        %v1818 = vmul.f32 %v1811, %v1802
        %v1819 = vadd.f32 %v1789, %v1813
        %v1820 = vadd.f32 %v1790, %v1814
        %v1821 = vadd.f32 %v1791, %v1815
        %v1822 = vadd.f32 %v1792, %v1816
        %v1823 = vadd.f32 %v1793, %v1817
        %v1824 = vadd.f32 %v1794, %v1818
        %v1825 = vmul.f32 %v1673, %v1112
        %v1826 = vmul.f32 %v1674, %v1114
        %v1827 = vld [vmem:[%s1296] sm:$0xff]
        %v1828 = vld [vmem:[%s1296 + $0x8] sm:$0xff]
        %v1829 = vld [vmem:[%s1296 + $0x10] sm:$0xff]
        %v1830 = vld [vmem:[%s1296 + $0x18] sm:$0xff]
        %v1831 = vld [vmem:[%s1296 + $0x20] sm:$0xff]
        %v1832 = vld [vmem:[%s1296 + $0x28] sm:$0xff]
        %1834 = vset.pattern.permute.xlu0 0
        %1835 = vperm.xlu0 %1834, %v1825
        %v1836 = vpop.permute.xlu0 %1835
        %1839 = vset.pattern.permute.xlu0 0
        %1840 = vperm.xlu0 %1839, %v1826
        %v1841 = vpop.permute.xlu0 %1840
        %v1843 = vmul.f32 %v1836, %v1827
        %v1844 = vmul.f32 %v1836, %v1828
        %v1845 = vmul.f32 %v1836, %v1829
        %v1846 = vmul.f32 %v1841, %v1830
        %v1847 = vmul.f32 %v1841, %v1831
        %v1848 = vmul.f32 %v1841, %v1832
        %v1849 = vadd.f32 %v1819, %v1843
        %v1850 = vadd.f32 %v1820, %v1844
        %v1851 = vadd.f32 %v1821, %v1845
        %v1852 = vadd.f32 %v1822, %v1846
        %v1853 = vadd.f32 %v1823, %v1847
        %v1854 = vadd.f32 %v1824, %v1848
        %v1855 = vmul.f32 %v1676, %v1116
        %v1856 = vmul.f32 %v1677, %v1118
        %v1857 = vld [vmem:[%s1327] sm:$0xff]
        %v1858 = vld [vmem:[%s1327 + $0x8] sm:$0xff]
        %v1859 = vld [vmem:[%s1327 + $0x10] sm:$0xff]
        %v1860 = vld [vmem:[%s1327 + $0x18] sm:$0xff]
        %v1861 = vld [vmem:[%s1327 + $0x20] sm:$0xff]
        %v1862 = vld [vmem:[%s1327 + $0x28] sm:$0xff]
        %1864 = vset.pattern.permute.xlu0 0
        %1865 = vperm.xlu0 %1864, %v1855
        %v1866 = vpop.permute.xlu0 %1865
        %1869 = vset.pattern.permute.xlu0 0
        %1870 = vperm.xlu0 %1869, %v1856
        %v1871 = vpop.permute.xlu0 %1870
        %v1873 = vmul.f32 %v1866, %v1857
        %v1874 = vmul.f32 %v1866, %v1858
        %v1875 = vmul.f32 %v1866, %v1859
        %v1876 = vmul.f32 %v1871, %v1860
        %v1877 = vmul.f32 %v1871, %v1861
        %v1878 = vmul.f32 %v1871, %v1862
        %v1879 = vadd.f32 %v1849, %v1873
        %v1880 = vadd.f32 %v1850, %v1874
        %v1881 = vadd.f32 %v1851, %v1875
        %v1882 = vadd.f32 %v1852, %v1876
        %v1883 = vadd.f32 %v1853, %v1877
        %v1884 = vadd.f32 %v1854, %v1878
        %v1885 = vmul.f32 %v1679, %v1120
        %v1886 = vmul.f32 %v1680, %v1122
        %v1887 = vld [vmem:[%s1358] sm:$0xff]
        %v1888 = vld [vmem:[%s1358 + $0x8] sm:$0xff]
        %v1889 = vld [vmem:[%s1358 + $0x10] sm:$0xff]
        %v1890 = vld [vmem:[%s1358 + $0x18] sm:$0xff]
        %v1891 = vld [vmem:[%s1358 + $0x20] sm:$0xff]
        %v1892 = vld [vmem:[%s1358 + $0x28] sm:$0xff]
        %1894 = vset.pattern.permute.xlu0 0
        %1895 = vperm.xlu0 %1894, %v1885
        %v1896 = vpop.permute.xlu0 %1895
        %1899 = vset.pattern.permute.xlu0 0
        %1900 = vperm.xlu0 %1899, %v1886
        %v1901 = vpop.permute.xlu0 %1900
        %v1903 = vmul.f32 %v1896, %v1887
        %v1904 = vmul.f32 %v1896, %v1888
        %v1905 = vmul.f32 %v1896, %v1889
        %v1906 = vmul.f32 %v1901, %v1890
        %v1907 = vmul.f32 %v1901, %v1891
        %v1908 = vmul.f32 %v1901, %v1892
        %v1909 = vadd.f32 %v1879, %v1903
        %v1910 = vadd.f32 %v1880, %v1904
        %v1911 = vadd.f32 %v1881, %v1905
        %v1912 = vadd.f32 %v1882, %v1906
        %v1913 = vadd.f32 %v1883, %v1907
        %v1914 = vadd.f32 %v1884, %v1908
        %1915 = vst [vmem:[%s675] sm:$0xff] %v1909
        %1916 = vst [vmem:[%s675 + $0x8] sm:$0xff] %v1910
        %1917 = vst [vmem:[%s675 + $0x10] sm:$0xff] %v1911
        %1918 = vst [vmem:[%s675 + $0x18] sm:$0xff] %v1912
        %1919 = vst [vmem:[%s675 + $0x20] sm:$0xff] %v1913
        %1920 = vst [vmem:[%s675 + $0x28] sm:$0xff] %v1914
        %s1921 = scalar_lea.vmem %s640, 128 [#allocation5]
        %v1922 = vld [vmem:[%s1921] sm:$0xff]
        %v1923 = vld [vmem:[%s1921 + $0x8] sm:$0xff]
        %s1924 = scalar_lea.vmem %s640, 144 [#allocation5]
        %v1925 = vld [vmem:[%s1924] sm:$0xff]
        %v1926 = vld [vmem:[%s1924 + $0x8] sm:$0xff]
        %s1927 = scalar_lea.vmem %s640, 160 [#allocation5]
        %v1928 = vld [vmem:[%s1927] sm:$0xff]
        %v1929 = vld [vmem:[%s1927 + $0x8] sm:$0xff]
        %s1930 = scalar_lea.vmem %s640, 176 [#allocation5]
        %v1931 = vld [vmem:[%s1930] sm:$0xff]
        %v1932 = vld [vmem:[%s1930 + $0x8] sm:$0xff]
        %s1933 = scalar_lea.vmem %s640, 192 [#allocation5]
        %v1934 = vld [vmem:[%s1933] sm:$0xff]
        %v1935 = vld [vmem:[%s1933 + $0x8] sm:$0xff]
        %s1936 = scalar_lea.vmem %s640, 208 [#allocation5]
        %v1937 = vld [vmem:[%s1936] sm:$0xff]
        %v1938 = vld [vmem:[%s1936 + $0x8] sm:$0xff]
        %s1939 = scalar_lea.vmem %s640, 224 [#allocation5]
        %v1940 = vld [vmem:[%s1939] sm:$0xff]
        %v1941 = vld [vmem:[%s1939 + $0x8] sm:$0xff]
        %s1942 = scalar_lea.vmem %s640, 240 [#allocation5]
        %v1943 = vld [vmem:[%s1942] sm:$0xff]
        %v1944 = vld [vmem:[%s1942 + $0x8] sm:$0xff]
        %v1945 = vmul.f32 %v1922, %v1092
        %v1946 = vmul.f32 %v1923, %v1094
        %v1947 = vld [vmem:[#allocation2] sm:$0xff]
        %v1948 = vld [vmem:[#allocation2 + $0x8] sm:$0xff]
        %v1949 = vld [vmem:[#allocation2 + $0x10] sm:$0xff]
        %v1950 = vld [vmem:[#allocation2 + $0x18] sm:$0xff]
        %v1951 = vld [vmem:[#allocation2 + $0x20] sm:$0xff]
        %v1952 = vld [vmem:[#allocation2 + $0x28] sm:$0xff]
        %1954 = vset.pattern.permute.xlu0 0
        %1955 = vperm.xlu0 %1954, %v1945
        %v1956 = vpop.permute.xlu0 %1955
        %1959 = vset.pattern.permute.xlu0 0
        %1960 = vperm.xlu0 %1959, %v1946
        %v1961 = vpop.permute.xlu0 %1960
        %v1963 = vmul.f32 %v1956, %v1947
        %v1964 = vmul.f32 %v1956, %v1948
        %v1965 = vmul.f32 %v1956, %v1949
        %v1966 = vmul.f32 %v1961, %v1950
        %v1967 = vmul.f32 %v1961, %v1951
        %v1968 = vmul.f32 %v1961, %v1952
        %v1969 = vmul.f32 %v1925, %v1096
        %v1970 = vmul.f32 %v1926, %v1098
        %v1971 = vld [vmem:[%s1172] sm:$0xff]
        %v1972 = vld [vmem:[%s1172 + $0x8] sm:$0xff]
        %v1973 = vld [vmem:[%s1172 + $0x10] sm:$0xff]
        %v1974 = vld [vmem:[%s1172 + $0x18] sm:$0xff]
        %v1975 = vld [vmem:[%s1172 + $0x20] sm:$0xff]
        %v1976 = vld [vmem:[%s1172 + $0x28] sm:$0xff]
        %1978 = vset.pattern.permute.xlu0 0
        %1979 = vperm.xlu0 %1978, %v1969
        %v1980 = vpop.permute.xlu0 %1979
        %1983 = vset.pattern.permute.xlu0 0
        %1984 = vperm.xlu0 %1983, %v1970
        %v1985 = vpop.permute.xlu0 %1984
        %v1987 = vmul.f32 %v1980, %v1971
        %v1988 = vmul.f32 %v1980, %v1972
        %v1989 = vmul.f32 %v1980, %v1973
        %v1990 = vmul.f32 %v1985, %v1974
        %v1991 = vmul.f32 %v1985, %v1975
        %v1992 = vmul.f32 %v1985, %v1976
        %v1993 = vadd.f32 %v1963, %v1987
        %v1994 = vadd.f32 %v1964, %v1988
        %v1995 = vadd.f32 %v1965, %v1989
        %v1996 = vadd.f32 %v1966, %v1990
        %v1997 = vadd.f32 %v1967, %v1991
        %v1998 = vadd.f32 %v1968, %v1992
        %v1999 = vmul.f32 %v1928, %v1100
        %v2000 = vmul.f32 %v1929, %v1102
        %v2001 = vld [vmem:[%s1203] sm:$0xff]
        %v2002 = vld [vmem:[%s1203 + $0x8] sm:$0xff]
        %v2003 = vld [vmem:[%s1203 + $0x10] sm:$0xff]
        %v2004 = vld [vmem:[%s1203 + $0x18] sm:$0xff]
        %v2005 = vld [vmem:[%s1203 + $0x20] sm:$0xff]
        %v2006 = vld [vmem:[%s1203 + $0x28] sm:$0xff]
        %2008 = vset.pattern.permute.xlu0 0
        %2009 = vperm.xlu0 %2008, %v1999
        %v2010 = vpop.permute.xlu0 %2009
        %2013 = vset.pattern.permute.xlu0 0
        %2014 = vperm.xlu0 %2013, %v2000
        %v2015 = vpop.permute.xlu0 %2014
        %v2017 = vmul.f32 %v2010, %v2001
        %v2018 = vmul.f32 %v2010, %v2002
        %v2019 = vmul.f32 %v2010, %v2003
        %v2020 = vmul.f32 %v2015, %v2004
        %v2021 = vmul.f32 %v2015, %v2005
        %v2022 = vmul.f32 %v2015, %v2006
        %v2023 = vadd.f32 %v1993, %v2017
        %v2024 = vadd.f32 %v1994, %v2018
        %v2025 = vadd.f32 %v1995, %v2019
        %v2026 = vadd.f32 %v1996, %v2020
        %v2027 = vadd.f32 %v1997, %v2021
        %v2028 = vadd.f32 %v1998, %v2022
        %v2029 = vmul.f32 %v1931, %v1104
        %v2030 = vmul.f32 %v1932, %v1106
        %v2031 = vld [vmem:[%s1234] sm:$0xff]
        %v2032 = vld [vmem:[%s1234 + $0x8] sm:$0xff]
        %v2033 = vld [vmem:[%s1234 + $0x10] sm:$0xff]
        %v2034 = vld [vmem:[%s1234 + $0x18] sm:$0xff]
        %v2035 = vld [vmem:[%s1234 + $0x20] sm:$0xff]
        %v2036 = vld [vmem:[%s1234 + $0x28] sm:$0xff]
        %2038 = vset.pattern.permute.xlu0 0
        %2039 = vperm.xlu0 %2038, %v2029
        %v2040 = vpop.permute.xlu0 %2039
        %2043 = vset.pattern.permute.xlu0 0
        %2044 = vperm.xlu0 %2043, %v2030
        %v2045 = vpop.permute.xlu0 %2044
        %v2047 = vmul.f32 %v2040, %v2031
        %v2048 = vmul.f32 %v2040, %v2032
        %v2049 = vmul.f32 %v2040, %v2033
        %v2050 = vmul.f32 %v2045, %v2034
        %v2051 = vmul.f32 %v2045, %v2035
        %v2052 = vmul.f32 %v2045, %v2036
        %v2053 = vadd.f32 %v2023, %v2047
        %v2054 = vadd.f32 %v2024, %v2048
        %v2055 = vadd.f32 %v2025, %v2049
        %v2056 = vadd.f32 %v2026, %v2050
        %v2057 = vadd.f32 %v2027, %v2051
        %v2058 = vadd.f32 %v2028, %v2052
        %v2059 = vmul.f32 %v1934, %v1108
        %v2060 = vmul.f32 %v1935, %v1110
        %v2061 = vld [vmem:[%s1265] sm:$0xff]
        %v2062 = vld [vmem:[%s1265 + $0x8] sm:$0xff]
        %v2063 = vld [vmem:[%s1265 + $0x10] sm:$0xff]
        %v2064 = vld [vmem:[%s1265 + $0x18] sm:$0xff]
        %v2065 = vld [vmem:[%s1265 + $0x20] sm:$0xff]
        %v2066 = vld [vmem:[%s1265 + $0x28] sm:$0xff]
        %2068 = vset.pattern.permute.xlu0 0
        %2069 = vperm.xlu0 %2068, %v2059
        %v2070 = vpop.permute.xlu0 %2069
        %2073 = vset.pattern.permute.xlu0 0
        %2074 = vperm.xlu0 %2073, %v2060
        %v2075 = vpop.permute.xlu0 %2074
        %v2077 = vmul.f32 %v2070, %v2061
        %v2078 = vmul.f32 %v2070, %v2062
        %v2079 = vmul.f32 %v2070, %v2063
        %v2080 = vmul.f32 %v2075, %v2064
        %v2081 = vmul.f32 %v2075, %v2065
        %v2082 = vmul.f32 %v2075, %v2066
        %v2083 = vadd.f32 %v2053, %v2077
        %v2084 = vadd.f32 %v2054, %v2078
        %v2085 = vadd.f32 %v2055, %v2079
        %v2086 = vadd.f32 %v2056, %v2080
        %v2087 = vadd.f32 %v2057, %v2081
        %v2088 = vadd.f32 %v2058, %v2082
        %v2089 = vmul.f32 %v1937, %v1112
        %v2090 = vmul.f32 %v1938, %v1114
        %v2091 = vld [vmem:[%s1296] sm:$0xff]
        %v2092 = vld [vmem:[%s1296 + $0x8] sm:$0xff]
        %v2093 = vld [vmem:[%s1296 + $0x10] sm:$0xff]
        %v2094 = vld [vmem:[%s1296 + $0x18] sm:$0xff]
        %v2095 = vld [vmem:[%s1296 + $0x20] sm:$0xff]
        %v2096 = vld [vmem:[%s1296 + $0x28] sm:$0xff]
        %2098 = vset.pattern.permute.xlu0 0
        %2099 = vperm.xlu0 %2098, %v2089
        %v2100 = vpop.permute.xlu0 %2099
        %2103 = vset.pattern.permute.xlu0 0
        %2104 = vperm.xlu0 %2103, %v2090
        %v2105 = vpop.permute.xlu0 %2104
        %v2107 = vmul.f32 %v2100, %v2091
        %v2108 = vmul.f32 %v2100, %v2092
        %v2109 = vmul.f32 %v2100, %v2093
        %v2110 = vmul.f32 %v2105, %v2094
        %v2111 = vmul.f32 %v2105, %v2095
        %v2112 = vmul.f32 %v2105, %v2096
        %v2113 = vadd.f32 %v2083, %v2107
        %v2114 = vadd.f32 %v2084, %v2108
        %v2115 = vadd.f32 %v2085, %v2109
        %v2116 = vadd.f32 %v2086, %v2110
        %v2117 = vadd.f32 %v2087, %v2111
        %v2118 = vadd.f32 %v2088, %v2112
        %v2119 = vmul.f32 %v1940, %v1116
        %v2120 = vmul.f32 %v1941, %v1118
        %v2121 = vld [vmem:[%s1327] sm:$0xff]
        %v2122 = vld [vmem:[%s1327 + $0x8] sm:$0xff]
        %v2123 = vld [vmem:[%s1327 + $0x10] sm:$0xff]
        %v2124 = vld [vmem:[%s1327 + $0x18] sm:$0xff]
        %v2125 = vld [vmem:[%s1327 + $0x20] sm:$0xff]
        %v2126 = vld [vmem:[%s1327 + $0x28] sm:$0xff]
        %2128 = vset.pattern.permute.xlu0 0
        %2129 = vperm.xlu0 %2128, %v2119
        %v2130 = vpop.permute.xlu0 %2129
        %2133 = vset.pattern.permute.xlu0 0
        %2134 = vperm.xlu0 %2133, %v2120
        %v2135 = vpop.permute.xlu0 %2134
        %v2137 = vmul.f32 %v2130, %v2121
        %v2138 = vmul.f32 %v2130, %v2122
        %v2139 = vmul.f32 %v2130, %v2123
        %v2140 = vmul.f32 %v2135, %v2124
        %v2141 = vmul.f32 %v2135, %v2125
        %v2142 = vmul.f32 %v2135, %v2126
        %v2143 = vadd.f32 %v2113, %v2137
        %v2144 = vadd.f32 %v2114, %v2138
        %v2145 = vadd.f32 %v2115, %v2139
        %v2146 = vadd.f32 %v2116, %v2140
        %v2147 = vadd.f32 %v2117, %v2141
        %v2148 = vadd.f32 %v2118, %v2142
        %v2149 = vmul.f32 %v1943, %v1120
        %v2150 = vmul.f32 %v1944, %v1122
        %v2151 = vld [vmem:[%s1358] sm:$0xff]
        %v2152 = vld [vmem:[%s1358 + $0x8] sm:$0xff]
        %v2153 = vld [vmem:[%s1358 + $0x10] sm:$0xff]
        %v2154 = vld [vmem:[%s1358 + $0x18] sm:$0xff]
        %v2155 = vld [vmem:[%s1358 + $0x20] sm:$0xff]
        %v2156 = vld [vmem:[%s1358 + $0x28] sm:$0xff]
        %2158 = vset.pattern.permute.xlu0 0
        %2159 = vperm.xlu0 %2158, %v2149
        %v2160 = vpop.permute.xlu0 %2159
        %2163 = vset.pattern.permute.xlu0 0
        %2164 = vperm.xlu0 %2163, %v2150
        %v2165 = vpop.permute.xlu0 %2164
        %v2167 = vmul.f32 %v2160, %v2151
        %v2168 = vmul.f32 %v2160, %v2152
        %v2169 = vmul.f32 %v2160, %v2153
        %v2170 = vmul.f32 %v2165, %v2154
        %v2171 = vmul.f32 %v2165, %v2155
        %v2172 = vmul.f32 %v2165, %v2156
        %v2173 = vadd.f32 %v2143, %v2167
        %v2174 = vadd.f32 %v2144, %v2168
        %v2175 = vadd.f32 %v2145, %v2169
        %v2176 = vadd.f32 %v2146, %v2170
        %v2177 = vadd.f32 %v2147, %v2171
        %v2178 = vadd.f32 %v2148, %v2172
        %s2179 = scalar_lea.vmem %s675, 48 [#allocation8]
        %2180 = vst [vmem:[%s2179] sm:$0xff] %v2173
        %2181 = vst [vmem:[%s2179 + $0x8] sm:$0xff] %v2174
        %2182 = vst [vmem:[%s2179 + $0x10] sm:$0xff] %v2175
        %2183 = vst [vmem:[%s2179 + $0x18] sm:$0xff] %v2176
        %2184 = vst [vmem:[%s2179 + $0x20] sm:$0xff] %v2177
        %2185 = vst [vmem:[%s2179 + $0x28] sm:$0xff] %v2178
        %s2186 = sand.u32 %s122, 1
        %s2187 = scalar_lea.sflag [#allocation7], %s2186
        %s2188 = sand.u32 %s122, 1
        %s2189 = smul.addr %s2188, 96
        %s2190 = scalar_lea.vmem [#allocation6], %s2189
        %s2191 = sand.u32 %s150, 1
        %s2192 = scalar_lea.sflag [#allocation9], %s2191
        %s2193 = sand.u32 %s150, 1
        %s2194 = smul.addr %s2193, 96
        %s2195 = scalar_lea.vmem [#allocation8], %s2194
        // Predicated region
        $region151: #{tpu_custom_call.1} parent=133 // pred_check
          %p2196 = pneg %p132
        $region152: #{tpu_custom_call.1} parent=133 // pred_check_branch
          %2198 = sbr.rel (%p2196) target = $region154
        $region153: #{tpu_custom_call.1} parent=133 // pred_region
          #allocation11 [shape = 'u32[6]{0}', space=smem, size = 0x18, scoped, tag = 'DMA stride descriptor']
          %s2199 = smul.u32 2, %s26
          %s2200 = smul.u32 3, %s27
          %s2202 = ssub.s32 1536, 1536
          %2203 = vsyncadd %s2187, %s2202
          %s2204 = smul.addr %s2199, 3
          %s2205 = sadd.s32 %s2200, %s2204
          %s2206 = smul.addr %s2205, 128
          %s2207 = scalar_lea.hbm %s3, %s2206
          %s2209 = sshll.u32 1, 14
          %s2210 = sxor.u32 4294967295, %s2209
          %s2213 = sshll.u32 7, 18
          %s2214 = sxor.u32 4294967295, %s2213
          %s2215 = sand.u32 0, %s2214
          %s2217 = sor.u32 %s2215, 0
          %s2219 = sshll.u32 3, 24
          %s2220 = sxor.u32 4294967295, %s2219
          %s2221 = sand.u32 %s2217, %s2220
          %s2223 = sor.u32 %s2221, 0
          %s2224 = sshll.u32 %s2190, 4
          %s2225 = int_to_ptr.vmem [resolvable:$true] %s2224
          %2231 = sst [smem:[#allocation11]] 768
          %s2232 = scalar_lea.smem [#allocation11], 1
          %2233 = sst [smem:[%s2232]] 1536
          %s2234 = scalar_lea.smem [#allocation11], 2
          %2235 = sst [smem:[%s2234]] 2
          %s2236 = scalar_lea.smem [#allocation11], 3
          %2237 = sst [smem:[%s2236]] 384
          %s2238 = scalar_lea.smem [#allocation11], 4
          %2239 = sst [smem:[%s2238]] 384
          %s2240 = scalar_lea.smem [#allocation11], 5
          %2241 = sst [smem:[%s2240]] 24
          %2243 = dma.general %s2225, 1536, %s2207, %s2187, [#allocation10], [#allocation11], %s2223, 0
        $region154: #{tpu_custom_call.1} parent=133 // pred_fallthru
          _
        // Predicated region
        $region155: #{tpu_custom_call.1} parent=133 // pred_check
          %p2244 = pneg %p160
        $region156: #{tpu_custom_call.1} parent=133 // pred_check_branch
          %2246 = sbr.rel (%p2244) target = $region158
        $region157: #{tpu_custom_call.1} parent=133 // pred_region
          #allocation13 [shape = 'u32[6]{0}', space=smem, size = 0x18, scoped, tag = 'DMA stride descriptor']
          %s2247 = smul.u32 2, %s26
          %s2248 = smul.u32 3, %s27
          %s2250 = ssub.s32 1536, 1536
          %2251 = vsyncadd %s2192, %s2250
          %s2252 = smul.addr %s2247, 3
          %s2253 = sadd.s32 %s2248, %s2252
          %s2254 = smul.addr %s2253, 128
          %s2255 = scalar_lea.hbm %s4, %s2254
          %s2257 = sshll.u32 1, 14
          %s2258 = sxor.u32 4294967295, %s2257
          %s2261 = sshll.u32 7, 18
          %s2262 = sxor.u32 4294967295, %s2261
          %s2263 = sand.u32 0, %s2262
          %s2265 = sor.u32 %s2263, 0
          %s2267 = sshll.u32 3, 24
          %s2268 = sxor.u32 4294967295, %s2267
          %s2269 = sand.u32 %s2265, %s2268
          %s2271 = sor.u32 %s2269, 0
          %s2272 = sshll.u32 %s2195, 4
          %s2273 = int_to_ptr.vmem [resolvable:$true] %s2272
          %2279 = sst [smem:[#allocation13]] 768
          %s2280 = scalar_lea.smem [#allocation13], 1
          %2281 = sst [smem:[%s2280]] 1536
          %s2282 = scalar_lea.smem [#allocation13], 2
          %2283 = sst [smem:[%s2282]] 2
          %s2284 = scalar_lea.smem [#allocation13], 3
          %2285 = sst [smem:[%s2284]] 384
          %s2286 = scalar_lea.smem [#allocation13], 4
          %2287 = sst [smem:[%s2286]] 384
          %s2288 = scalar_lea.smem [#allocation13], 5
          %2289 = sst [smem:[%s2288]] 24
          %2291 = dma.general %s2273, 1536, %s2255, %s2192, [#allocation12], [#allocation13], %s2271, 0
        $region158: #{tpu_custom_call.1} parent=133 // pred_fallthru
          _
      $region134: #{tpu_custom_call.1} parent=5 // pred_fallthru
        _
      %p2292 = scmp.le.s32.totalorder 2, %s17
      // Predicated region
      $region159: #{tpu_custom_call.1} parent=5 // pred_check
        %p2293 = pneg %p2292
      $region160: #{tpu_custom_call.1} parent=5 // pred_check_branch
        %2295 = sbr.rel (%p2293) target = $region162
      $region161: #{tpu_custom_call.1} parent=5 // pred_region
        %s2296 = ssub.s32 %s17, 2
        // Predicated region
        $region163: #{tpu_custom_call.1} parent=161 // pred_check
          %p2297 = pneg %p138
        $region164: #{tpu_custom_call.1} parent=161 // pred_check_branch
          %2299 = sbr.rel (%p2297) target = $region166
        $region165: #{tpu_custom_call.1} parent=161 // pred_region
          %s2300 = sand.u32 %s123, 1
          %s2301 = scalar_lea.sflag [#allocation7], %s2300
          %s2302 = sand.u32 %s123, 1
          %s2303 = smul.addr %s2302, 96
          %s2304 = scalar_lea.vmem [#allocation6], %s2303
          %2305 = dma.done %s2301, 1536
        $region166: #{tpu_custom_call.1} parent=161 // pred_fallthru
          _
        // Predicated region
        $region167: #{tpu_custom_call.1} parent=161 // pred_check
          %p2306 = pneg %p166
        $region168: #{tpu_custom_call.1} parent=161 // pred_check_branch
          %2308 = sbr.rel (%p2306) target = $region170
        $region169: #{tpu_custom_call.1} parent=161 // pred_region
          %s2309 = sand.u32 %s151, 1
          %s2310 = scalar_lea.sflag [#allocation9], %s2309
          %s2311 = sand.u32 %s151, 1
          %s2312 = smul.addr %s2311, 96
          %s2313 = scalar_lea.vmem [#allocation8], %s2312
          %2314 = dma.done %s2310, 1536
        $region170: #{tpu_custom_call.1} parent=161 // pred_fallthru
          _
      $region162: #{tpu_custom_call.1} parent=5 // pred_fallthru
        _
    $region6: #{tpu_custom_call.1} parent=1 // loop_footer
      %s21 = sadd.s32 1, %s17
    $region7: #{tpu_custom_call.1} parent=1 // loop_footer_branch
      %16 = sbr.rel target = $region3
    $region8: #{tpu_custom_call.1} parent=1 // loop_exit
      _
    %2315 = vsyncpa [#allocation7], 1
    %s2316 = scalar_lea.sflag [#allocation7], 1
    %2317 = vsyncpa %s2316, 1
    %2318 = vsyncpa [#allocation9], 1
    %s2319 = scalar_lea.sflag [#allocation9], 1
    %2320 = vsyncpa %s2319, 1

</llo_original>
